<compile_context>
chip_gen: v7x
topology: tpu7x:2x2x1
jax: 0.10.0
libtpu: 0.0.40
codegen_flags: <defaults>
</compile_context>

<pallas_src>
import functools

import jax
import jax.numpy as jnp
from jax.experimental import pallas as pl
from jax.experimental.pallas import tpu as pltpu


# ----------------------------------------------------------------------------
# Fused MGDPR forward kernel.  One grid step == one batch element.
# ----------------------------------------------------------------------------
def _mgdpr_fused_kernel(
    x_ref, adj_ref,
    emb_w_ref, emb_b_ref,
    weff_ref, convb_ref,
    wqkv_ref, bqkv_ref,
    wo_ref, bo_ref,
    gamma_ref, beta_ref,
    gmat_ref, gmat_t_ref,
    t1_w_ref, t1_b_ref,
    t2_w_ref, t2_b_ref,
    out1_w_ref, out1_b_ref,
    out2_w_ref, out2_b_ref,
    out_ref,
    *, num_layers, num_relations, num_heads, hidden_dim, num_nodes):

    f32 = jnp.float32
    H = hidden_dim
    N = num_nodes
    head_dim = H // num_heads
    inv_hd = 1.0 / float(head_dim)

    gmat = gmat_ref[...]        # [H, nH] 0/1 head-group matrix
    gmat_t = gmat_t_ref[...]    # [nH, H]

    # ---- embedding of the last-timestep features (only one used downstream)
    x = x_ref[0]                                                     # [N, F_in]
    h = jnp.dot(x, emb_w_ref[...], preferred_element_type=f32) + emb_b_ref[...]
    h_prime = jnp.zeros((N, H), f32)

    for l in range(num_layers):
        # ---- multi-relational graph diffusion ----------------------------
        # hw[:, r*H:(r+1)*H] = h @ W_eff[r]   (single wide MXU pass, all r)
        hw = jnp.dot(h, weff_ref[l], preferred_element_type=f32)    # [N, R*H]
        acc = jnp.zeros((N, H), f32)
        for r in range(num_relations):
            acc = acc + jnp.dot(adj_ref[0, r], hw[:, r * H:(r + 1) * H],
                                preferred_element_type=f32)
        h_diff = jnp.maximum(acc + convb_ref[l], 0.0)                # conv bias + ReLU

        # ---- parallel retention (seq_len == 1 -> decay mask == 1) --------
        qkv = jnp.dot(h_diff, wqkv_ref[l], preferred_element_type=f32) + bqkv_ref[l]
        q = qkv[:, 0:H]
        k = qkv[:, H:2 * H]
        v = qkv[:, 2 * H:3 * H]
        # per-head retention score = <q_h, k_h> (scalar per head), out = s*v
        s_h = jnp.dot(q * k, gmat, preferred_element_type=f32)      # [N, nH]
        s_full = jnp.dot(s_h, gmat_t, preferred_element_type=f32)   # [N, H]
        ret = s_full * v
        o = jnp.dot(ret, wo_ref[l], preferred_element_type=f32) + bo_ref[l]

        # GroupNorm(num_heads, H): normalize each head group of head_dim chans
        mean_h = jnp.dot(o, gmat, preferred_element_type=f32) * inv_hd
        diff = o - jnp.dot(mean_h, gmat_t, preferred_element_type=f32)
        var_h = jnp.dot(diff * diff, gmat, preferred_element_type=f32) * inv_hd
        var_full = jnp.dot(var_h, gmat_t, preferred_element_type=f32)
        h_ret = diff * jax.lax.rsqrt(var_full + 1e-5) * gamma_ref[l] + beta_ref[l]

        # ---- gated transforms (t2 split over rows avoids in-kernel concat)
        t2w = t2_w_ref[l]                                            # [2H, H]
        h_new = jnp.maximum(
            jnp.dot(h_ret, t2w[0:H, :], preferred_element_type=f32)
            + jnp.dot(h_prime, t2w[H:2 * H, :], preferred_element_type=f32)
            + t2_b_ref[l], 0.0)
        h_prime = jnp.maximum(
            jnp.dot(h_prime, t1_w_ref[l], preferred_element_type=f32)
            + t1_b_ref[l], 0.0)
        h = h_new

    # ---- output head (fused; lane-dense padded output slab) ----------------
    o1 = jnp.maximum(jnp.dot(h, out1_w_ref[...], preferred_element_type=f32)
                     + out1_b_ref[...], 0.0)
    o2 = jnp.dot(o1, out2_w_ref[...], preferred_element_type=f32) + out2_b_ref[...]
    out_ref[0] = o2.astype(out_ref.dtype)


# ----------------------------------------------------------------------------
# Parameter preparation (glue, runs once per call / folds constants)
# ----------------------------------------------------------------------------
def _prepare_fused_params(params, *, hidden_dim, output_dim, num_layers,
                          num_relations, num_heads, o_pad):
    H, R = hidden_dim, num_relations
    layers = params["layers"]
    f32 = jnp.float32

    def stack(fn):
        return jnp.stack([fn(lp) for lp in layers], axis=0).astype(f32)

    # Diffusion: sum_k softmax(alpha)[r,k] * adj == adj * softmax_sum (==1),
    # and conv1x1 merges relations with scalar weights conv_w[r]; fold both
    # (plus the F.linear transpose of transition[r].mean(0)) into W_eff.
    def weff_of(lp):
        alpha_sum = jax.nn.softmax(lp["alpha"], axis=1).sum(axis=1)      # [R] (==1)
        w_mean = lp["transition"].mean(axis=1)                           # [R, H, H]
        scale = alpha_sum * lp["conv_w"]                                 # [R]
        w_eff = jnp.transpose(w_mean, (0, 2, 1)) * scale[:, None, None]  # [R, H, H]
        return jnp.transpose(w_eff, (1, 0, 2)).reshape(H, R * H)         # [H, R*H]

    fp = {}
    fp["emb_w"] = params["emb_w_t"].astype(f32)
    fp["emb_b"] = params["emb_b"].reshape(1, H).astype(f32)
    fp["weff"] = stack(weff_of)
    fp["convb"] = stack(lambda lp: jnp.broadcast_to(lp["conv_b"].reshape(1, 1), (1, H)))
    fp["wqkv"] = stack(lambda lp: jnp.concatenate(
        [lp["wq_t"], lp["wk_t"], lp["wv_t"]], axis=1))                   # [H, 3H]
    fp["bqkv"] = stack(lambda lp: jnp.concatenate(
        [lp["bq"], lp["bk"], lp["bv"]]).reshape(1, 3 * H))
    fp["wo"] = stack(lambda lp: lp["wo_t"])
    fp["bo"] = stack(lambda lp: lp["bo"].reshape(1, H))
    fp["gamma"] = stack(lambda lp: lp["gn_gamma"].reshape(1, H))
    fp["beta"] = stack(lambda lp: lp["gn_beta"].reshape(1, H))
    fp["t1_w"] = stack(lambda lp: lp["t1_w_t"])
    fp["t1_b"] = stack(lambda lp: (lp["t1_b"] + lp["tb1"]).reshape(1, H))
    fp["t2_w"] = stack(lambda lp: lp["t2_w_t"])
    fp["t2_b"] = stack(lambda lp: (lp["t2_b"] + lp["tb2"]).reshape(1, H))

    head_dim = H // num_heads
    gmat = jnp.kron(jnp.eye(num_heads, dtype=f32), jnp.ones((head_dim, 1), f32))
    fp["gmat"] = gmat                                                    # [H, nH]
    fp["gmat_t"] = gmat.T                                                # [nH, H]

    fp["out1_w"] = params["out1_w_t"].astype(f32)
    fp["out1_b"] = params["out1_b"].reshape(1, H).astype(f32)
    out2_w = params["out2_w_t"].astype(f32)                              # [H, O]
    out2_b = params["out2_b"].astype(f32)                                # [O]
    fp["out2_w"] = jnp.pad(out2_w, ((0, 0), (0, o_pad - output_dim)))
    fp["out2_b"] = jnp.pad(out2_b, (0, o_pad - output_dim)).reshape(1, o_pad)
    return fp


def _const_spec(arr):
    nd = arr.ndim
    return pl.BlockSpec(arr.shape, lambda b, _nd=nd: (0,) * _nd)


# ----------------------------------------------------------------------------
# Full MGDPR forward (one fused pallas_call)
# ----------------------------------------------------------------------------
def mgdpr_forward(params, x, adj_list, *, hidden_dim, output_dim,
                  num_layers, num_heads, num_relations):
    B, N, L, F_in = x.shape
    H = hidden_dim
    nH = num_heads
    R = num_relations
    O_PAD = 128   # lane-dense output slab; real logits are [..., :output_dim]

    fp = _prepare_fused_params(
        params, hidden_dim=H, output_dim=output_dim, num_layers=num_layers,
        num_relations=R, num_heads=nH, o_pad=O_PAD)

    # Embedding is per-timestep; only the last timestep feeds the layers, so
    # embedding the last timestep is equivalent to the reference.
    x_last = x[:, :, -1, :].astype(jnp.float32)                          # [B, N, F_in]
    adj = adj_list.astype(jnp.float32)                                   # [B, R, N, N]

    inputs = [
        x_last, adj,
        fp["emb_w"], fp["emb_b"],
        fp["weff"], fp["convb"],
        fp["wqkv"], fp["bqkv"],
        fp["wo"], fp["bo"],
        fp["gamma"], fp["beta"],
        fp["gmat"], fp["gmat_t"],
        fp["t1_w"], fp["t1_b"],
        fp["t2_w"], fp["t2_b"],
        fp["out1_w"], fp["out1_b"],
        fp["out2_w"], fp["out2_b"],
    ]

    in_specs = [
        pl.BlockSpec((1, N, F_in), lambda b: (b, 0, 0)),
        pl.BlockSpec((1, R, N, N), lambda b: (b, 0, 0, 0)),
    ] + [_const_spec(a) for a in inputs[2:]]

    # Rough cost estimate (total over the grid) — helps XLA schedule the call.
    per_layer_flops = (2 * N * H * R * H        # h @ W_eff (all relations)
                       + 2 * R * N * N * H      # adjacency matmuls
                       + 2 * N * H * 3 * H      # packed QKV projection
                       + 2 * N * H * H          # out-proj
                       + 12 * N * H * nH        # head reductions/broadcasts
                       + 2 * N * H * H          # t1
                       + 2 * N * 2 * H * H)     # t2 (split)
    flops = B * (2 * N * F_in * H + num_layers * per_layer_flops
                 + 2 * N * H * H + 2 * N * H * O_PAD)
    bytes_accessed = sum(int(a.size) * 4 for a in inputs) + B * N * O_PAD * 4
    transcendentals = B * num_layers * N * H

    kernel = functools.partial(
        _mgdpr_fused_kernel,
        num_layers=num_layers, num_relations=R, num_heads=nH,
        hidden_dim=H, num_nodes=N)

    out = pl.pallas_call(
        kernel,
        out_shape=jax.ShapeDtypeStruct((B, N, O_PAD), jnp.float32),
        grid=(B,),
        in_specs=in_specs,
        out_specs=pl.BlockSpec((1, N, O_PAD), lambda b: (b, 0, 0)),
        compiler_params=pltpu.CompilerParams(dimension_semantics=("parallel",)),
        cost_estimate=pl.CostEstimate(flops=flops, transcendentals=transcendentals,
                                      bytes_accessed=bytes_accessed),
    )(*inputs)

    return out[:, :, :output_dim]


# ----------------------------------------------------------------------------
# Parameter init (deterministic; shapes per the PyTorch module __init__)
# ----------------------------------------------------------------------------
def init_params(key, input_dim, hidden_dim, output_dim, num_relations,
                num_layers, expansion_steps, num_heads):
    H, R, K = hidden_dim, num_relations, expansion_steps
    keys = iter(jax.random.split(key, 256))

    def lin(in_f, out_f):
        w = jax.random.normal(next(keys), (out_f, in_f), jnp.float32) * 0.1
        b = jax.random.normal(next(keys), (out_f,), jnp.float32) * 0.01
        return w.T, b   # store pre-transposed:  F.linear(x, W, b) = x @ W.T + b

    params = {}
    params["emb_w_t"], params["emb_b"] = lin(input_dim, H)

    layers = []
    for _ in range(num_layers):
        lp = {}
        lp["alpha"] = jnp.ones((R, K), jnp.float32) / K
        lp["transition"] = jax.random.uniform(next(keys), (R, K, H, H), jnp.float32)
        lp["conv_w"] = jax.random.normal(next(keys), (R,), jnp.float32) * 0.1
        lp["conv_b"] = jax.random.normal(next(keys), (1,), jnp.float32) * 0.01
        lp["wq_t"], lp["bq"] = lin(H, H)
        lp["wk_t"], lp["bk"] = lin(H, H)
        lp["wv_t"], lp["bv"] = lin(H, H)
        lp["wo_t"], lp["bo"] = lin(H, H)
        lp["gn_gamma"] = jnp.ones((H,), jnp.float32)
        lp["gn_beta"] = jnp.zeros((H,), jnp.float32)
        lp["t1_w_t"], lp["t1_b"] = lin(H, H)
        lp["t2_w_t"], lp["t2_b"] = lin(2 * H, H)
        lp["tb1"] = jnp.zeros((H,), jnp.float32)
        lp["tb2"] = jnp.zeros((H,), jnp.float32)
        layers.append(lp)
    params["layers"] = layers

    params["out1_w_t"], params["out1_b"] = lin(H, H)
    params["out2_w_t"], params["out2_b"] = lin(H, output_dim)
    return params


# ----------------------------------------------------------------------------
# Pure-JAX reference (mirrors the PyTorch forward) for a sanity check
# ----------------------------------------------------------------------------
def mgdpr_reference(params, x, adj_list, *, hidden_dim, output_dim,
                    num_layers, num_heads, num_relations):
    B, N, L, F_in = x.shape
    H = hidden_dim
    hd = H // num_heads
    h = x[:, :, -1, :] @ params["emb_w_t"] + params["emb_b"]
    h_prime = jnp.zeros_like(h)
    for l in range(num_layers):
        lp = params["layers"][l]
        alpha_n = jax.nn.softmax(lp["alpha"], axis=1)
        outs = []
        for r in range(num_relations):
            dm = alpha_n[r].sum() * adj_list[:, r]                       # == adj
            o_r = jnp.einsum("bnm,bmh->bnh", dm, h)
            o_r = o_r @ lp["transition"][r].mean(axis=0).T
            outs.append(o_r)
        stacked = jnp.stack(outs, axis=1)                                # [B,R,N,H]
        merged = jnp.einsum("r,brnh->bnh", lp["conv_w"], stacked) + lp["conv_b"][0]
        h_diff = jax.nn.relu(merged)
        z = h_diff.reshape(B * N, H)
        q = (z @ lp["wq_t"] + lp["bq"]).reshape(B * N, num_heads, hd)
        k = (z @ lp["wk_t"] + lp["bk"]).reshape(B * N, num_heads, hd)
        v = (z @ lp["wv_t"] + lp["bv"]).reshape(B * N, num_heads, hd)
        s = jnp.sum(q * k, axis=-1, keepdims=True)
        ret = (s * v).reshape(B * N, H)
        o = ret @ lp["wo_t"] + lp["bo"]
        og = o.reshape(B * N, num_heads, hd)
        mean = og.mean(axis=-1, keepdims=True)
        var = ((og - mean) ** 2).mean(axis=-1, keepdims=True)
        on = ((og - mean) / jnp.sqrt(var + 1e-5)).reshape(B * N, H)
        h_ret = (on * lp["gn_gamma"] + lp["gn_beta"]).reshape(B, N, H)
        h_comb = jnp.concatenate([h_ret, h_prime], axis=-1)
        h_prime = jax.nn.relu(jnp.einsum("bnh,hk->bnk", h_prime, lp["t1_w_t"])
                              + lp["t1_b"] + lp["tb1"])
        h = jax.nn.relu(jnp.einsum("bnh,hk->bnk", h_comb, lp["t2_w_t"])
                        + lp["t2_b"] + lp["tb2"])
    out = jax.nn.relu(h @ params["out1_w_t"] + params["out1_b"])
    return out @ params["out2_w_t"] + params["out2_b"]


# ----------------------------------------------------------------------------
if __name__ == "__main__":
    B, N, L = 2, 16, 8
    input_dim, hidden_dim, output_dim = 4, 32, 2
    num_relations, num_layers, expansion_steps, num_heads = 3, 3, 5, 4

    key = jax.random.PRNGKey(0)
    kx, ka, kp = jax.random.split(key, 3)
    x = jax.random.normal(kx, (B, N, L, input_dim), jnp.float32)
    adj_list = jax.random.uniform(ka, (B, num_relations, N, N), jnp.float32)

    params = init_params(kp, input_dim, hidden_dim, output_dim,
                         num_relations, num_layers, expansion_steps, num_heads)

    fwd = jax.jit(functools.partial(
        mgdpr_forward, hidden_dim=hidden_dim, output_dim=output_dim,
        num_layers=num_layers, num_heads=num_heads, num_relations=num_relations))

    out = jax.block_until_ready(fwd(params, x, adj_list))
    assert out.shape == (B, N, output_dim)
    assert bool(jnp.all(jnp.isfinite(out)))

    # numerical sanity check against a pure-JAX (f32) reference
    with jax.default_matmul_precision("float32"):
        ref = mgdpr_reference(params, x, adj_list,
                              hidden_dim=hidden_dim, output_dim=output_dim,
                              num_layers=num_layers, num_heads=num_heads,
                              num_relations=num_relations)
    max_err = float(jnp.max(jnp.abs(out - ref)))
    assert max_err < 5e-2, f"max abs error vs reference: {max_err}"

    print("KERNEL_OK")
</pallas_src>

<mosaic_0001>
module attributes {stable_mosaic.version = 11 : i64} {
  func.func @_mgdpr_fused_kernel(%arg0: i32, %arg1: memref<1x16x4xf32, #tpu.memory_space<vmem>>, %arg2: memref<1x3x16x16xf32, #tpu.memory_space<vmem>>, %arg3: memref<4x32xf32, #tpu.memory_space<vmem>>, %arg4: memref<1x32xf32, #tpu.memory_space<vmem>>, %arg5: memref<3x32x96xf32, #tpu.memory_space<vmem>>, %arg6: memref<3x1x32xf32, #tpu.memory_space<vmem>>, %arg7: memref<3x32x96xf32, #tpu.memory_space<vmem>>, %arg8: memref<3x1x96xf32, #tpu.memory_space<vmem>>, %arg9: memref<3x32x32xf32, #tpu.memory_space<vmem>>, %arg10: memref<3x1x32xf32, #tpu.memory_space<vmem>>, %arg11: memref<3x1x32xf32, #tpu.memory_space<vmem>>, %arg12: memref<3x1x32xf32, #tpu.memory_space<vmem>>, %arg13: memref<32x4xf32, #tpu.memory_space<vmem>>, %arg14: memref<4x32xf32, #tpu.memory_space<vmem>>, %arg15: memref<3x32x32xf32, #tpu.memory_space<vmem>>, %arg16: memref<3x1x32xf32, #tpu.memory_space<vmem>>, %arg17: memref<3x64x32xf32, #tpu.memory_space<vmem>>, %arg18: memref<3x1x32xf32, #tpu.memory_space<vmem>>, %arg19: memref<32x32xf32, #tpu.memory_space<vmem>>, %arg20: memref<1x32xf32, #tpu.memory_space<vmem>>, %arg21: memref<32x128xf32, #tpu.memory_space<vmem>>, %arg22: memref<1x128xf32, #tpu.memory_space<vmem>>, %arg23: memref<1x16x128xf32, #tpu.memory_space<vmem>>) attributes {dimension_semantics = [#tpu.dimension_semantics<parallel>], iteration_bounds = array<i64: 2>, scalar_prefetch = 0 : i64, scratch_operands = 0 : i64, tpu.core_type = #tpu.core_type<tc>, window_params = [{transform_indices = @transform_0, window_bounds = array<i64: 1, 16, 4>}, {transform_indices = @transform_1, window_bounds = array<i64: 1, 3, 16, 16>}, {pipeline_mode = #tpu.pipeline_mode<synchronous>, transform_indices = @transform_2, window_bounds = array<i64: 4, 32>}, {pipeline_mode = #tpu.pipeline_mode<synchronous>, transform_indices = @transform_3, window_bounds = array<i64: 1, 32>}, {pipeline_mode = #tpu.pipeline_mode<synchronous>, transform_indices = @transform_4, window_bounds = array<i64: 3, 32, 96>}, {pipeline_mode = #tpu.pipeline_mode<synchronous>, transform_indices = @transform_5, window_bounds = array<i64: 3, 1, 32>}, {pipeline_mode = #tpu.pipeline_mode<synchronous>, transform_indices = @transform_6, window_bounds = array<i64: 3, 32, 96>}, {pipeline_mode = #tpu.pipeline_mode<synchronous>, transform_indices = @transform_7, window_bounds = array<i64: 3, 1, 96>}, {pipeline_mode = #tpu.pipeline_mode<synchronous>, transform_indices = @transform_8, window_bounds = array<i64: 3, 32, 32>}, {pipeline_mode = #tpu.pipeline_mode<synchronous>, transform_indices = @transform_9, window_bounds = array<i64: 3, 1, 32>}, {pipeline_mode = #tpu.pipeline_mode<synchronous>, transform_indices = @transform_10, window_bounds = array<i64: 3, 1, 32>}, {pipeline_mode = #tpu.pipeline_mode<synchronous>, transform_indices = @transform_11, window_bounds = array<i64: 3, 1, 32>}, {pipeline_mode = #tpu.pipeline_mode<synchronous>, transform_indices = @transform_12, window_bounds = array<i64: 32, 4>}, {pipeline_mode = #tpu.pipeline_mode<synchronous>, transform_indices = @transform_13, window_bounds = array<i64: 4, 32>}, {pipeline_mode = #tpu.pipeline_mode<synchronous>, transform_indices = @transform_14, window_bounds = array<i64: 3, 32, 32>}, {pipeline_mode = #tpu.pipeline_mode<synchronous>, transform_indices = @transform_15, window_bounds = array<i64: 3, 1, 32>}, {pipeline_mode = #tpu.pipeline_mode<synchronous>, transform_indices = @transform_16, window_bounds = array<i64: 3, 64, 32>}, {pipeline_mode = #tpu.pipeline_mode<synchronous>, transform_indices = @transform_17, window_bounds = array<i64: 3, 1, 32>}, {pipeline_mode = #tpu.pipeline_mode<synchronous>, transform_indices = @transform_18, window_bounds = array<i64: 32, 32>}, {pipeline_mode = #tpu.pipeline_mode<synchronous>, transform_indices = @transform_19, window_bounds = array<i64: 1, 32>}, {pipeline_mode = #tpu.pipeline_mode<synchronous>, transform_indices = @transform_20, window_bounds = array<i64: 32, 128>}, {pipeline_mode = #tpu.pipeline_mode<synchronous>, transform_indices = @transform_21, window_bounds = array<i64: 1, 128>}, {transform_indices = @transform_22, window_bounds = array<i64: 1, 16, 128>}]} {
    %c0 = arith.constant 0 : index
    %c0_0 = arith.constant 0 : index
    %0 = vector.load %arg13[%c0, %c0_0] : memref<32x4xf32, #tpu.memory_space<vmem>>, vector<32x4xf32>
    %c0_1 = arith.constant 0 : index
    %c0_2 = arith.constant 0 : index
    %1 = vector.load %arg14[%c0_1, %c0_2] : memref<4x32xf32, #tpu.memory_space<vmem>>, vector<4x32xf32>
    %c0_3 = arith.constant 0 : index
    %c0_4 = arith.constant 0 : index
    %c0_5 = arith.constant 0 : index
    %2 = vector.load %arg1[%c0_3, %c0_4, %c0_5] : memref<1x16x4xf32, #tpu.memory_space<vmem>>, vector<1x16x4xf32>
    %3 = vector.shape_cast %2 : vector<1x16x4xf32> to vector<16x4xf32>
    %c0_6 = arith.constant 0 : index
    %c0_7 = arith.constant 0 : index
    %4 = vector.load %arg3[%c0_6, %c0_7] : memref<4x32xf32, #tpu.memory_space<vmem>>, vector<4x32xf32>
    %cst = arith.constant dense<0.000000e+00> : vector<16x32xf32>
    %5 = tpu.matmul %3, %4, %cst {dimension_numbers = #tpu.dot_dimension_numbers<[1], [0], [0], [1], [0, 0, 1, 1], [], []>} : vector<16x4xf32>, vector<4x32xf32>, vector<16x32xf32> -> vector<16x32xf32>
    %c0_8 = arith.constant 0 : index
    %c0_9 = arith.constant 0 : index
    %6 = vector.load %arg4[%c0_8, %c0_9] : memref<1x32xf32, #tpu.memory_space<vmem>>, vector<1x32xf32>
    %7 = vector.broadcast %6 : vector<1x32xf32> to vector<16x32xf32>
    %8 = arith.addf %5, %7 : vector<16x32xf32>
    %cst_10 = arith.constant 0.000000e+00 : f32
    %9 = vector.broadcast %cst_10 : f32 to vector<16x32xf32>
    %c0_11 = arith.constant 0 : index
    %c0_12 = arith.constant 0 : index
    %c0_13 = arith.constant 0 : index
    %10 = vector.load %arg5[%c0_11, %c0_12, %c0_13] : memref<3x32x96xf32, #tpu.memory_space<vmem>>, vector<1x32x96xf32>
    %11 = vector.shape_cast %10 : vector<1x32x96xf32> to vector<32x96xf32>
    %cst_14 = arith.constant dense<0.000000e+00> : vector<16x96xf32>
    %12 = tpu.matmul %8, %11, %cst_14 {dimension_numbers = #tpu.dot_dimension_numbers<[1], [0], [0], [1], [0, 0, 1, 1], [], []>} : vector<16x32xf32>, vector<32x96xf32>, vector<16x96xf32> -> vector<16x96xf32>
    %cst_15 = arith.constant 0.000000e+00 : f32
    %13 = vector.broadcast %cst_15 : f32 to vector<16x32xf32>
    %c0_16 = arith.constant 0 : index
    %c0_17 = arith.constant 0 : index
    %c0_18 = arith.constant 0 : index
    %c0_19 = arith.constant 0 : index
    %14 = vector.load %arg2[%c0_16, %c0_17, %c0_18, %c0_19] : memref<1x3x16x16xf32, #tpu.memory_space<vmem>>, vector<1x1x16x16xf32>
    %15 = vector.shape_cast %14 : vector<1x1x16x16xf32> to vector<16x16xf32>
    %16 = vector.extract_strided_slice %12 {offsets = [0, 0], sizes = [16, 32], strides = [1, 1]} : vector<16x96xf32> to vector<16x32xf32>
    %cst_20 = arith.constant dense<0.000000e+00> : vector<16x32xf32>
    %17 = tpu.matmul %15, %16, %cst_20 {dimension_numbers = #tpu.dot_dimension_numbers<[1], [0], [0], [1], [0, 0, 1, 1], [], []>} : vector<16x16xf32>, vector<16x32xf32>, vector<16x32xf32> -> vector<16x32xf32>
    %18 = arith.addf %13, %17 : vector<16x32xf32>
    %c0_21 = arith.constant 0 : index
    %c1 = arith.constant 1 : index
    %c0_22 = arith.constant 0 : index
    %c0_23 = arith.constant 0 : index
    %19 = vector.load %arg2[%c0_21, %c1, %c0_22, %c0_23] : memref<1x3x16x16xf32, #tpu.memory_space<vmem>>, vector<1x1x16x16xf32>
    %20 = vector.shape_cast %19 : vector<1x1x16x16xf32> to vector<16x16xf32>
    %21 = vector.extract_strided_slice %12 {offsets = [0, 32], sizes = [16, 32], strides = [1, 1]} : vector<16x96xf32> to vector<16x32xf32>
    %cst_24 = arith.constant dense<0.000000e+00> : vector<16x32xf32>
    %22 = tpu.matmul %20, %21, %cst_24 {dimension_numbers = #tpu.dot_dimension_numbers<[1], [0], [0], [1], [0, 0, 1, 1], [], []>} : vector<16x16xf32>, vector<16x32xf32>, vector<16x32xf32> -> vector<16x32xf32>
    %23 = arith.addf %18, %22 : vector<16x32xf32>
    %c0_25 = arith.constant 0 : index
    %c2 = arith.constant 2 : index
    %c0_26 = arith.constant 0 : index
    %c0_27 = arith.constant 0 : index
    %24 = vector.load %arg2[%c0_25, %c2, %c0_26, %c0_27] : memref<1x3x16x16xf32, #tpu.memory_space<vmem>>, vector<1x1x16x16xf32>
    %25 = vector.shape_cast %24 : vector<1x1x16x16xf32> to vector<16x16xf32>
    %26 = vector.extract_strided_slice %12 {offsets = [0, 64], sizes = [16, 32], strides = [1, 1]} : vector<16x96xf32> to vector<16x32xf32>
    %cst_28 = arith.constant dense<0.000000e+00> : vector<16x32xf32>
    %27 = tpu.matmul %25, %26, %cst_28 {dimension_numbers = #tpu.dot_dimension_numbers<[1], [0], [0], [1], [0, 0, 1, 1], [], []>} : vector<16x16xf32>, vector<16x32xf32>, vector<16x32xf32> -> vector<16x32xf32>
    %28 = arith.addf %23, %27 : vector<16x32xf32>
    %c0_29 = arith.constant 0 : index
    %c0_30 = arith.constant 0 : index
    %c0_31 = arith.constant 0 : index
    %29 = vector.load %arg6[%c0_29, %c0_30, %c0_31] : memref<3x1x32xf32, #tpu.memory_space<vmem>>, vector<1x1x32xf32>
    %30 = vector.shape_cast %29 : vector<1x1x32xf32> to vector<1x32xf32>
    %31 = vector.broadcast %30 : vector<1x32xf32> to vector<16x32xf32>
    %32 = arith.addf %28, %31 : vector<16x32xf32>
    %cst_32 = arith.constant 0.000000e+00 : f32
    %33 = vector.broadcast %cst_32 : f32 to vector<16x32xf32>
    %34 = arith.maximumf %32, %33 : vector<16x32xf32>
    %c0_33 = arith.constant 0 : index
    %c0_34 = arith.constant 0 : index
    %c0_35 = arith.constant 0 : index
    %35 = vector.load %arg7[%c0_33, %c0_34, %c0_35] : memref<3x32x96xf32, #tpu.memory_space<vmem>>, vector<1x32x96xf32>
    %36 = vector.shape_cast %35 : vector<1x32x96xf32> to vector<32x96xf32>
    %cst_36 = arith.constant dense<0.000000e+00> : vector<16x96xf32>
    %37 = tpu.matmul %34, %36, %cst_36 {dimension_numbers = #tpu.dot_dimension_numbers<[1], [0], [0], [1], [0, 0, 1, 1], [], []>} : vector<16x32xf32>, vector<32x96xf32>, vector<16x96xf32> -> vector<16x96xf32>
    %c0_37 = arith.constant 0 : index
    %c0_38 = arith.constant 0 : index
    %c0_39 = arith.constant 0 : index
    %38 = vector.load %arg8[%c0_37, %c0_38, %c0_39] : memref<3x1x96xf32, #tpu.memory_space<vmem>>, vector<1x1x96xf32>
    %39 = vector.shape_cast %38 : vector<1x1x96xf32> to vector<1x96xf32>
    %40 = vector.broadcast %39 : vector<1x96xf32> to vector<16x96xf32>
    %41 = arith.addf %37, %40 : vector<16x96xf32>
    %42 = vector.extract_strided_slice %41 {offsets = [0, 0], sizes = [16, 32], strides = [1, 1]} : vector<16x96xf32> to vector<16x32xf32>
    %43 = vector.extract_strided_slice %41 {offsets = [0, 32], sizes = [16, 32], strides = [1, 1]} : vector<16x96xf32> to vector<16x32xf32>
    %44 = vector.extract_strided_slice %41 {offsets = [0, 64], sizes = [16, 32], strides = [1, 1]} : vector<16x96xf32> to vector<16x32xf32>
    %45 = arith.mulf %42, %43 : vector<16x32xf32>
    %cst_40 = arith.constant dense<0.000000e+00> : vector<16x4xf32>
    %46 = tpu.matmul %45, %0, %cst_40 {dimension_numbers = #tpu.dot_dimension_numbers<[1], [0], [0], [1], [0, 0, 1, 1], [], []>} : vector<16x32xf32>, vector<32x4xf32>, vector<16x4xf32> -> vector<16x4xf32>
    %cst_41 = arith.constant dense<0.000000e+00> : vector<16x32xf32>
    %47 = tpu.matmul %46, %1, %cst_41 {dimension_numbers = #tpu.dot_dimension_numbers<[1], [0], [0], [1], [0, 0, 1, 1], [], []>} : vector<16x4xf32>, vector<4x32xf32>, vector<16x32xf32> -> vector<16x32xf32>
    %48 = arith.mulf %47, %44 : vector<16x32xf32>
    %c0_42 = arith.constant 0 : index
    %c0_43 = arith.constant 0 : index
    %c0_44 = arith.constant 0 : index
    %49 = vector.load %arg9[%c0_42, %c0_43, %c0_44] : memref<3x32x32xf32, #tpu.memory_space<vmem>>, vector<1x32x32xf32>
    %50 = vector.shape_cast %49 : vector<1x32x32xf32> to vector<32x32xf32>
    %cst_45 = arith.constant dense<0.000000e+00> : vector<16x32xf32>
    %51 = tpu.matmul %48, %50, %cst_45 {dimension_numbers = #tpu.dot_dimension_numbers<[1], [0], [0], [1], [0, 0, 1, 1], [], []>} : vector<16x32xf32>, vector<32x32xf32>, vector<16x32xf32> -> vector<16x32xf32>
    %c0_46 = arith.constant 0 : index
    %c0_47 = arith.constant 0 : index
    %c0_48 = arith.constant 0 : index
    %52 = vector.load %arg10[%c0_46, %c0_47, %c0_48] : memref<3x1x32xf32, #tpu.memory_space<vmem>>, vector<1x1x32xf32>
    %53 = vector.shape_cast %52 : vector<1x1x32xf32> to vector<1x32xf32>
    %54 = vector.broadcast %53 : vector<1x32xf32> to vector<16x32xf32>
    %55 = arith.addf %51, %54 : vector<16x32xf32>
    %cst_49 = arith.constant dense<0.000000e+00> : vector<16x4xf32>
    %56 = tpu.matmul %55, %0, %cst_49 {dimension_numbers = #tpu.dot_dimension_numbers<[1], [0], [0], [1], [0, 0, 1, 1], [], []>} : vector<16x32xf32>, vector<32x4xf32>, vector<16x4xf32> -> vector<16x4xf32>
    %cst_50 = arith.constant 1.250000e-01 : f32
    %57 = vector.broadcast %cst_50 : f32 to vector<16x4xf32>
    %58 = arith.mulf %56, %57 : vector<16x4xf32>
    %cst_51 = arith.constant dense<0.000000e+00> : vector<16x32xf32>
    %59 = tpu.matmul %58, %1, %cst_51 {dimension_numbers = #tpu.dot_dimension_numbers<[1], [0], [0], [1], [0, 0, 1, 1], [], []>} : vector<16x4xf32>, vector<4x32xf32>, vector<16x32xf32> -> vector<16x32xf32>
    %60 = arith.subf %55, %59 : vector<16x32xf32>
    %61 = arith.mulf %60, %60 : vector<16x32xf32>
    %cst_52 = arith.constant dense<0.000000e+00> : vector<16x4xf32>
    %62 = tpu.matmul %61, %0, %cst_52 {dimension_numbers = #tpu.dot_dimension_numbers<[1], [0], [0], [1], [0, 0, 1, 1], [], []>} : vector<16x32xf32>, vector<32x4xf32>, vector<16x4xf32> -> vector<16x4xf32>
    %cst_53 = arith.constant 1.250000e-01 : f32
    %63 = vector.broadcast %cst_53 : f32 to vector<16x4xf32>
    %64 = arith.mulf %62, %63 : vector<16x4xf32>
    %cst_54 = arith.constant dense<0.000000e+00> : vector<16x32xf32>
    %65 = tpu.matmul %64, %1, %cst_54 {dimension_numbers = #tpu.dot_dimension_numbers<[1], [0], [0], [1], [0, 0, 1, 1], [], []>} : vector<16x4xf32>, vector<4x32xf32>, vector<16x32xf32> -> vector<16x32xf32>
    %cst_55 = arith.constant 9.99999974E-6 : f32
    %66 = vector.broadcast %cst_55 : f32 to vector<16x32xf32>
    %67 = arith.addf %65, %66 : vector<16x32xf32>
    %68 = math.rsqrt %67 : vector<16x32xf32>
    %69 = arith.mulf %60, %68 : vector<16x32xf32>
    %c0_56 = arith.constant 0 : index
    %c0_57 = arith.constant 0 : index
    %c0_58 = arith.constant 0 : index
    %70 = vector.load %arg11[%c0_56, %c0_57, %c0_58] : memref<3x1x32xf32, #tpu.memory_space<vmem>>, vector<1x1x32xf32>
    %71 = vector.shape_cast %70 : vector<1x1x32xf32> to vector<1x32xf32>
    %72 = vector.broadcast %71 : vector<1x32xf32> to vector<16x32xf32>
    %73 = arith.mulf %69, %72 : vector<16x32xf32>
    %c0_59 = arith.constant 0 : index
    %c0_60 = arith.constant 0 : index
    %c0_61 = arith.constant 0 : index
    %74 = vector.load %arg12[%c0_59, %c0_60, %c0_61] : memref<3x1x32xf32, #tpu.memory_space<vmem>>, vector<1x1x32xf32>
    %75 = vector.shape_cast %74 : vector<1x1x32xf32> to vector<1x32xf32>
    %76 = vector.broadcast %75 : vector<1x32xf32> to vector<16x32xf32>
    %77 = arith.addf %73, %76 : vector<16x32xf32>
    %c0_62 = arith.constant 0 : index
    %c0_63 = arith.constant 0 : index
    %c0_64 = arith.constant 0 : index
    %78 = vector.load %arg17[%c0_62, %c0_63, %c0_64] : memref<3x64x32xf32, #tpu.memory_space<vmem>>, vector<1x64x32xf32>
    %79 = vector.shape_cast %78 : vector<1x64x32xf32> to vector<64x32xf32>
    %80 = vector.extract_strided_slice %79 {offsets = [0, 0], sizes = [32, 32], strides = [1, 1]} : vector<64x32xf32> to vector<32x32xf32>
    %cst_65 = arith.constant dense<0.000000e+00> : vector<16x32xf32>
    %81 = tpu.matmul %77, %80, %cst_65 {dimension_numbers = #tpu.dot_dimension_numbers<[1], [0], [0], [1], [0, 0, 1, 1], [], []>} : vector<16x32xf32>, vector<32x32xf32>, vector<16x32xf32> -> vector<16x32xf32>
    %82 = vector.extract_strided_slice %79 {offsets = [32, 0], sizes = [32, 32], strides = [1, 1]} : vector<64x32xf32> to vector<32x32xf32>
    %cst_66 = arith.constant dense<0.000000e+00> : vector<16x32xf32>
    %83 = tpu.matmul %9, %82, %cst_66 {dimension_numbers = #tpu.dot_dimension_numbers<[1], [0], [0], [1], [0, 0, 1, 1], [], []>} : vector<16x32xf32>, vector<32x32xf32>, vector<16x32xf32> -> vector<16x32xf32>
    %84 = arith.addf %81, %83 : vector<16x32xf32>
    %c0_67 = arith.constant 0 : index
    %c0_68 = arith.constant 0 : index
    %c0_69 = arith.constant 0 : index
    %85 = vector.load %arg18[%c0_67, %c0_68, %c0_69] : memref<3x1x32xf32, #tpu.memory_space<vmem>>, vector<1x1x32xf32>
    %86 = vector.shape_cast %85 : vector<1x1x32xf32> to vector<1x32xf32>
    %87 = vector.broadcast %86 : vector<1x32xf32> to vector<16x32xf32>
    %88 = arith.addf %84, %87 : vector<16x32xf32>
    %cst_70 = arith.constant 0.000000e+00 : f32
    %89 = vector.broadcast %cst_70 : f32 to vector<16x32xf32>
    %90 = arith.maximumf %88, %89 : vector<16x32xf32>
    %c0_71 = arith.constant 0 : index
    %c0_72 = arith.constant 0 : index
    %c0_73 = arith.constant 0 : index
    %91 = vector.load %arg15[%c0_71, %c0_72, %c0_73] : memref<3x32x32xf32, #tpu.memory_space<vmem>>, vector<1x32x32xf32>
    %92 = vector.shape_cast %91 : vector<1x32x32xf32> to vector<32x32xf32>
    %cst_74 = arith.constant dense<0.000000e+00> : vector<16x32xf32>
    %93 = tpu.matmul %9, %92, %cst_74 {dimension_numbers = #tpu.dot_dimension_numbers<[1], [0], [0], [1], [0, 0, 1, 1], [], []>} : vector<16x32xf32>, vector<32x32xf32>, vector<16x32xf32> -> vector<16x32xf32>
    %c0_75 = arith.constant 0 : index
    %c0_76 = arith.constant 0 : index
    %c0_77 = arith.constant 0 : index
    %94 = vector.load %arg16[%c0_75, %c0_76, %c0_77] : memref<3x1x32xf32, #tpu.memory_space<vmem>>, vector<1x1x32xf32>
    %95 = vector.shape_cast %94 : vector<1x1x32xf32> to vector<1x32xf32>
    %96 = vector.broadcast %95 : vector<1x32xf32> to vector<16x32xf32>
    %97 = arith.addf %93, %96 : vector<16x32xf32>
    %cst_78 = arith.constant 0.000000e+00 : f32
    %98 = vector.broadcast %cst_78 : f32 to vector<16x32xf32>
    %99 = arith.maximumf %97, %98 : vector<16x32xf32>
    %c1_79 = arith.constant 1 : index
    %c0_80 = arith.constant 0 : index
    %c0_81 = arith.constant 0 : index
    %100 = vector.load %arg5[%c1_79, %c0_80, %c0_81] : memref<3x32x96xf32, #tpu.memory_space<vmem>>, vector<1x32x96xf32>
    %101 = vector.shape_cast %100 : vector<1x32x96xf32> to vector<32x96xf32>
    %cst_82 = arith.constant dense<0.000000e+00> : vector<16x96xf32>
    %102 = tpu.matmul %90, %101, %cst_82 {dimension_numbers = #tpu.dot_dimension_numbers<[1], [0], [0], [1], [0, 0, 1, 1], [], []>} : vector<16x32xf32>, vector<32x96xf32>, vector<16x96xf32> -> vector<16x96xf32>
    %cst_83 = arith.constant 0.000000e+00 : f32
    %103 = vector.broadcast %cst_83 : f32 to vector<16x32xf32>
    %c0_84 = arith.constant 0 : index
    %c0_85 = arith.constant 0 : index
    %c0_86 = arith.constant 0 : index
    %c0_87 = arith.constant 0 : index
    %104 = vector.load %arg2[%c0_84, %c0_85, %c0_86, %c0_87] : memref<1x3x16x16xf32, #tpu.memory_space<vmem>>, vector<1x1x16x16xf32>
    %105 = vector.shape_cast %104 : vector<1x1x16x16xf32> to vector<16x16xf32>
    %106 = vector.extract_strided_slice %102 {offsets = [0, 0], sizes = [16, 32], strides = [1, 1]} : vector<16x96xf32> to vector<16x32xf32>
    %cst_88 = arith.constant dense<0.000000e+00> : vector<16x32xf32>
    %107 = tpu.matmul %105, %106, %cst_88 {dimension_numbers = #tpu.dot_dimension_numbers<[1], [0], [0], [1], [0, 0, 1, 1], [], []>} : vector<16x16xf32>, vector<16x32xf32>, vector<16x32xf32> -> vector<16x32xf32>
    %108 = arith.addf %103, %107 : vector<16x32xf32>
    %c0_89 = arith.constant 0 : index
    %c1_90 = arith.constant 1 : index
    %c0_91 = arith.constant 0 : index
    %c0_92 = arith.constant 0 : index
    %109 = vector.load %arg2[%c0_89, %c1_90, %c0_91, %c0_92] : memref<1x3x16x16xf32, #tpu.memory_space<vmem>>, vector<1x1x16x16xf32>
    %110 = vector.shape_cast %109 : vector<1x1x16x16xf32> to vector<16x16xf32>
    %111 = vector.extract_strided_slice %102 {offsets = [0, 32], sizes = [16, 32], strides = [1, 1]} : vector<16x96xf32> to vector<16x32xf32>
    %cst_93 = arith.constant dense<0.000000e+00> : vector<16x32xf32>
    %112 = tpu.matmul %110, %111, %cst_93 {dimension_numbers = #tpu.dot_dimension_numbers<[1], [0], [0], [1], [0, 0, 1, 1], [], []>} : vector<16x16xf32>, vector<16x32xf32>, vector<16x32xf32> -> vector<16x32xf32>
    %113 = arith.addf %108, %112 : vector<16x32xf32>
    %c0_94 = arith.constant 0 : index
    %c2_95 = arith.constant 2 : index
    %c0_96 = arith.constant 0 : index
    %c0_97 = arith.constant 0 : index
    %114 = vector.load %arg2[%c0_94, %c2_95, %c0_96, %c0_97] : memref<1x3x16x16xf32, #tpu.memory_space<vmem>>, vector<1x1x16x16xf32>
    %115 = vector.shape_cast %114 : vector<1x1x16x16xf32> to vector<16x16xf32>
    %116 = vector.extract_strided_slice %102 {offsets = [0, 64], sizes = [16, 32], strides = [1, 1]} : vector<16x96xf32> to vector<16x32xf32>
    %cst_98 = arith.constant dense<0.000000e+00> : vector<16x32xf32>
    %117 = tpu.matmul %115, %116, %cst_98 {dimension_numbers = #tpu.dot_dimension_numbers<[1], [0], [0], [1], [0, 0, 1, 1], [], []>} : vector<16x16xf32>, vector<16x32xf32>, vector<16x32xf32> -> vector<16x32xf32>
    %118 = arith.addf %113, %117 : vector<16x32xf32>
    %c1_99 = arith.constant 1 : index
    %c0_100 = arith.constant 0 : index
    %c0_101 = arith.constant 0 : index
    %119 = vector.load %arg6[%c1_99, %c0_100, %c0_101] : memref<3x1x32xf32, #tpu.memory_space<vmem>>, vector<1x1x32xf32>
    %120 = vector.shape_cast %119 : vector<1x1x32xf32> to vector<1x32xf32>
    %121 = vector.broadcast %120 : vector<1x32xf32> to vector<16x32xf32>
    %122 = arith.addf %118, %121 : vector<16x32xf32>
    %cst_102 = arith.constant 0.000000e+00 : f32
    %123 = vector.broadcast %cst_102 : f32 to vector<16x32xf32>
    %124 = arith.maximumf %122, %123 : vector<16x32xf32>
    %c1_103 = arith.constant 1 : index
    %c0_104 = arith.constant 0 : index
    %c0_105 = arith.constant 0 : index
    %125 = vector.load %arg7[%c1_103, %c0_104, %c0_105] : memref<3x32x96xf32, #tpu.memory_space<vmem>>, vector<1x32x96xf32>
    %126 = vector.shape_cast %125 : vector<1x32x96xf32> to vector<32x96xf32>
    %cst_106 = arith.constant dense<0.000000e+00> : vector<16x96xf32>
    %127 = tpu.matmul %124, %126, %cst_106 {dimension_numbers = #tpu.dot_dimension_numbers<[1], [0], [0], [1], [0, 0, 1, 1], [], []>} : vector<16x32xf32>, vector<32x96xf32>, vector<16x96xf32> -> vector<16x96xf32>
    %c1_107 = arith.constant 1 : index
    %c0_108 = arith.constant 0 : index
    %c0_109 = arith.constant 0 : index
    %128 = vector.load %arg8[%c1_107, %c0_108, %c0_109] : memref<3x1x96xf32, #tpu.memory_space<vmem>>, vector<1x1x96xf32>
    %129 = vector.shape_cast %128 : vector<1x1x96xf32> to vector<1x96xf32>
    %130 = vector.broadcast %129 : vector<1x96xf32> to vector<16x96xf32>
    %131 = arith.addf %127, %130 : vector<16x96xf32>
    %132 = vector.extract_strided_slice %131 {offsets = [0, 0], sizes = [16, 32], strides = [1, 1]} : vector<16x96xf32> to vector<16x32xf32>
    %133 = vector.extract_strided_slice %131 {offsets = [0, 32], sizes = [16, 32], strides = [1, 1]} : vector<16x96xf32> to vector<16x32xf32>
    %134 = vector.extract_strided_slice %131 {offsets = [0, 64], sizes = [16, 32], strides = [1, 1]} : vector<16x96xf32> to vector<16x32xf32>
    %135 = arith.mulf %132, %133 : vector<16x32xf32>
    %cst_110 = arith.constant dense<0.000000e+00> : vector<16x4xf32>
    %136 = tpu.matmul %135, %0, %cst_110 {dimension_numbers = #tpu.dot_dimension_numbers<[1], [0], [0], [1], [0, 0, 1, 1], [], []>} : vector<16x32xf32>, vector<32x4xf32>, vector<16x4xf32> -> vector<16x4xf32>
    %cst_111 = arith.constant dense<0.000000e+00> : vector<16x32xf32>
    %137 = tpu.matmul %136, %1, %cst_111 {dimension_numbers = #tpu.dot_dimension_numbers<[1], [0], [0], [1], [0, 0, 1, 1], [], []>} : vector<16x4xf32>, vector<4x32xf32>, vector<16x32xf32> -> vector<16x32xf32>
    %138 = arith.mulf %137, %134 : vector<16x32xf32>
    %c1_112 = arith.constant 1 : index
    %c0_113 = arith.constant 0 : index
    %c0_114 = arith.constant 0 : index
    %139 = vector.load %arg9[%c1_112, %c0_113, %c0_114] : memref<3x32x32xf32, #tpu.memory_space<vmem>>, vector<1x32x32xf32>
    %140 = vector.shape_cast %139 : vector<1x32x32xf32> to vector<32x32xf32>
    %cst_115 = arith.constant dense<0.000000e+00> : vector<16x32xf32>
    %141 = tpu.matmul %138, %140, %cst_115 {dimension_numbers = #tpu.dot_dimension_numbers<[1], [0], [0], [1], [0, 0, 1, 1], [], []>} : vector<16x32xf32>, vector<32x32xf32>, vector<16x32xf32> -> vector<16x32xf32>
    %c1_116 = arith.constant 1 : index
    %c0_117 = arith.constant 0 : index
    %c0_118 = arith.constant 0 : index
    %142 = vector.load %arg10[%c1_116, %c0_117, %c0_118] : memref<3x1x32xf32, #tpu.memory_space<vmem>>, vector<1x1x32xf32>
    %143 = vector.shape_cast %142 : vector<1x1x32xf32> to vector<1x32xf32>
    %144 = vector.broadcast %143 : vector<1x32xf32> to vector<16x32xf32>
    %145 = arith.addf %141, %144 : vector<16x32xf32>
    %cst_119 = arith.constant dense<0.000000e+00> : vector<16x4xf32>
    %146 = tpu.matmul %145, %0, %cst_119 {dimension_numbers = #tpu.dot_dimension_numbers<[1], [0], [0], [1], [0, 0, 1, 1], [], []>} : vector<16x32xf32>, vector<32x4xf32>, vector<16x4xf32> -> vector<16x4xf32>
    %cst_120 = arith.constant 1.250000e-01 : f32
    %147 = vector.broadcast %cst_120 : f32 to vector<16x4xf32>
    %148 = arith.mulf %146, %147 : vector<16x4xf32>
    %cst_121 = arith.constant dense<0.000000e+00> : vector<16x32xf32>
    %149 = tpu.matmul %148, %1, %cst_121 {dimension_numbers = #tpu.dot_dimension_numbers<[1], [0], [0], [1], [0, 0, 1, 1], [], []>} : vector<16x4xf32>, vector<4x32xf32>, vector<16x32xf32> -> vector<16x32xf32>
    %150 = arith.subf %145, %149 : vector<16x32xf32>
    %151 = arith.mulf %150, %150 : vector<16x32xf32>
    %cst_122 = arith.constant dense<0.000000e+00> : vector<16x4xf32>
    %152 = tpu.matmul %151, %0, %cst_122 {dimension_numbers = #tpu.dot_dimension_numbers<[1], [0], [0], [1], [0, 0, 1, 1], [], []>} : vector<16x32xf32>, vector<32x4xf32>, vector<16x4xf32> -> vector<16x4xf32>
    %cst_123 = arith.constant 1.250000e-01 : f32
    %153 = vector.broadcast %cst_123 : f32 to vector<16x4xf32>
    %154 = arith.mulf %152, %153 : vector<16x4xf32>
    %cst_124 = arith.constant dense<0.000000e+00> : vector<16x32xf32>
    %155 = tpu.matmul %154, %1, %cst_124 {dimension_numbers = #tpu.dot_dimension_numbers<[1], [0], [0], [1], [0, 0, 1, 1], [], []>} : vector<16x4xf32>, vector<4x32xf32>, vector<16x32xf32> -> vector<16x32xf32>
    %cst_125 = arith.constant 9.99999974E-6 : f32
    %156 = vector.broadcast %cst_125 : f32 to vector<16x32xf32>
    %157 = arith.addf %155, %156 : vector<16x32xf32>
    %158 = math.rsqrt %157 : vector<16x32xf32>
    %159 = arith.mulf %150, %158 : vector<16x32xf32>
    %c1_126 = arith.constant 1 : index
    %c0_127 = arith.constant 0 : index
    %c0_128 = arith.constant 0 : index
    %160 = vector.load %arg11[%c1_126, %c0_127, %c0_128] : memref<3x1x32xf32, #tpu.memory_space<vmem>>, vector<1x1x32xf32>
    %161 = vector.shape_cast %160 : vector<1x1x32xf32> to vector<1x32xf32>
    %162 = vector.broadcast %161 : vector<1x32xf32> to vector<16x32xf32>
    %163 = arith.mulf %159, %162 : vector<16x32xf32>
    %c1_129 = arith.constant 1 : index
    %c0_130 = arith.constant 0 : index
    %c0_131 = arith.constant 0 : index
    %164 = vector.load %arg12[%c1_129, %c0_130, %c0_131] : memref<3x1x32xf32, #tpu.memory_space<vmem>>, vector<1x1x32xf32>
    %165 = vector.shape_cast %164 : vector<1x1x32xf32> to vector<1x32xf32>
    %166 = vector.broadcast %165 : vector<1x32xf32> to vector<16x32xf32>
    %167 = arith.addf %163, %166 : vector<16x32xf32>
    %c1_132 = arith.constant 1 : index
    %c0_133 = arith.constant 0 : index
    %c0_134 = arith.constant 0 : index
    %168 = vector.load %arg17[%c1_132, %c0_133, %c0_134] : memref<3x64x32xf32, #tpu.memory_space<vmem>>, vector<1x64x32xf32>
    %169 = vector.shape_cast %168 : vector<1x64x32xf32> to vector<64x32xf32>
    %170 = vector.extract_strided_slice %169 {offsets = [0, 0], sizes = [32, 32], strides = [1, 1]} : vector<64x32xf32> to vector<32x32xf32>
    %cst_135 = arith.constant dense<0.000000e+00> : vector<16x32xf32>
    %171 = tpu.matmul %167, %170, %cst_135 {dimension_numbers = #tpu.dot_dimension_numbers<[1], [0], [0], [1], [0, 0, 1, 1], [], []>} : vector<16x32xf32>, vector<32x32xf32>, vector<16x32xf32> -> vector<16x32xf32>
    %172 = vector.extract_strided_slice %169 {offsets = [32, 0], sizes = [32, 32], strides = [1, 1]} : vector<64x32xf32> to vector<32x32xf32>
    %cst_136 = arith.constant dense<0.000000e+00> : vector<16x32xf32>
    %173 = tpu.matmul %99, %172, %cst_136 {dimension_numbers = #tpu.dot_dimension_numbers<[1], [0], [0], [1], [0, 0, 1, 1], [], []>} : vector<16x32xf32>, vector<32x32xf32>, vector<16x32xf32> -> vector<16x32xf32>
    %174 = arith.addf %171, %173 : vector<16x32xf32>
    %c1_137 = arith.constant 1 : index
    %c0_138 = arith.constant 0 : index
    %c0_139 = arith.constant 0 : index
    %175 = vector.load %arg18[%c1_137, %c0_138, %c0_139] : memref<3x1x32xf32, #tpu.memory_space<vmem>>, vector<1x1x32xf32>
    %176 = vector.shape_cast %175 : vector<1x1x32xf32> to vector<1x32xf32>
    %177 = vector.broadcast %176 : vector<1x32xf32> to vector<16x32xf32>
    %178 = arith.addf %174, %177 : vector<16x32xf32>
    %cst_140 = arith.constant 0.000000e+00 : f32
    %179 = vector.broadcast %cst_140 : f32 to vector<16x32xf32>
    %180 = arith.maximumf %178, %179 : vector<16x32xf32>
    %c1_141 = arith.constant 1 : index
    %c0_142 = arith.constant 0 : index
    %c0_143 = arith.constant 0 : index
    %181 = vector.load %arg15[%c1_141, %c0_142, %c0_143] : memref<3x32x32xf32, #tpu.memory_space<vmem>>, vector<1x32x32xf32>
    %182 = vector.shape_cast %181 : vector<1x32x32xf32> to vector<32x32xf32>
    %cst_144 = arith.constant dense<0.000000e+00> : vector<16x32xf32>
    %183 = tpu.matmul %99, %182, %cst_144 {dimension_numbers = #tpu.dot_dimension_numbers<[1], [0], [0], [1], [0, 0, 1, 1], [], []>} : vector<16x32xf32>, vector<32x32xf32>, vector<16x32xf32> -> vector<16x32xf32>
    %c1_145 = arith.constant 1 : index
    %c0_146 = arith.constant 0 : index
    %c0_147 = arith.constant 0 : index
    %184 = vector.load %arg16[%c1_145, %c0_146, %c0_147] : memref<3x1x32xf32, #tpu.memory_space<vmem>>, vector<1x1x32xf32>
    %185 = vector.shape_cast %184 : vector<1x1x32xf32> to vector<1x32xf32>
    %186 = vector.broadcast %185 : vector<1x32xf32> to vector<16x32xf32>
    %187 = arith.addf %183, %186 : vector<16x32xf32>
    %cst_148 = arith.constant 0.000000e+00 : f32
    %188 = vector.broadcast %cst_148 : f32 to vector<16x32xf32>
    %189 = arith.maximumf %187, %188 : vector<16x32xf32>
    %c2_149 = arith.constant 2 : index
    %c0_150 = arith.constant 0 : index
    %c0_151 = arith.constant 0 : index
    %190 = vector.load %arg5[%c2_149, %c0_150, %c0_151] : memref<3x32x96xf32, #tpu.memory_space<vmem>>, vector<1x32x96xf32>
    %191 = vector.shape_cast %190 : vector<1x32x96xf32> to vector<32x96xf32>
    %cst_152 = arith.constant dense<0.000000e+00> : vector<16x96xf32>
    %192 = tpu.matmul %180, %191, %cst_152 {dimension_numbers = #tpu.dot_dimension_numbers<[1], [0], [0], [1], [0, 0, 1, 1], [], []>} : vector<16x32xf32>, vector<32x96xf32>, vector<16x96xf32> -> vector<16x96xf32>
    %cst_153 = arith.constant 0.000000e+00 : f32
    %193 = vector.broadcast %cst_153 : f32 to vector<16x32xf32>
    %c0_154 = arith.constant 0 : index
    %c0_155 = arith.constant 0 : index
    %c0_156 = arith.constant 0 : index
    %c0_157 = arith.constant 0 : index
    %194 = vector.load %arg2[%c0_154, %c0_155, %c0_156, %c0_157] : memref<1x3x16x16xf32, #tpu.memory_space<vmem>>, vector<1x1x16x16xf32>
    %195 = vector.shape_cast %194 : vector<1x1x16x16xf32> to vector<16x16xf32>
    %196 = vector.extract_strided_slice %192 {offsets = [0, 0], sizes = [16, 32], strides = [1, 1]} : vector<16x96xf32> to vector<16x32xf32>
    %cst_158 = arith.constant dense<0.000000e+00> : vector<16x32xf32>
    %197 = tpu.matmul %195, %196, %cst_158 {dimension_numbers = #tpu.dot_dimension_numbers<[1], [0], [0], [1], [0, 0, 1, 1], [], []>} : vector<16x16xf32>, vector<16x32xf32>, vector<16x32xf32> -> vector<16x32xf32>
    %198 = arith.addf %193, %197 : vector<16x32xf32>
    %c0_159 = arith.constant 0 : index
    %c1_160 = arith.constant 1 : index
    %c0_161 = arith.constant 0 : index
    %c0_162 = arith.constant 0 : index
    %199 = vector.load %arg2[%c0_159, %c1_160, %c0_161, %c0_162] : memref<1x3x16x16xf32, #tpu.memory_space<vmem>>, vector<1x1x16x16xf32>
    %200 = vector.shape_cast %199 : vector<1x1x16x16xf32> to vector<16x16xf32>
    %201 = vector.extract_strided_slice %192 {offsets = [0, 32], sizes = [16, 32], strides = [1, 1]} : vector<16x96xf32> to vector<16x32xf32>
    %cst_163 = arith.constant dense<0.000000e+00> : vector<16x32xf32>
    %202 = tpu.matmul %200, %201, %cst_163 {dimension_numbers = #tpu.dot_dimension_numbers<[1], [0], [0], [1], [0, 0, 1, 1], [], []>} : vector<16x16xf32>, vector<16x32xf32>, vector<16x32xf32> -> vector<16x32xf32>
    %203 = arith.addf %198, %202 : vector<16x32xf32>
    %c0_164 = arith.constant 0 : index
    %c2_165 = arith.constant 2 : index
    %c0_166 = arith.constant 0 : index
    %c0_167 = arith.constant 0 : index
    %204 = vector.load %arg2[%c0_164, %c2_165, %c0_166, %c0_167] : memref<1x3x16x16xf32, #tpu.memory_space<vmem>>, vector<1x1x16x16xf32>
    %205 = vector.shape_cast %204 : vector<1x1x16x16xf32> to vector<16x16xf32>
    %206 = vector.extract_strided_slice %192 {offsets = [0, 64], sizes = [16, 32], strides = [1, 1]} : vector<16x96xf32> to vector<16x32xf32>
    %cst_168 = arith.constant dense<0.000000e+00> : vector<16x32xf32>
    %207 = tpu.matmul %205, %206, %cst_168 {dimension_numbers = #tpu.dot_dimension_numbers<[1], [0], [0], [1], [0, 0, 1, 1], [], []>} : vector<16x16xf32>, vector<16x32xf32>, vector<16x32xf32> -> vector<16x32xf32>
    %208 = arith.addf %203, %207 : vector<16x32xf32>
    %c2_169 = arith.constant 2 : index
    %c0_170 = arith.constant 0 : index
    %c0_171 = arith.constant 0 : index
    %209 = vector.load %arg6[%c2_169, %c0_170, %c0_171] : memref<3x1x32xf32, #tpu.memory_space<vmem>>, vector<1x1x32xf32>
    %210 = vector.shape_cast %209 : vector<1x1x32xf32> to vector<1x32xf32>
    %211 = vector.broadcast %210 : vector<1x32xf32> to vector<16x32xf32>
    %212 = arith.addf %208, %211 : vector<16x32xf32>
    %cst_172 = arith.constant 0.000000e+00 : f32
    %213 = vector.broadcast %cst_172 : f32 to vector<16x32xf32>
    %214 = arith.maximumf %212, %213 : vector<16x32xf32>
    %c2_173 = arith.constant 2 : index
    %c0_174 = arith.constant 0 : index
    %c0_175 = arith.constant 0 : index
    %215 = vector.load %arg7[%c2_173, %c0_174, %c0_175] : memref<3x32x96xf32, #tpu.memory_space<vmem>>, vector<1x32x96xf32>
    %216 = vector.shape_cast %215 : vector<1x32x96xf32> to vector<32x96xf32>
    %cst_176 = arith.constant dense<0.000000e+00> : vector<16x96xf32>
    %217 = tpu.matmul %214, %216, %cst_176 {dimension_numbers = #tpu.dot_dimension_numbers<[1], [0], [0], [1], [0, 0, 1, 1], [], []>} : vector<16x32xf32>, vector<32x96xf32>, vector<16x96xf32> -> vector<16x96xf32>
    %c2_177 = arith.constant 2 : index
    %c0_178 = arith.constant 0 : index
    %c0_179 = arith.constant 0 : index
    %218 = vector.load %arg8[%c2_177, %c0_178, %c0_179] : memref<3x1x96xf32, #tpu.memory_space<vmem>>, vector<1x1x96xf32>
    %219 = vector.shape_cast %218 : vector<1x1x96xf32> to vector<1x96xf32>
    %220 = vector.broadcast %219 : vector<1x96xf32> to vector<16x96xf32>
    %221 = arith.addf %217, %220 : vector<16x96xf32>
    %222 = vector.extract_strided_slice %221 {offsets = [0, 0], sizes = [16, 32], strides = [1, 1]} : vector<16x96xf32> to vector<16x32xf32>
    %223 = vector.extract_strided_slice %221 {offsets = [0, 32], sizes = [16, 32], strides = [1, 1]} : vector<16x96xf32> to vector<16x32xf32>
    %224 = vector.extract_strided_slice %221 {offsets = [0, 64], sizes = [16, 32], strides = [1, 1]} : vector<16x96xf32> to vector<16x32xf32>
    %225 = arith.mulf %222, %223 : vector<16x32xf32>
    %cst_180 = arith.constant dense<0.000000e+00> : vector<16x4xf32>
    %226 = tpu.matmul %225, %0, %cst_180 {dimension_numbers = #tpu.dot_dimension_numbers<[1], [0], [0], [1], [0, 0, 1, 1], [], []>} : vector<16x32xf32>, vector<32x4xf32>, vector<16x4xf32> -> vector<16x4xf32>
    %cst_181 = arith.constant dense<0.000000e+00> : vector<16x32xf32>
    %227 = tpu.matmul %226, %1, %cst_181 {dimension_numbers = #tpu.dot_dimension_numbers<[1], [0], [0], [1], [0, 0, 1, 1], [], []>} : vector<16x4xf32>, vector<4x32xf32>, vector<16x32xf32> -> vector<16x32xf32>
    %228 = arith.mulf %227, %224 : vector<16x32xf32>
    %c2_182 = arith.constant 2 : index
    %c0_183 = arith.constant 0 : index
    %c0_184 = arith.constant 0 : index
    %229 = vector.load %arg9[%c2_182, %c0_183, %c0_184] : memref<3x32x32xf32, #tpu.memory_space<vmem>>, vector<1x32x32xf32>
    %230 = vector.shape_cast %229 : vector<1x32x32xf32> to vector<32x32xf32>
    %cst_185 = arith.constant dense<0.000000e+00> : vector<16x32xf32>
    %231 = tpu.matmul %228, %230, %cst_185 {dimension_numbers = #tpu.dot_dimension_numbers<[1], [0], [0], [1], [0, 0, 1, 1], [], []>} : vector<16x32xf32>, vector<32x32xf32>, vector<16x32xf32> -> vector<16x32xf32>
    %c2_186 = arith.constant 2 : index
    %c0_187 = arith.constant 0 : index
    %c0_188 = arith.constant 0 : index
    %232 = vector.load %arg10[%c2_186, %c0_187, %c0_188] : memref<3x1x32xf32, #tpu.memory_space<vmem>>, vector<1x1x32xf32>
    %233 = vector.shape_cast %232 : vector<1x1x32xf32> to vector<1x32xf32>
    %234 = vector.broadcast %233 : vector<1x32xf32> to vector<16x32xf32>
    %235 = arith.addf %231, %234 : vector<16x32xf32>
    %cst_189 = arith.constant dense<0.000000e+00> : vector<16x4xf32>
    %236 = tpu.matmul %235, %0, %cst_189 {dimension_numbers = #tpu.dot_dimension_numbers<[1], [0], [0], [1], [0, 0, 1, 1], [], []>} : vector<16x32xf32>, vector<32x4xf32>, vector<16x4xf32> -> vector<16x4xf32>
    %cst_190 = arith.constant 1.250000e-01 : f32
    %237 = vector.broadcast %cst_190 : f32 to vector<16x4xf32>
    %238 = arith.mulf %236, %237 : vector<16x4xf32>
    %cst_191 = arith.constant dense<0.000000e+00> : vector<16x32xf32>
    %239 = tpu.matmul %238, %1, %cst_191 {dimension_numbers = #tpu.dot_dimension_numbers<[1], [0], [0], [1], [0, 0, 1, 1], [], []>} : vector<16x4xf32>, vector<4x32xf32>, vector<16x32xf32> -> vector<16x32xf32>
    %240 = arith.subf %235, %239 : vector<16x32xf32>
    %241 = arith.mulf %240, %240 : vector<16x32xf32>
    %cst_192 = arith.constant dense<0.000000e+00> : vector<16x4xf32>
    %242 = tpu.matmul %241, %0, %cst_192 {dimension_numbers = #tpu.dot_dimension_numbers<[1], [0], [0], [1], [0, 0, 1, 1], [], []>} : vector<16x32xf32>, vector<32x4xf32>, vector<16x4xf32> -> vector<16x4xf32>
    %cst_193 = arith.constant 1.250000e-01 : f32
    %243 = vector.broadcast %cst_193 : f32 to vector<16x4xf32>
    %244 = arith.mulf %242, %243 : vector<16x4xf32>
    %cst_194 = arith.constant dense<0.000000e+00> : vector<16x32xf32>
    %245 = tpu.matmul %244, %1, %cst_194 {dimension_numbers = #tpu.dot_dimension_numbers<[1], [0], [0], [1], [0, 0, 1, 1], [], []>} : vector<16x4xf32>, vector<4x32xf32>, vector<16x32xf32> -> vector<16x32xf32>
    %cst_195 = arith.constant 9.99999974E-6 : f32
    %246 = vector.broadcast %cst_195 : f32 to vector<16x32xf32>
    %247 = arith.addf %245, %246 : vector<16x32xf32>
    %248 = math.rsqrt %247 : vector<16x32xf32>
    %249 = arith.mulf %240, %248 : vector<16x32xf32>
    %c2_196 = arith.constant 2 : index
    %c0_197 = arith.constant 0 : index
    %c0_198 = arith.constant 0 : index
    %250 = vector.load %arg11[%c2_196, %c0_197, %c0_198] : memref<3x1x32xf32, #tpu.memory_space<vmem>>, vector<1x1x32xf32>
    %251 = vector.shape_cast %250 : vector<1x1x32xf32> to vector<1x32xf32>
    %252 = vector.broadcast %251 : vector<1x32xf32> to vector<16x32xf32>
    %253 = arith.mulf %249, %252 : vector<16x32xf32>
    %c2_199 = arith.constant 2 : index
    %c0_200 = arith.constant 0 : index
    %c0_201 = arith.constant 0 : index
    %254 = vector.load %arg12[%c2_199, %c0_200, %c0_201] : memref<3x1x32xf32, #tpu.memory_space<vmem>>, vector<1x1x32xf32>
    %255 = vector.shape_cast %254 : vector<1x1x32xf32> to vector<1x32xf32>
    %256 = vector.broadcast %255 : vector<1x32xf32> to vector<16x32xf32>
    %257 = arith.addf %253, %256 : vector<16x32xf32>
    %c2_202 = arith.constant 2 : index
    %c0_203 = arith.constant 0 : index
    %c0_204 = arith.constant 0 : index
    %258 = vector.load %arg17[%c2_202, %c0_203, %c0_204] : memref<3x64x32xf32, #tpu.memory_space<vmem>>, vector<1x64x32xf32>
    %259 = vector.shape_cast %258 : vector<1x64x32xf32> to vector<64x32xf32>
    %260 = vector.extract_strided_slice %259 {offsets = [0, 0], sizes = [32, 32], strides = [1, 1]} : vector<64x32xf32> to vector<32x32xf32>
    %cst_205 = arith.constant dense<0.000000e+00> : vector<16x32xf32>
    %261 = tpu.matmul %257, %260, %cst_205 {dimension_numbers = #tpu.dot_dimension_numbers<[1], [0], [0], [1], [0, 0, 1, 1], [], []>} : vector<16x32xf32>, vector<32x32xf32>, vector<16x32xf32> -> vector<16x32xf32>
    %262 = vector.extract_strided_slice %259 {offsets = [32, 0], sizes = [32, 32], strides = [1, 1]} : vector<64x32xf32> to vector<32x32xf32>
    %cst_206 = arith.constant dense<0.000000e+00> : vector<16x32xf32>
    %263 = tpu.matmul %189, %262, %cst_206 {dimension_numbers = #tpu.dot_dimension_numbers<[1], [0], [0], [1], [0, 0, 1, 1], [], []>} : vector<16x32xf32>, vector<32x32xf32>, vector<16x32xf32> -> vector<16x32xf32>
    %264 = arith.addf %261, %263 : vector<16x32xf32>
    %c2_207 = arith.constant 2 : index
    %c0_208 = arith.constant 0 : index
    %c0_209 = arith.constant 0 : index
    %265 = vector.load %arg18[%c2_207, %c0_208, %c0_209] : memref<3x1x32xf32, #tpu.memory_space<vmem>>, vector<1x1x32xf32>
    %266 = vector.shape_cast %265 : vector<1x1x32xf32> to vector<1x32xf32>
    %267 = vector.broadcast %266 : vector<1x32xf32> to vector<16x32xf32>
    %268 = arith.addf %264, %267 : vector<16x32xf32>
    %cst_210 = arith.constant 0.000000e+00 : f32
    %269 = vector.broadcast %cst_210 : f32 to vector<16x32xf32>
    %270 = arith.maximumf %268, %269 : vector<16x32xf32>
    %c0_211 = arith.constant 0 : index
    %c0_212 = arith.constant 0 : index
    %271 = vector.load %arg19[%c0_211, %c0_212] : memref<32x32xf32, #tpu.memory_space<vmem>>, vector<32x32xf32>
    %cst_213 = arith.constant dense<0.000000e+00> : vector<16x32xf32>
    %272 = tpu.matmul %270, %271, %cst_213 {dimension_numbers = #tpu.dot_dimension_numbers<[1], [0], [0], [1], [0, 0, 1, 1], [], []>} : vector<16x32xf32>, vector<32x32xf32>, vector<16x32xf32> -> vector<16x32xf32>
    %c0_214 = arith.constant 0 : index
    %c0_215 = arith.constant 0 : index
    %273 = vector.load %arg20[%c0_214, %c0_215] : memref<1x32xf32, #tpu.memory_space<vmem>>, vector<1x32xf32>
    %274 = vector.broadcast %273 : vector<1x32xf32> to vector<16x32xf32>
    %275 = arith.addf %272, %274 : vector<16x32xf32>
    %cst_216 = arith.constant 0.000000e+00 : f32
    %276 = vector.broadcast %cst_216 : f32 to vector<16x32xf32>
    %277 = arith.maximumf %275, %276 : vector<16x32xf32>
    %c0_217 = arith.constant 0 : index
    %c0_218 = arith.constant 0 : index
    %278 = vector.load %arg21[%c0_217, %c0_218] : memref<32x128xf32, #tpu.memory_space<vmem>>, vector<32x128xf32>
    %cst_219 = arith.constant dense<0.000000e+00> : vector<16x128xf32>
    %279 = tpu.matmul %277, %278, %cst_219 {dimension_numbers = #tpu.dot_dimension_numbers<[1], [0], [0], [1], [0, 0, 1, 1], [], []>} : vector<16x32xf32>, vector<32x128xf32>, vector<16x128xf32> -> vector<16x128xf32>
    %c0_220 = arith.constant 0 : index
    %c0_221 = arith.constant 0 : index
    %280 = vector.load %arg22[%c0_220, %c0_221] : memref<1x128xf32, #tpu.memory_space<vmem>>, vector<1x128xf32>
    %281 = vector.broadcast %280 : vector<1x128xf32> to vector<16x128xf32>
    %282 = arith.addf %279, %281 : vector<16x128xf32>
    %c0_222 = arith.constant 0 : index
    %c0_223 = arith.constant 0 : index
    %c0_224 = arith.constant 0 : index
    %283 = vector.load %arg23[%c0_222, %c0_223, %c0_224] : memref<1x16x128xf32, #tpu.memory_space<vmem>>, vector<1x16x128xf32>
    %284 = vector.shape_cast %283 : vector<1x16x128xf32> to vector<16x128xf32>
    %285 = vector.shape_cast %282 : vector<16x128xf32> to vector<1x16x128xf32>
    tpu.vector_store %arg23[%c0_222, %c0_223, %c0_224], %285 {strides = array<i32>} : memref<1x16x128xf32, #tpu.memory_space<vmem>>, vector<1x16x128xf32>,
    return
  }
  func.func @transform_0(%arg0: i32) -> (i32, i32, i32) {
    %c0_i32 = arith.constant 0 : i32
    %c0_i32_0 = arith.constant 0 : i32
    %c0_i32_1 = arith.constant 0 : i32
    return %arg0, %c0_i32, %c0_i32_0 : i32, i32, i32
  }
  func.func @transform_1(%arg0: i32) -> (i32, i32, i32, i32) {
    %c0_i32 = arith.constant 0 : i32
    %c0_i32_0 = arith.constant 0 : i32
    %c0_i32_1 = arith.constant 0 : i32
    %c0_i32_2 = arith.constant 0 : i32
    return %arg0, %c0_i32, %c0_i32_0, %c0_i32_1 : i32, i32, i32, i32
  }
  func.func @transform_2(%arg0: i32) -> (i32, i32) {
    %c0_i32 = arith.constant 0 : i32
    %c0_i32_0 = arith.constant 0 : i32
    %c0_i32_1 = arith.constant 0 : i32
    return %c0_i32, %c0_i32_0 : i32, i32
  }
  func.func @transform_3(%arg0: i32) -> (i32, i32) {
    %c0_i32 = arith.constant 0 : i32
    %c0_i32_0 = arith.constant 0 : i32
    %c0_i32_1 = arith.constant 0 : i32
    return %c0_i32, %c0_i32_0 : i32, i32
  }
  func.func @transform_4(%arg0: i32) -> (i32, i32, i32) {
    %c0_i32 = arith.constant 0 : i32
    %c0_i32_0 = arith.constant 0 : i32
    %c0_i32_1 = arith.constant 0 : i32
    %c0_i32_2 = arith.constant 0 : i32
    return %c0_i32, %c0_i32_0, %c0_i32_1 : i32, i32, i32
  }
  func.func @transform_5(%arg0: i32) -> (i32, i32, i32) {
    %c0_i32 = arith.constant 0 : i32
    %c0_i32_0 = arith.constant 0 : i32
    %c0_i32_1 = arith.constant 0 : i32
    %c0_i32_2 = arith.constant 0 : i32
    return %c0_i32, %c0_i32_0, %c0_i32_1 : i32, i32, i32
  }
  func.func @transform_6(%arg0: i32) -> (i32, i32, i32) {
    %c0_i32 = arith.constant 0 : i32
    %c0_i32_0 = arith.constant 0 : i32
    %c0_i32_1 = arith.constant 0 : i32
    %c0_i32_2 = arith.constant 0 : i32
    return %c0_i32, %c0_i32_0, %c0_i32_1 : i32, i32, i32
  }
  func.func @transform_7(%arg0: i32) -> (i32, i32, i32) {
    %c0_i32 = arith.constant 0 : i32
    %c0_i32_0 = arith.constant 0 : i32
    %c0_i32_1 = arith.constant 0 : i32
    %c0_i32_2 = arith.constant 0 : i32
    return %c0_i32, %c0_i32_0, %c0_i32_1 : i32, i32, i32
  }
  func.func @transform_8(%arg0: i32) -> (i32, i32, i32) {
    %c0_i32 = arith.constant 0 : i32
    %c0_i32_0 = arith.constant 0 : i32
    %c0_i32_1 = arith.constant 0 : i32
    %c0_i32_2 = arith.constant 0 : i32
    return %c0_i32, %c0_i32_0, %c0_i32_1 : i32, i32, i32
  }
  func.func @transform_9(%arg0: i32) -> (i32, i32, i32) {
    %c0_i32 = arith.constant 0 : i32
    %c0_i32_0 = arith.constant 0 : i32
    %c0_i32_1 = arith.constant 0 : i32
    %c0_i32_2 = arith.constant 0 : i32
    return %c0_i32, %c0_i32_0, %c0_i32_1 : i32, i32, i32
  }
  func.func @transform_10(%arg0: i32) -> (i32, i32, i32) {
    %c0_i32 = arith.constant 0 : i32
    %c0_i32_0 = arith.constant 0 : i32
    %c0_i32_1 = arith.constant 0 : i32
    %c0_i32_2 = arith.constant 0 : i32
    return %c0_i32, %c0_i32_0, %c0_i32_1 : i32, i32, i32
  }
  func.func @transform_11(%arg0: i32) -> (i32, i32, i32) {
    %c0_i32 = arith.constant 0 : i32
    %c0_i32_0 = arith.constant 0 : i32
    %c0_i32_1 = arith.constant 0 : i32
    %c0_i32_2 = arith.constant 0 : i32
    return %c0_i32, %c0_i32_0, %c0_i32_1 : i32, i32, i32
  }
  func.func @transform_12(%arg0: i32) -> (i32, i32) {
    %c0_i32 = arith.constant 0 : i32
    %c0_i32_0 = arith.constant 0 : i32
    %c0_i32_1 = arith.constant 0 : i32
    return %c0_i32, %c0_i32_0 : i32, i32
  }
  func.func @transform_13(%arg0: i32) -> (i32, i32) {
    %c0_i32 = arith.constant 0 : i32
    %c0_i32_0 = arith.constant 0 : i32
    %c0_i32_1 = arith.constant 0 : i32
    return %c0_i32, %c0_i32_0 : i32, i32
  }
  func.func @transform_14(%arg0: i32) -> (i32, i32, i32) {
    %c0_i32 = arith.constant 0 : i32
    %c0_i32_0 = arith.constant 0 : i32
    %c0_i32_1 = arith.constant 0 : i32
    %c0_i32_2 = arith.constant 0 : i32
    return %c0_i32, %c0_i32_0, %c0_i32_1 : i32, i32, i32
  }
  func.func @transform_15(%arg0: i32) -> (i32, i32, i32) {
    %c0_i32 = arith.constant 0 : i32
    %c0_i32_0 = arith.constant 0 : i32
    %c0_i32_1 = arith.constant 0 : i32
    %c0_i32_2 = arith.constant 0 : i32
    return %c0_i32, %c0_i32_0, %c0_i32_1 : i32, i32, i32
  }
  func.func @transform_16(%arg0: i32) -> (i32, i32, i32) {
    %c0_i32 = arith.constant 0 : i32
    %c0_i32_0 = arith.constant 0 : i32
    %c0_i32_1 = arith.constant 0 : i32
    %c0_i32_2 = arith.constant 0 : i32
    return %c0_i32, %c0_i32_0, %c0_i32_1 : i32, i32, i32
  }
  func.func @transform_17(%arg0: i32) -> (i32, i32, i32) {
    %c0_i32 = arith.constant 0 : i32
    %c0_i32_0 = arith.constant 0 : i32
    %c0_i32_1 = arith.constant 0 : i32
    %c0_i32_2 = arith.constant 0 : i32
    return %c0_i32, %c0_i32_0, %c0_i32_1 : i32, i32, i32
  }
  func.func @transform_18(%arg0: i32) -> (i32, i32) {
    %c0_i32 = arith.constant 0 : i32
    %c0_i32_0 = arith.constant 0 : i32
    %c0_i32_1 = arith.constant 0 : i32
    return %c0_i32, %c0_i32_0 : i32, i32
  }
  func.func @transform_19(%arg0: i32) -> (i32, i32) {
    %c0_i32 = arith.constant 0 : i32
    %c0_i32_0 = arith.constant 0 : i32
    %c0_i32_1 = arith.constant 0 : i32
    return %c0_i32, %c0_i32_0 : i32, i32
  }
  func.func @transform_20(%arg0: i32) -> (i32, i32) {
    %c0_i32 = arith.constant 0 : i32
    %c0_i32_0 = arith.constant 0 : i32
    %c0_i32_1 = arith.constant 0 : i32
    return %c0_i32, %c0_i32_0 : i32, i32
  }
  func.func @transform_21(%arg0: i32) -> (i32, i32) {
    %c0_i32 = arith.constant 0 : i32
    %c0_i32_0 = arith.constant 0 : i32
    %c0_i32_1 = arith.constant 0 : i32
    return %c0_i32, %c0_i32_0 : i32, i32
  }
  func.func @transform_22(%arg0: i32) -> (i32, i32, i32) {
    %c0_i32 = arith.constant 0 : i32
    %c0_i32_0 = arith.constant 0 : i32
    %c0_i32_1 = arith.constant 0 : i32
    return %arg0, %c0_i32, %c0_i32_0 : i32, i32, i32
  }
}

</mosaic_0001>

<llo_original>
// kernel: mgdpr_forward.1
$region0: #{mgdpr_forward.1}
  #allocation0 [shape = 'u32[]', space=smem, size = 0x4, offset = 0x4, fixed_abs, tag = 'smem constant byte address 0x4 - core index']
  #allocation1 [shape = 'u32[144,128]{1,0:T(1,128)}', space=vmem, size = 0x12000, scoped, tag = 'internal scratch']
  %s0 = inlined_call_operand.vmem [shape: f32[2,16,4], index: 0, kind: input, shape index: {}]
  %s1 = inlined_call_operand.vmem [shape: f32[2,3,16,16], index: 1, kind: input, shape index: {}]
  %s2 = inlined_call_operand.vmem [shape: f32[4,32], index: 2, kind: input, shape index: {}]
  %s3 = inlined_call_operand.vmem [shape: f32[1,32], index: 3, kind: input, shape index: {}]
  %s4 = inlined_call_operand.vmem [shape: f32[3,32,96], index: 4, kind: input, shape index: {}]
  %s5 = inlined_call_operand.vmem [shape: f32[3,1,32], index: 5, kind: input, shape index: {}]
  %s6 = inlined_call_operand.vmem [shape: f32[3,32,96], index: 6, kind: input, shape index: {}]
  %s7 = inlined_call_operand.vmem [shape: f32[3,1,96], index: 7, kind: input, shape index: {}]
  %s8 = inlined_call_operand.vmem [shape: f32[3,32,32], index: 8, kind: input, shape index: {}]
  %s9 = inlined_call_operand.vmem [shape: f32[3,1,32], index: 9, kind: input, shape index: {}]
  %s10 = inlined_call_operand.vmem [shape: f32[3,1,32], index: 10, kind: input, shape index: {}]
  %s11 = inlined_call_operand.vmem [shape: f32[3,1,32], index: 11, kind: input, shape index: {}]
  %s12 = inlined_call_operand.vmem [shape: f32[32,4], index: 12, kind: input, shape index: {}]
  %s13 = inlined_call_operand.vmem [shape: f32[4,32], index: 13, kind: input, shape index: {}]
  %s14 = inlined_call_operand.vmem [shape: f32[3,32,32], index: 14, kind: input, shape index: {}]
  %s15 = inlined_call_operand.vmem [shape: f32[3,1,32], index: 15, kind: input, shape index: {}]
  %s16 = inlined_call_operand.vmem [shape: f32[3,64,32], index: 16, kind: input, shape index: {}]
  %s17 = inlined_call_operand.vmem [shape: f32[3,1,32], index: 17, kind: input, shape index: {}]
  %s18 = inlined_call_operand.vmem [shape: f32[32,32], index: 18, kind: input, shape index: {}]
  %s19 = inlined_call_operand.vmem [shape: f32[1,32], index: 19, kind: input, shape index: {}]
  %s20 = inlined_call_operand.vmem [shape: f32[32,128], index: 20, kind: input, shape index: {}]
  %s21 = inlined_call_operand.vmem [shape: f32[1,128], index: 21, kind: input, shape index: {}]
  %s22 = inlined_call_operand.vmem [shape: f32[2,16,128], index: 22, kind: output, shape index: {}]
  %s23 = sld [smem:[#allocation0]]
  $region121: #{mgdpr_forward.1} parent=0
    _
  %s25 = ssub.s32 1, %s23
  %s26 = scalar_select 0, %s25, %s23
  loop: start=0, step=1, limit=4
  $region2: #{mgdpr_forward.1} parent=0 // loop_pre_header
    _
  $region3: #{mgdpr_forward.1} parent=0 // loop_header
    %s28 = sphi 0, %s32
    %p29 = scmp.ge.s32.totalorder %s28, 4
    %s38 = sphi 0, %s40
    %s41 = sphi 0, %s38
    %s42 = sphi 0, %s41
    %s58 = sphi 0, %s42
    %s64 = sphi 0, %s66
    %s67 = sphi 0, %s64
    %s68 = sphi 0, %s67
    %s84 = sphi 0, %s68
    %s88 = sphi 0, %s88
    %s90 = sphi 0, %s88
    %s91 = sphi 0, %s90
    %s105 = sphi 0, %s91
    %s109 = sphi 0, %s109
    %s111 = sphi 0, %s109
    %s112 = sphi 0, %s111
    %s126 = sphi 0, %s112
    %s130 = sphi 0, %s130
    %s132 = sphi 0, %s130
    %s133 = sphi 0, %s132
    %s147 = sphi 0, %s133
    %s151 = sphi 0, %s151
    %s153 = sphi 0, %s151
    %s154 = sphi 0, %s153
    %s168 = sphi 0, %s154
    %s172 = sphi 0, %s172
    %s174 = sphi 0, %s172
    %s175 = sphi 0, %s174
    %s189 = sphi 0, %s175
    %s193 = sphi 0, %s193
    %s195 = sphi 0, %s193
    %s196 = sphi 0, %s195
    %s210 = sphi 0, %s196
    %s214 = sphi 0, %s214
    %s216 = sphi 0, %s214
    %s217 = sphi 0, %s216
    %s231 = sphi 0, %s217
    %s235 = sphi 0, %s235
    %s237 = sphi 0, %s235
    %s238 = sphi 0, %s237
    %s252 = sphi 0, %s238
    %s256 = sphi 0, %s256
    %s258 = sphi 0, %s256
    %s259 = sphi 0, %s258
    %s273 = sphi 0, %s259
    %s277 = sphi 0, %s277
    %s279 = sphi 0, %s277
    %s280 = sphi 0, %s279
    %s294 = sphi 0, %s280
    %s298 = sphi 0, %s298
    %s300 = sphi 0, %s298
    %s301 = sphi 0, %s300
    %s315 = sphi 0, %s301
    %s319 = sphi 0, %s319
    %s321 = sphi 0, %s319
    %s322 = sphi 0, %s321
    %s336 = sphi 0, %s322
    %s340 = sphi 0, %s340
    %s342 = sphi 0, %s340
    %s343 = sphi 0, %s342
    %s357 = sphi 0, %s343
    %s361 = sphi 0, %s361
    %s363 = sphi 0, %s361
    %s364 = sphi 0, %s363
    %s378 = sphi 0, %s364
    %s382 = sphi 0, %s382
    %s384 = sphi 0, %s382
    %s385 = sphi 0, %s384
    %s399 = sphi 0, %s385
    %s403 = sphi 0, %s403
    %s405 = sphi 0, %s403
    %s406 = sphi 0, %s405
    %s420 = sphi 0, %s406
    %s424 = sphi 0, %s424
    %s426 = sphi 0, %s424
    %s427 = sphi 0, %s426
    %s441 = sphi 0, %s427
    %s445 = sphi 0, %s445
    %s447 = sphi 0, %s445
    %s448 = sphi 0, %s447
    %s462 = sphi 0, %s448
    %s466 = sphi 0, %s466
    %s468 = sphi 0, %s466
    %s469 = sphi 0, %s468
    %s483 = sphi 0, %s469
    %s487 = sphi 0, %s487
    %s489 = sphi 0, %s487
    %s490 = sphi 0, %s489
    %s504 = sphi 0, %s490
    %s510 = sphi 0, %s512
    %s513 = sphi 0, %s510
    %s514 = sphi 0, %s513
    %s530 = sphi 0, %s514
  $region4: #{mgdpr_forward.1} parent=0 // loop_header_branch
    %31 = sbr.rel (%p29) target = $region8
  $region5: #{mgdpr_forward.1} parent=0 // loop_body
    %s33 = ssub.s32 %s28, 1
    %s34 = ssub.s32 %s28, 2
    %s35 = sadd.s32 %s28, 1
    %s36 = ssub.s32 %s28, %s35
    %p37 = scmp.eq.s32.totalorder %s36, 0
    %s39 = sadd.s32 %s38, 1
    %s40 = scalar_select %p37, %s38, %s39
    %p43 = pneg %p37
    %p44 = scmp.eq.s32.totalorder %s28, 1
    %p45 = por %p43, %p44
    %p46 = scmp.ne.s32.totalorder %s38, %s41
    %p47 = scmp.eq.s32.totalorder %s28, 0
    %p48 = por %p46, %p47
    %p49 = scmp.ne.s32.totalorder %s38, %s41
    %p50 = scmp.eq.s32.totalorder %s33, 1
    %p51 = por %p49, %p50
    %p52 = scmp.ne.s32.totalorder %s41, %s42
    %p53 = scmp.eq.s32.totalorder %s33, 0
    %p54 = por %p52, %p53
    %p55 = scmp.ne.s32.totalorder %s41, %s42
    %p56 = scmp.eq.s32.totalorder %s34, 1
    %p57 = por %p55, %p56
    %p59 = scmp.ne.s32.totalorder %s42, %s58
    %p60 = scmp.eq.s32.totalorder %s34, 0
    %p61 = por %p59, %p60
    %s62 = ssub.s32 %s28, %s35
    %p63 = scmp.eq.s32.totalorder %s62, 0
    %s65 = sadd.s32 %s64, 1
    %s66 = scalar_select %p63, %s64, %s65
    %p69 = pneg %p63
    %p70 = scmp.eq.s32.totalorder %s28, 1
    %p71 = por %p69, %p70
    %p72 = scmp.ne.s32.totalorder %s64, %s67
    %p73 = scmp.eq.s32.totalorder %s28, 0
    %p74 = por %p72, %p73
    %p75 = scmp.ne.s32.totalorder %s64, %s67
    %p76 = scmp.eq.s32.totalorder %s33, 1
    %p77 = por %p75, %p76
    %p78 = scmp.ne.s32.totalorder %s67, %s68
    %p79 = scmp.eq.s32.totalorder %s33, 0
    %p80 = por %p78, %p79
    %p81 = scmp.ne.s32.totalorder %s67, %s68
    %p82 = scmp.eq.s32.totalorder %s34, 1
    %p83 = por %p81, %p82
    %p85 = scmp.ne.s32.totalorder %s68, %s84
    %p86 = scmp.eq.s32.totalorder %s34, 0
    %p87 = por %p85, %p86
    %s89 = sadd.s32 %s88, 1
    %p92 = scmp.eq.s32.totalorder %s28, 1
    %p93 = scmp.ne.s32.totalorder %s88, %s90
    %p94 = scmp.eq.s32.totalorder %s28, 0
    %p95 = por %p93, %p94
    %p96 = scmp.ne.s32.totalorder %s88, %s90
    %p97 = scmp.eq.s32.totalorder %s33, 1
    %p98 = por %p96, %p97
    %p99 = scmp.ne.s32.totalorder %s90, %s91
    %p100 = scmp.eq.s32.totalorder %s33, 0
    %p101 = por %p99, %p100
    %p102 = scmp.ne.s32.totalorder %s90, %s91
    %p103 = scmp.eq.s32.totalorder %s34, 1
    %p104 = por %p102, %p103
    %p106 = scmp.ne.s32.totalorder %s91, %s105
    %p107 = scmp.eq.s32.totalorder %s34, 0
    %p108 = por %p106, %p107
    %s110 = sadd.s32 %s109, 1
    %p113 = scmp.eq.s32.totalorder %s28, 1
    %p114 = scmp.ne.s32.totalorder %s109, %s111
    %p115 = scmp.eq.s32.totalorder %s28, 0
    %p116 = por %p114, %p115
    %p117 = scmp.ne.s32.totalorder %s109, %s111
    %p118 = scmp.eq.s32.totalorder %s33, 1
    %p119 = por %p117, %p118
    %p120 = scmp.ne.s32.totalorder %s111, %s112
    %p121 = scmp.eq.s32.totalorder %s33, 0
    %p122 = por %p120, %p121
    %p123 = scmp.ne.s32.totalorder %s111, %s112
    %p124 = scmp.eq.s32.totalorder %s34, 1
    %p125 = por %p123, %p124
    %p127 = scmp.ne.s32.totalorder %s112, %s126
    %p128 = scmp.eq.s32.totalorder %s34, 0
    %p129 = por %p127, %p128
    %s131 = sadd.s32 %s130, 1
    %p134 = scmp.eq.s32.totalorder %s28, 1
    %p135 = scmp.ne.s32.totalorder %s130, %s132
    %p136 = scmp.eq.s32.totalorder %s28, 0
    %p137 = por %p135, %p136
    %p138 = scmp.ne.s32.totalorder %s130, %s132
    %p139 = scmp.eq.s32.totalorder %s33, 1
    %p140 = por %p138, %p139
    %p141 = scmp.ne.s32.totalorder %s132, %s133
    %p142 = scmp.eq.s32.totalorder %s33, 0
    %p143 = por %p141, %p142
    %p144 = scmp.ne.s32.totalorder %s132, %s133
    %p145 = scmp.eq.s32.totalorder %s34, 1
    %p146 = por %p144, %p145
    %p148 = scmp.ne.s32.totalorder %s133, %s147
    %p149 = scmp.eq.s32.totalorder %s34, 0
    %p150 = por %p148, %p149
    %s152 = sadd.s32 %s151, 1
    %p155 = scmp.eq.s32.totalorder %s28, 1
    %p156 = scmp.ne.s32.totalorder %s151, %s153
    %p157 = scmp.eq.s32.totalorder %s28, 0
    %p158 = por %p156, %p157
    %p159 = scmp.ne.s32.totalorder %s151, %s153
    %p160 = scmp.eq.s32.totalorder %s33, 1
    %p161 = por %p159, %p160
    %p162 = scmp.ne.s32.totalorder %s153, %s154
    %p163 = scmp.eq.s32.totalorder %s33, 0
    %p164 = por %p162, %p163
    %p165 = scmp.ne.s32.totalorder %s153, %s154
    %p166 = scmp.eq.s32.totalorder %s34, 1
    %p167 = por %p165, %p166
    %p169 = scmp.ne.s32.totalorder %s154, %s168
    %p170 = scmp.eq.s32.totalorder %s34, 0
    %p171 = por %p169, %p170
    %s173 = sadd.s32 %s172, 1
    %p176 = scmp.eq.s32.totalorder %s28, 1
    %p177 = scmp.ne.s32.totalorder %s172, %s174
    %p178 = scmp.eq.s32.totalorder %s28, 0
    %p179 = por %p177, %p178
    %p180 = scmp.ne.s32.totalorder %s172, %s174
    %p181 = scmp.eq.s32.totalorder %s33, 1
    %p182 = por %p180, %p181
    %p183 = scmp.ne.s32.totalorder %s174, %s175
    %p184 = scmp.eq.s32.totalorder %s33, 0
    %p185 = por %p183, %p184
    %p186 = scmp.ne.s32.totalorder %s174, %s175
    %p187 = scmp.eq.s32.totalorder %s34, 1
    %p188 = por %p186, %p187
    %p190 = scmp.ne.s32.totalorder %s175, %s189
    %p191 = scmp.eq.s32.totalorder %s34, 0
    %p192 = por %p190, %p191
    %s194 = sadd.s32 %s193, 1
    %p197 = scmp.eq.s32.totalorder %s28, 1
    %p198 = scmp.ne.s32.totalorder %s193, %s195
    %p199 = scmp.eq.s32.totalorder %s28, 0
    %p200 = por %p198, %p199
    %p201 = scmp.ne.s32.totalorder %s193, %s195
    %p202 = scmp.eq.s32.totalorder %s33, 1
    %p203 = por %p201, %p202
    %p204 = scmp.ne.s32.totalorder %s195, %s196
    %p205 = scmp.eq.s32.totalorder %s33, 0
    %p206 = por %p204, %p205
    %p207 = scmp.ne.s32.totalorder %s195, %s196
    %p208 = scmp.eq.s32.totalorder %s34, 1
    %p209 = por %p207, %p208
    %p211 = scmp.ne.s32.totalorder %s196, %s210
    %p212 = scmp.eq.s32.totalorder %s34, 0
    %p213 = por %p211, %p212
    %s215 = sadd.s32 %s214, 1
    %p218 = scmp.eq.s32.totalorder %s28, 1
    %p219 = scmp.ne.s32.totalorder %s214, %s216
    %p220 = scmp.eq.s32.totalorder %s28, 0
    %p221 = por %p219, %p220
    %p222 = scmp.ne.s32.totalorder %s214, %s216
    %p223 = scmp.eq.s32.totalorder %s33, 1
    %p224 = por %p222, %p223
    %p225 = scmp.ne.s32.totalorder %s216, %s217
    %p226 = scmp.eq.s32.totalorder %s33, 0
    %p227 = por %p225, %p226
    %p228 = scmp.ne.s32.totalorder %s216, %s217
    %p229 = scmp.eq.s32.totalorder %s34, 1
    %p230 = por %p228, %p229
    %p232 = scmp.ne.s32.totalorder %s217, %s231
    %p233 = scmp.eq.s32.totalorder %s34, 0
    %p234 = por %p232, %p233
    %s236 = sadd.s32 %s235, 1
    %p239 = scmp.eq.s32.totalorder %s28, 1
    %p240 = scmp.ne.s32.totalorder %s235, %s237
    %p241 = scmp.eq.s32.totalorder %s28, 0
    %p242 = por %p240, %p241
    %p243 = scmp.ne.s32.totalorder %s235, %s237
    %p244 = scmp.eq.s32.totalorder %s33, 1
    %p245 = por %p243, %p244
    %p246 = scmp.ne.s32.totalorder %s237, %s238
    %p247 = scmp.eq.s32.totalorder %s33, 0
    %p248 = por %p246, %p247
    %p249 = scmp.ne.s32.totalorder %s237, %s238
    %p250 = scmp.eq.s32.totalorder %s34, 1
    %p251 = por %p249, %p250
    %p253 = scmp.ne.s32.totalorder %s238, %s252
    %p254 = scmp.eq.s32.totalorder %s34, 0
    %p255 = por %p253, %p254
    %s257 = sadd.s32 %s256, 1
    %p260 = scmp.eq.s32.totalorder %s28, 1
    %p261 = scmp.ne.s32.totalorder %s256, %s258
    %p262 = scmp.eq.s32.totalorder %s28, 0
    %p263 = por %p261, %p262
    %p264 = scmp.ne.s32.totalorder %s256, %s258
    %p265 = scmp.eq.s32.totalorder %s33, 1
    %p266 = por %p264, %p265
    %p267 = scmp.ne.s32.totalorder %s258, %s259
    %p268 = scmp.eq.s32.totalorder %s33, 0
    %p269 = por %p267, %p268
    %p270 = scmp.ne.s32.totalorder %s258, %s259
    %p271 = scmp.eq.s32.totalorder %s34, 1
    %p272 = por %p270, %p271
    %p274 = scmp.ne.s32.totalorder %s259, %s273
    %p275 = scmp.eq.s32.totalorder %s34, 0
    %p276 = por %p274, %p275
    %s278 = sadd.s32 %s277, 1
    %p281 = scmp.eq.s32.totalorder %s28, 1
    %p282 = scmp.ne.s32.totalorder %s277, %s279
    %p283 = scmp.eq.s32.totalorder %s28, 0
    %p284 = por %p282, %p283
    %p285 = scmp.ne.s32.totalorder %s277, %s279
    %p286 = scmp.eq.s32.totalorder %s33, 1
    %p287 = por %p285, %p286
    %p288 = scmp.ne.s32.totalorder %s279, %s280
    %p289 = scmp.eq.s32.totalorder %s33, 0
    %p290 = por %p288, %p289
    %p291 = scmp.ne.s32.totalorder %s279, %s280
    %p292 = scmp.eq.s32.totalorder %s34, 1
    %p293 = por %p291, %p292
    %p295 = scmp.ne.s32.totalorder %s280, %s294
    %p296 = scmp.eq.s32.totalorder %s34, 0
    %p297 = por %p295, %p296
    %s299 = sadd.s32 %s298, 1
    %p302 = scmp.eq.s32.totalorder %s28, 1
    %p303 = scmp.ne.s32.totalorder %s298, %s300
    %p304 = scmp.eq.s32.totalorder %s28, 0
    %p305 = por %p303, %p304
    %p306 = scmp.ne.s32.totalorder %s298, %s300
    %p307 = scmp.eq.s32.totalorder %s33, 1
    %p308 = por %p306, %p307
    %p309 = scmp.ne.s32.totalorder %s300, %s301
    %p310 = scmp.eq.s32.totalorder %s33, 0
    %p311 = por %p309, %p310
    %p312 = scmp.ne.s32.totalorder %s300, %s301
    %p313 = scmp.eq.s32.totalorder %s34, 1
    %p314 = por %p312, %p313
    %p316 = scmp.ne.s32.totalorder %s301, %s315
    %p317 = scmp.eq.s32.totalorder %s34, 0
    %p318 = por %p316, %p317
    %s320 = sadd.s32 %s319, 1
    %p323 = scmp.eq.s32.totalorder %s28, 1
    %p324 = scmp.ne.s32.totalorder %s319, %s321
    %p325 = scmp.eq.s32.totalorder %s28, 0
    %p326 = por %p324, %p325
    %p327 = scmp.ne.s32.totalorder %s319, %s321
    %p328 = scmp.eq.s32.totalorder %s33, 1
    %p329 = por %p327, %p328
    %p330 = scmp.ne.s32.totalorder %s321, %s322
    %p331 = scmp.eq.s32.totalorder %s33, 0
    %p332 = por %p330, %p331
    %p333 = scmp.ne.s32.totalorder %s321, %s322
    %p334 = scmp.eq.s32.totalorder %s34, 1
    %p335 = por %p333, %p334
    %p337 = scmp.ne.s32.totalorder %s322, %s336
    %p338 = scmp.eq.s32.totalorder %s34, 0
    %p339 = por %p337, %p338
    %s341 = sadd.s32 %s340, 1
    %p344 = scmp.eq.s32.totalorder %s28, 1
    %p345 = scmp.ne.s32.totalorder %s340, %s342
    %p346 = scmp.eq.s32.totalorder %s28, 0
    %p347 = por %p345, %p346
    %p348 = scmp.ne.s32.totalorder %s340, %s342
    %p349 = scmp.eq.s32.totalorder %s33, 1
    %p350 = por %p348, %p349
    %p351 = scmp.ne.s32.totalorder %s342, %s343
    %p352 = scmp.eq.s32.totalorder %s33, 0
    %p353 = por %p351, %p352
    %p354 = scmp.ne.s32.totalorder %s342, %s343
    %p355 = scmp.eq.s32.totalorder %s34, 1
    %p356 = por %p354, %p355
    %p358 = scmp.ne.s32.totalorder %s343, %s357
    %p359 = scmp.eq.s32.totalorder %s34, 0
    %p360 = por %p358, %p359
    %s362 = sadd.s32 %s361, 1
    %p365 = scmp.eq.s32.totalorder %s28, 1
    %p366 = scmp.ne.s32.totalorder %s361, %s363
    %p367 = scmp.eq.s32.totalorder %s28, 0
    %p368 = por %p366, %p367
    %p369 = scmp.ne.s32.totalorder %s361, %s363
    %p370 = scmp.eq.s32.totalorder %s33, 1
    %p371 = por %p369, %p370
    %p372 = scmp.ne.s32.totalorder %s363, %s364
    %p373 = scmp.eq.s32.totalorder %s33, 0
    %p374 = por %p372, %p373
    %p375 = scmp.ne.s32.totalorder %s363, %s364
    %p376 = scmp.eq.s32.totalorder %s34, 1
    %p377 = por %p375, %p376
    %p379 = scmp.ne.s32.totalorder %s364, %s378
    %p380 = scmp.eq.s32.totalorder %s34, 0
    %p381 = por %p379, %p380
    %s383 = sadd.s32 %s382, 1
    %p386 = scmp.eq.s32.totalorder %s28, 1
    %p387 = scmp.ne.s32.totalorder %s382, %s384
    %p388 = scmp.eq.s32.totalorder %s28, 0
    %p389 = por %p387, %p388
    %p390 = scmp.ne.s32.totalorder %s382, %s384
    %p391 = scmp.eq.s32.totalorder %s33, 1
    %p392 = por %p390, %p391
    %p393 = scmp.ne.s32.totalorder %s384, %s385
    %p394 = scmp.eq.s32.totalorder %s33, 0
    %p395 = por %p393, %p394
    %p396 = scmp.ne.s32.totalorder %s384, %s385
    %p397 = scmp.eq.s32.totalorder %s34, 1
    %p398 = por %p396, %p397
    %p400 = scmp.ne.s32.totalorder %s385, %s399
    %p401 = scmp.eq.s32.totalorder %s34, 0
    %p402 = por %p400, %p401
    %s404 = sadd.s32 %s403, 1
    %p407 = scmp.eq.s32.totalorder %s28, 1
    %p408 = scmp.ne.s32.totalorder %s403, %s405
    %p409 = scmp.eq.s32.totalorder %s28, 0
    %p410 = por %p408, %p409
    %p411 = scmp.ne.s32.totalorder %s403, %s405
    %p412 = scmp.eq.s32.totalorder %s33, 1
    %p413 = por %p411, %p412
    %p414 = scmp.ne.s32.totalorder %s405, %s406
    %p415 = scmp.eq.s32.totalorder %s33, 0
    %p416 = por %p414, %p415
    %p417 = scmp.ne.s32.totalorder %s405, %s406
    %p418 = scmp.eq.s32.totalorder %s34, 1
    %p419 = por %p417, %p418
    %p421 = scmp.ne.s32.totalorder %s406, %s420
    %p422 = scmp.eq.s32.totalorder %s34, 0
    %p423 = por %p421, %p422
    %s425 = sadd.s32 %s424, 1
    %p428 = scmp.eq.s32.totalorder %s28, 1
    %p429 = scmp.ne.s32.totalorder %s424, %s426
    %p430 = scmp.eq.s32.totalorder %s28, 0
    %p431 = por %p429, %p430
    %p432 = scmp.ne.s32.totalorder %s424, %s426
    %p433 = scmp.eq.s32.totalorder %s33, 1
    %p434 = por %p432, %p433
    %p435 = scmp.ne.s32.totalorder %s426, %s427
    %p436 = scmp.eq.s32.totalorder %s33, 0
    %p437 = por %p435, %p436
    %p438 = scmp.ne.s32.totalorder %s426, %s427
    %p439 = scmp.eq.s32.totalorder %s34, 1
    %p440 = por %p438, %p439
    %p442 = scmp.ne.s32.totalorder %s427, %s441
    %p443 = scmp.eq.s32.totalorder %s34, 0
    %p444 = por %p442, %p443
    %s446 = sadd.s32 %s445, 1
    %p449 = scmp.eq.s32.totalorder %s28, 1
    %p450 = scmp.ne.s32.totalorder %s445, %s447
    %p451 = scmp.eq.s32.totalorder %s28, 0
    %p452 = por %p450, %p451
    %p453 = scmp.ne.s32.totalorder %s445, %s447
    %p454 = scmp.eq.s32.totalorder %s33, 1
    %p455 = por %p453, %p454
    %p456 = scmp.ne.s32.totalorder %s447, %s448
    %p457 = scmp.eq.s32.totalorder %s33, 0
    %p458 = por %p456, %p457
    %p459 = scmp.ne.s32.totalorder %s447, %s448
    %p460 = scmp.eq.s32.totalorder %s34, 1
    %p461 = por %p459, %p460
    %p463 = scmp.ne.s32.totalorder %s448, %s462
    %p464 = scmp.eq.s32.totalorder %s34, 0
    %p465 = por %p463, %p464
    %s467 = sadd.s32 %s466, 1
    %p470 = scmp.eq.s32.totalorder %s28, 1
    %p471 = scmp.ne.s32.totalorder %s466, %s468
    %p472 = scmp.eq.s32.totalorder %s28, 0
    %p473 = por %p471, %p472
    %p474 = scmp.ne.s32.totalorder %s466, %s468
    %p475 = scmp.eq.s32.totalorder %s33, 1
    %p476 = por %p474, %p475
    %p477 = scmp.ne.s32.totalorder %s468, %s469
    %p478 = scmp.eq.s32.totalorder %s33, 0
    %p479 = por %p477, %p478
    %p480 = scmp.ne.s32.totalorder %s468, %s469
    %p481 = scmp.eq.s32.totalorder %s34, 1
    %p482 = por %p480, %p481
    %p484 = scmp.ne.s32.totalorder %s469, %s483
    %p485 = scmp.eq.s32.totalorder %s34, 0
    %p486 = por %p484, %p485
    %s488 = sadd.s32 %s487, 1
    %p491 = scmp.eq.s32.totalorder %s28, 1
    %p492 = scmp.ne.s32.totalorder %s487, %s489
    %p493 = scmp.eq.s32.totalorder %s28, 0
    %p494 = por %p492, %p493
    %p495 = scmp.ne.s32.totalorder %s487, %s489
    %p496 = scmp.eq.s32.totalorder %s33, 1
    %p497 = por %p495, %p496
    %p498 = scmp.ne.s32.totalorder %s489, %s490
    %p499 = scmp.eq.s32.totalorder %s33, 0
    %p500 = por %p498, %p499
    %p501 = scmp.ne.s32.totalorder %s489, %s490
    %p502 = scmp.eq.s32.totalorder %s34, 1
    %p503 = por %p501, %p502
    %p505 = scmp.ne.s32.totalorder %s490, %s504
    %p506 = scmp.eq.s32.totalorder %s34, 0
    %p507 = por %p505, %p506
    %s508 = ssub.s32 %s28, %s35
    %p509 = scmp.eq.s32.totalorder %s508, 0
    %s511 = sadd.s32 %s510, 1
    %s512 = scalar_select %p509, %s510, %s511
    %p515 = pneg %p509
    %p516 = scmp.eq.s32.totalorder %s28, 1
    %p517 = por %p515, %p516
    %p518 = scmp.ne.s32.totalorder %s510, %s513
    %p519 = scmp.eq.s32.totalorder %s28, 0
    %p520 = por %p518, %p519
    %p521 = scmp.ne.s32.totalorder %s510, %s513
    %p522 = scmp.eq.s32.totalorder %s33, 1
    %p523 = por %p521, %p522
    %p524 = scmp.ne.s32.totalorder %s513, %s514
    %p525 = scmp.eq.s32.totalorder %s33, 0
    %p526 = por %p524, %p525
    %p527 = scmp.ne.s32.totalorder %s513, %s514
    %p528 = scmp.eq.s32.totalorder %s34, 1
    %p529 = por %p527, %p528
    %p531 = scmp.ne.s32.totalorder %s514, %s530
    %p532 = scmp.eq.s32.totalorder %s34, 0
    %p533 = por %p531, %p532
    %p534 = scmp.le.s32.totalorder 1, %s28
    %p535 = scmp.lt.s32.totalorder %s28, 3
    %p536 = pnand %p534, %p535
    %p537 = pneg %p536
    // Predicated region
    $region9: #{mgdpr_forward.1} parent=5 // pred_check
      _
    $region10: #{mgdpr_forward.1} parent=5 // pred_check_branch
      %539 = sbr.rel (%p536) target = $region12
    $region11: #{mgdpr_forward.1} parent=5 // pred_region
      %s540 = ssub.s32 %s28, 1
      // Predicated region
      $region13: #{mgdpr_forward.1} parent=11 // pred_check
        %p541 = pneg %p101
      $region14: #{mgdpr_forward.1} parent=11 // pred_check_branch
        %543 = sbr.rel (%p541) target = $region16
      $region15: #{mgdpr_forward.1} parent=11 // pred_region
        _
      $region16: #{mgdpr_forward.1} parent=11 // pred_fallthru
        _
      // Predicated region
      $region17: #{mgdpr_forward.1} parent=11 // pred_check
        %p544 = pneg %p122
      $region18: #{mgdpr_forward.1} parent=11 // pred_check_branch
        %546 = sbr.rel (%p544) target = $region20
      $region19: #{mgdpr_forward.1} parent=11 // pred_region
        _
      $region20: #{mgdpr_forward.1} parent=11 // pred_fallthru
        _
      // Predicated region
      $region21: #{mgdpr_forward.1} parent=11 // pred_check
        %p547 = pneg %p143
      $region22: #{mgdpr_forward.1} parent=11 // pred_check_branch
        %549 = sbr.rel (%p547) target = $region24
      $region23: #{mgdpr_forward.1} parent=11 // pred_region
        _
      $region24: #{mgdpr_forward.1} parent=11 // pred_fallthru
        _
      // Predicated region
      $region25: #{mgdpr_forward.1} parent=11 // pred_check
        %p550 = pneg %p164
      $region26: #{mgdpr_forward.1} parent=11 // pred_check_branch
        %552 = sbr.rel (%p550) target = $region28
      $region27: #{mgdpr_forward.1} parent=11 // pred_region
        _
      $region28: #{mgdpr_forward.1} parent=11 // pred_fallthru
        _
      // Predicated region
      $region29: #{mgdpr_forward.1} parent=11 // pred_check
        %p553 = pneg %p185
      $region30: #{mgdpr_forward.1} parent=11 // pred_check_branch
        %555 = sbr.rel (%p553) target = $region32
      $region31: #{mgdpr_forward.1} parent=11 // pred_region
        _
      $region32: #{mgdpr_forward.1} parent=11 // pred_fallthru
        _
      // Predicated region
      $region33: #{mgdpr_forward.1} parent=11 // pred_check
        %p556 = pneg %p206
      $region34: #{mgdpr_forward.1} parent=11 // pred_check_branch
        %558 = sbr.rel (%p556) target = $region36
      $region35: #{mgdpr_forward.1} parent=11 // pred_region
        _
      $region36: #{mgdpr_forward.1} parent=11 // pred_fallthru
        _
      // Predicated region
      $region37: #{mgdpr_forward.1} parent=11 // pred_check
        %p559 = pneg %p227
      $region38: #{mgdpr_forward.1} parent=11 // pred_check_branch
        %561 = sbr.rel (%p559) target = $region40
      $region39: #{mgdpr_forward.1} parent=11 // pred_region
        _
      $region40: #{mgdpr_forward.1} parent=11 // pred_fallthru
        _
      // Predicated region
      $region41: #{mgdpr_forward.1} parent=11 // pred_check
        %p562 = pneg %p248
      $region42: #{mgdpr_forward.1} parent=11 // pred_check_branch
        %564 = sbr.rel (%p562) target = $region44
      $region43: #{mgdpr_forward.1} parent=11 // pred_region
        _
      $region44: #{mgdpr_forward.1} parent=11 // pred_fallthru
        _
      // Predicated region
      $region45: #{mgdpr_forward.1} parent=11 // pred_check
        %p565 = pneg %p269
      $region46: #{mgdpr_forward.1} parent=11 // pred_check_branch
        %567 = sbr.rel (%p565) target = $region48
      $region47: #{mgdpr_forward.1} parent=11 // pred_region
        _
      $region48: #{mgdpr_forward.1} parent=11 // pred_fallthru
        _
      // Predicated region
      $region49: #{mgdpr_forward.1} parent=11 // pred_check
        %p568 = pneg %p290
      $region50: #{mgdpr_forward.1} parent=11 // pred_check_branch
        %570 = sbr.rel (%p568) target = $region52
      $region51: #{mgdpr_forward.1} parent=11 // pred_region
        _
      $region52: #{mgdpr_forward.1} parent=11 // pred_fallthru
        _
      // Predicated region
      $region53: #{mgdpr_forward.1} parent=11 // pred_check
        %p571 = pneg %p311
      $region54: #{mgdpr_forward.1} parent=11 // pred_check_branch
        %573 = sbr.rel (%p571) target = $region56
      $region55: #{mgdpr_forward.1} parent=11 // pred_region
        _
      $region56: #{mgdpr_forward.1} parent=11 // pred_fallthru
        _
      // Predicated region
      $region57: #{mgdpr_forward.1} parent=11 // pred_check
        %p574 = pneg %p332
      $region58: #{mgdpr_forward.1} parent=11 // pred_check_branch
        %576 = sbr.rel (%p574) target = $region60
      $region59: #{mgdpr_forward.1} parent=11 // pred_region
        _
      $region60: #{mgdpr_forward.1} parent=11 // pred_fallthru
        _
      // Predicated region
      $region61: #{mgdpr_forward.1} parent=11 // pred_check
        %p577 = pneg %p353
      $region62: #{mgdpr_forward.1} parent=11 // pred_check_branch
        %579 = sbr.rel (%p577) target = $region64
      $region63: #{mgdpr_forward.1} parent=11 // pred_region
        _
      $region64: #{mgdpr_forward.1} parent=11 // pred_fallthru
        _
      // Predicated region
      $region65: #{mgdpr_forward.1} parent=11 // pred_check
        %p580 = pneg %p374
      $region66: #{mgdpr_forward.1} parent=11 // pred_check_branch
        %582 = sbr.rel (%p580) target = $region68
      $region67: #{mgdpr_forward.1} parent=11 // pred_region
        _
      $region68: #{mgdpr_forward.1} parent=11 // pred_fallthru
        _
      // Predicated region
      $region69: #{mgdpr_forward.1} parent=11 // pred_check
        %p583 = pneg %p395
      $region70: #{mgdpr_forward.1} parent=11 // pred_check_branch
        %585 = sbr.rel (%p583) target = $region72
      $region71: #{mgdpr_forward.1} parent=11 // pred_region
        _
      $region72: #{mgdpr_forward.1} parent=11 // pred_fallthru
        _
      // Predicated region
      $region73: #{mgdpr_forward.1} parent=11 // pred_check
        %p586 = pneg %p416
      $region74: #{mgdpr_forward.1} parent=11 // pred_check_branch
        %588 = sbr.rel (%p586) target = $region76
      $region75: #{mgdpr_forward.1} parent=11 // pred_region
        _
      $region76: #{mgdpr_forward.1} parent=11 // pred_fallthru
        _
      // Predicated region
      $region77: #{mgdpr_forward.1} parent=11 // pred_check
        %p589 = pneg %p437
      $region78: #{mgdpr_forward.1} parent=11 // pred_check_branch
        %591 = sbr.rel (%p589) target = $region80
      $region79: #{mgdpr_forward.1} parent=11 // pred_region
        _
      $region80: #{mgdpr_forward.1} parent=11 // pred_fallthru
        _
      // Predicated region
      $region81: #{mgdpr_forward.1} parent=11 // pred_check
        %p592 = pneg %p458
      $region82: #{mgdpr_forward.1} parent=11 // pred_check_branch
        %594 = sbr.rel (%p592) target = $region84
      $region83: #{mgdpr_forward.1} parent=11 // pred_region
        _
      $region84: #{mgdpr_forward.1} parent=11 // pred_fallthru
        _
      // Predicated region
      $region85: #{mgdpr_forward.1} parent=11 // pred_check
        %p595 = pneg %p479
      $region86: #{mgdpr_forward.1} parent=11 // pred_check_branch
        %597 = sbr.rel (%p595) target = $region88
      $region87: #{mgdpr_forward.1} parent=11 // pred_region
        _
      $region88: #{mgdpr_forward.1} parent=11 // pred_fallthru
        _
      // Predicated region
      $region89: #{mgdpr_forward.1} parent=11 // pred_check
        %p598 = pneg %p500
      $region90: #{mgdpr_forward.1} parent=11 // pred_check_branch
        %600 = sbr.rel (%p598) target = $region92
      $region91: #{mgdpr_forward.1} parent=11 // pred_region
        _
      $region92: #{mgdpr_forward.1} parent=11 // pred_fallthru
        _
    $region12: #{mgdpr_forward.1} parent=5 // pred_fallthru
      _
    %p601 = scmp.lt.s32.totalorder %s28, 2
    // Predicated region
    $region93: #{mgdpr_forward.1} parent=5 // pred_check
      %p602 = pneg %p601
    $region94: #{mgdpr_forward.1} parent=5 // pred_check_branch
      %604 = sbr.rel (%p602) target = $region96
    $region95: #{mgdpr_forward.1} parent=5 // pred_region
      // Predicated region
      $region97: #{mgdpr_forward.1} parent=95 // pred_check
        %p605 = pneg %p48
      $region98: #{mgdpr_forward.1} parent=95 // pred_check_branch
        %607 = sbr.rel (%p605) target = $region100
      $region99: #{mgdpr_forward.1} parent=95 // pred_region
        %p608 = scmp.lt.s32.totalorder %s28, 1
        %s609 = scalar_select %p608, %s28, 1
        %s610 = smul.addr %s609, 2
        %s611 = smul.addr %s610, 8
        %s612 = scalar_lea.vmem %s0, %s611
      $region100: #{mgdpr_forward.1} parent=95 // pred_fallthru
        _
      // Predicated region
      $region101: #{mgdpr_forward.1} parent=95 // pred_check
        %p613 = pneg %p74
      $region102: #{mgdpr_forward.1} parent=95 // pred_check_branch
        %615 = sbr.rel (%p613) target = $region104
      $region103: #{mgdpr_forward.1} parent=95 // pred_region
        %p616 = scmp.lt.s32.totalorder %s28, 1
        %s617 = scalar_select %p616, %s28, 1
        %s618 = smul.addr %s617, 6
        %s619 = smul.addr %s618, 8
        %s620 = scalar_lea.vmem %s1, %s619
      $region104: #{mgdpr_forward.1} parent=95 // pred_fallthru
        _
    $region96: #{mgdpr_forward.1} parent=5 // pred_fallthru
      _
    %p621 = scmp.le.s32.totalorder 1, %s28
    %p622 = scmp.lt.s32.totalorder %s28, 3
    %p623 = pnand %p621, %p622
    %p624 = pneg %p623
    // Predicated region
    $region105: #{mgdpr_forward.1} parent=5 // pred_check
      _
    $region106: #{mgdpr_forward.1} parent=5 // pred_check_branch
      %626 = sbr.rel (%p623) target = $region108
    $region107: #{mgdpr_forward.1} parent=5 // pred_region
      %s627 = ssub.s32 %s28, 1
      %p628 = scmp.lt.s32.totalorder %s33, 1
      %s629 = scalar_select %p628, %s33, 1
      %s630 = smul.addr %s629, 2
      %s631 = smul.addr %s630, 8
      %s632 = scalar_lea.vmem %s0, %s631
      %p633 = pneg %p54
      %p634 = pneg %p51
      %p635 = scmp.lt.s32.totalorder %s33, 1
      %s636 = scalar_select %p635, %s33, 1
      %s637 = smul.addr %s636, 6
      %s638 = smul.addr %s637, 8
      %s639 = scalar_lea.vmem %s1, %s638
      %p640 = pneg %p80
      %p641 = pneg %p77
      %p642 = pneg %p101
      %p643 = pneg %p98
      %p644 = pneg %p122
      %p645 = pneg %p119
      %p646 = pneg %p143
      %p647 = pneg %p140
      %p648 = pneg %p164
      %p649 = pneg %p161
      %p650 = pneg %p185
      %p651 = pneg %p182
      %p652 = pneg %p206
      %p653 = pneg %p203
      %p654 = pneg %p227
      %p655 = pneg %p224
      %p656 = pneg %p248
      %p657 = pneg %p245
      %p658 = pneg %p269
      %p659 = pneg %p266
      %p660 = pneg %p290
      %p661 = pneg %p287
      %p662 = pneg %p311
      %p663 = pneg %p308
      %p664 = pneg %p332
      %p665 = pneg %p329
      %p666 = pneg %p353
      %p667 = pneg %p350
      %p668 = pneg %p374
      %p669 = pneg %p371
      %p670 = pneg %p395
      %p671 = pneg %p392
      %p672 = pneg %p416
      %p673 = pneg %p413
      %p674 = pneg %p437
      %p675 = pneg %p434
      %p676 = pneg %p458
      %p677 = pneg %p455
      %p678 = pneg %p479
      %p679 = pneg %p476
      %p680 = pneg %p500
      %p681 = pneg %p497
      %p682 = pneg %p526
      %p683 = pneg %p523
      %p684 = scmp.lt.s32.totalorder %s33, 1
      %s685 = scalar_select %p684, %s33, 1
      %s686 = smul.addr %s685, 2
      %s687 = smul.addr %s686, 8
      %s688 = scalar_lea.vmem %s22, %s687
      %p689 = scmp.lt.s32.totalorder %s33, 1
      %s690 = scalar_select %p689, %s33, 1
      %s691 = smul.addr %s690, 2
      %s692 = smul.addr %s691, 8
      %s693 = scalar_lea.vmem %s0, %s692
      %p694 = scmp.lt.s32.totalorder %s33, 1
      %s695 = scalar_select %p694, %s33, 1
      %s696 = smul.addr %s695, 6
      %s697 = smul.addr %s696, 8
      %s698 = scalar_lea.vmem %s1, %s697
      %p699 = scmp.lt.s32.totalorder %s33, 1
      %s700 = scalar_select %p699, %s33, 1
      %s701 = smul.addr %s700, 2
      %s702 = smul.addr %s701, 8
      %s703 = scalar_lea.vmem %s22, %s702
      %v704 = vld [vmem:[%s12] sm:$0xff]
      %v705 = vld [vmem:[%s12 + $0x8] sm:$0xff]
      %v706 = vld [vmem:[%s12 + $0x10] sm:$0xff]
      %v707 = vld [vmem:[%s12 + $0x18] sm:$0xff]
      %v708 = vld [vmem:[%s13] sm:$0xf]
      %v709 = vld [vmem:[%s693] sm:$0xff]
      %v710 = vld [vmem:[%s693 + $0x8] sm:$0xff]
      %v711 = vld [vmem:[%s2] sm:$0xf]
      %v712 = vld [vmem:[%s3] sm:$0x1]
      %v714 = vlaneseq
      %v715 = vshrl.u32 %v714, 7
      %v716 = vsub.s32 0, %v715
      %v717 = vrot.slane %v712, %v716
      %vm719 = vcmask 31744
      %v721 = vsel %vm719, %v709, 0
      %v724 = vsel %vm719, %v710, 0
      %vm726 = vcmask 1043456
      %v728 = vsel %vm726, %v711, 0
      %730 = vmatprep.subr.mxu0 0.0
      %731 = vmatpush1.msra.mxu0 %v728
      %732 = vmatprep.subr.mxu0 0.0
      %733 = vmatpush1.msra.mxu0 0.0
      %734 = vmatprep.subr.mxu0 0.0
      %735 = vmatpush1.msra.mxu0 0.0
      %736 = vmatprep.subr.mxu0 0.0
      %737 = vmatpush1.msra.mxu0 0.0
      %738 = vmatprep.subr.mxu0 0.0
      %739 = vmatpush1.msra.mxu0 0.0
      %740 = vmatprep.subr.mxu0 0.0
      %741 = vmatpush1.msra.mxu0 0.0
      %742 = vmatprep.subr.mxu0 0.0
      %743 = vmatpush1.msra.mxu0 0.0
      %744 = vmatprep.subr.mxu0 0.0
      %745 = vmatpush1.msra.mxu0 0.0
      %746 = vmatprep.subr.mxu0 0.0
      %747 = vmatpush1.msra.mxu0 0.0
      %748 = vmatprep.subr.mxu0 0.0
      %749 = vmatpush1.msra.mxu0 0.0
      %750 = vmatprep.subr.mxu0 0.0
      %751 = vmatpush1.msra.mxu0 0.0
      %752 = vmatprep.subr.mxu0 0.0
      %753 = vmatpush1.msra.mxu0 0.0
      %754 = vmatprep.subr.mxu0 0.0
      %755 = vmatpush1.msra.mxu0 0.0
      %756 = vmatprep.subr.mxu0 0.0
      %757 = vmatpush1.msra.mxu0 0.0
      %758 = vmatprep.subr.mxu0 0.0
      %759 = vmatpush1.msra.mxu0 0.0
      %760 = vmatprep.subr.mxu0 0.0
      %761 = vmatpush1.msra.mxu0 0.0
      %762 = vmatprep.subr.mxu0 0.0
      %763 = vmatpush1.msra.mxu0 0.0
      %764 = vmatprep.subr.mxu0 0.0
      %765 = vmatpush1.msra.mxu0 0.0
      %766 = vmatprep.subr.mxu0 0.0
      %767 = vmatpush1.msra.mxu0 0.0
      %768 = vmatprep.subr.mxu0 0.0
      %769 = vmatpush1.msra.mxu0 0.0
      %770 = vmatprep.subr.mxu0 0.0
      %771 = vmatpush1.msra.mxu0 0.0
      %772 = vmatprep.subr.mxu0 0.0
      %773 = vmatpush1.msra.mxu0 0.0
      %774 = vmatprep.subr.mxu0 0.0
      %775 = vmatpush1.msra.mxu0 0.0
      %776 = vmatprep.subr.mxu0 0.0
      %777 = vmatpush1.msra.mxu0 0.0
      %778 = vmatprep.subr.mxu0 0.0
      %779 = vmatpush1.msra.mxu0 0.0
      %780 = vmatprep.subr.mxu0 0.0
      %781 = vmatpush1.msra.mxu0 0.0
      %782 = vmatprep.subr.mxu0 0.0
      %783 = vmatpush1.msra.mxu0 0.0
      %784 = vmatprep.subr.mxu0 0.0
      %785 = vmatpush1.msra.mxu0 0.0
      %786 = vmatprep.subr.mxu0 0.0
      %787 = vmatpush1.msra.mxu0 0.0
      %788 = vmatprep.subr.mxu0 0.0
      %789 = vmatpush1.msra.mxu0 0.0
      %790 = vmatprep.subr.mxu0 0.0
      %791 = vmatpush1.msra.mxu0 0.0
      %792 = vmatprep.subr.mxu0 0.0
      %793 = vmatpush1.msra.mxu0 0.0
      %794 = vmatprep.mubr.f32.mxu0 0.0
      %795 = vmatmul.mubr.f32.gmra.mrb[0].mxu0 %v721
      %v796 = vpop.f32.mrb[0].mxu0
      %v797 = vadd.f32 %v717, %v796
      %v798 = vpop.f32.mrb[0].mxu0
      %799 = vmatprep.mubr.f32.mxu0 0.0
      %800 = vmatmul.mubr.f32.gmra.mrb[0].mxu0 %v724
      %v801 = vpop.f32.mrb[0].mxu0
      %v802 = vadd.f32 %v717, %v801
      %v803 = vpop.f32.mrb[0].mxu0
      %804 = vdwg.mxu0
      %v805 = vld [vmem:[%s4] sm:$0xff]
      %v806 = vld [vmem:[%s4 + $0x8] sm:$0xff]
      %v807 = vld [vmem:[%s4 + $0x10] sm:$0xff]
      %v808 = vld [vmem:[%s4 + $0x18] sm:$0xff]
      %vm809 = vcmask 261120
      %v811 = vsel %vm809, %v797, 0
      %v814 = vsel %vm809, %v802, 0
      %816 = vmatprep.subr.mxu0 0.0
      %817 = vmatpush1.msra.mxu0 %v805
      %818 = vmatprep.subr.mxu0 0.0
      %819 = vmatpush1.msra.mxu0 %v806
      %820 = vmatprep.subr.mxu0 0.0
      %821 = vmatpush1.msra.mxu0 %v807
      %822 = vmatprep.subr.mxu0 0.0
      %823 = vmatpush1.msra.mxu0 %v808
      %824 = vmatprep.subr.mxu0 0.0
      %825 = vmatpush1.msra.mxu0 0.0
      %826 = vmatprep.subr.mxu0 0.0
      %827 = vmatpush1.msra.mxu0 0.0
      %828 = vmatprep.subr.mxu0 0.0
      %829 = vmatpush1.msra.mxu0 0.0
      %830 = vmatprep.subr.mxu0 0.0
      %831 = vmatpush1.msra.mxu0 0.0
      %832 = vmatprep.subr.mxu0 0.0
      %833 = vmatpush1.msra.mxu0 0.0
      %834 = vmatprep.subr.mxu0 0.0
      %835 = vmatpush1.msra.mxu0 0.0
      %836 = vmatprep.subr.mxu0 0.0
      %837 = vmatpush1.msra.mxu0 0.0
      %838 = vmatprep.subr.mxu0 0.0
      %839 = vmatpush1.msra.mxu0 0.0
      %840 = vmatprep.subr.mxu0 0.0
      %841 = vmatpush1.msra.mxu0 0.0
      %842 = vmatprep.subr.mxu0 0.0
      %843 = vmatpush1.msra.mxu0 0.0
      %844 = vmatprep.subr.mxu0 0.0
      %845 = vmatpush1.msra.mxu0 0.0
      %846 = vmatprep.subr.mxu0 0.0
      %847 = vmatpush1.msra.mxu0 0.0
      %848 = vmatprep.subr.mxu0 0.0
      %849 = vmatpush1.msra.mxu0 0.0
      %850 = vmatprep.subr.mxu0 0.0
      %851 = vmatpush1.msra.mxu0 0.0
      %852 = vmatprep.subr.mxu0 0.0
      %853 = vmatpush1.msra.mxu0 0.0
      %854 = vmatprep.subr.mxu0 0.0
      %855 = vmatpush1.msra.mxu0 0.0
      %856 = vmatprep.subr.mxu0 0.0
      %857 = vmatpush1.msra.mxu0 0.0
      %858 = vmatprep.subr.mxu0 0.0
      %859 = vmatpush1.msra.mxu0 0.0
      %860 = vmatprep.subr.mxu0 0.0
      %861 = vmatpush1.msra.mxu0 0.0
      %862 = vmatprep.subr.mxu0 0.0
      %863 = vmatpush1.msra.mxu0 0.0
      %864 = vmatprep.subr.mxu0 0.0
      %865 = vmatpush1.msra.mxu0 0.0
      %866 = vmatprep.subr.mxu0 0.0
      %867 = vmatpush1.msra.mxu0 0.0
      %868 = vmatprep.subr.mxu0 0.0
      %869 = vmatpush1.msra.mxu0 0.0
      %870 = vmatprep.subr.mxu0 0.0
      %871 = vmatpush1.msra.mxu0 0.0
      %872 = vmatprep.subr.mxu0 0.0
      %873 = vmatpush1.msra.mxu0 0.0
      %874 = vmatprep.subr.mxu0 0.0
      %875 = vmatpush1.msra.mxu0 0.0
      %876 = vmatprep.subr.mxu0 0.0
      %877 = vmatpush1.msra.mxu0 0.0
      %878 = vmatprep.subr.mxu0 0.0
      %879 = vmatpush1.msra.mxu0 0.0
      %880 = vmatprep.mubr.f32.mxu0 0.0
      %881 = vmatmul.mubr.f32.gmra.mrb[0].mxu0 %v811
      %v882 = vpop.f32.mrb[0].mxu0
      %v883 = vadd.f32 0.0, %v882
      %v884 = vpop.f32.mrb[0].mxu0
      %885 = vmatprep.mubr.f32.mxu0 0.0
      %886 = vmatmul.mubr.f32.gmra.mrb[0].mxu0 %v814
      %v887 = vpop.f32.mrb[0].mxu0
      %v888 = vadd.f32 0.0, %v887
      %v889 = vpop.f32.mrb[0].mxu0
      %890 = vdwg.mxu0
      %v891 = vld [vmem:[%s698] sm:$0xff]
      %v892 = vld [vmem:[%s698 + $0x8] sm:$0xff]
      %s893 = scalar_lea.vmem %s698, 16
      %v894 = vld [vmem:[%s893] sm:$0xff]
      %v895 = vld [vmem:[%s893 + $0x8] sm:$0xff]
      %898 = vrot.lane.b32.xlu0 %v883, 96
      %v899 = vpop.permute.xlu0 %898
      %900 = vrot.lane.b32.xlu0 %v888, 96
      %v901 = vpop.permute.xlu0 %900
      %vm904 = vcmask 130048
      %v906 = vsel %vm904, %v894, 0
      %v909 = vsel %vm904, %v895, 0
      %911 = vmatprep.subr.mxu0 0.0
      %912 = vmatpush1.msra.mxu0 %v899
      %913 = vmatprep.subr.mxu0 0.0
      %914 = vmatpush1.msra.mxu0 %v901
      %915 = vmatprep.subr.mxu0 0.0
      %916 = vmatpush1.msra.mxu0 0.0
      %917 = vmatprep.subr.mxu0 0.0
      %918 = vmatpush1.msra.mxu0 0.0
      %919 = vmatprep.subr.mxu0 0.0
      %920 = vmatpush1.msra.mxu0 0.0
      %921 = vmatprep.subr.mxu0 0.0
      %922 = vmatpush1.msra.mxu0 0.0
      %923 = vmatprep.subr.mxu0 0.0
      %924 = vmatpush1.msra.mxu0 0.0
      %925 = vmatprep.subr.mxu0 0.0
      %926 = vmatpush1.msra.mxu0 0.0
      %927 = vmatprep.subr.mxu0 0.0
      %928 = vmatpush1.msra.mxu0 0.0
      %929 = vmatprep.subr.mxu0 0.0
      %930 = vmatpush1.msra.mxu0 0.0
      %931 = vmatprep.subr.mxu0 0.0
      %932 = vmatpush1.msra.mxu0 0.0
      %933 = vmatprep.subr.mxu0 0.0
      %934 = vmatpush1.msra.mxu0 0.0
      %935 = vmatprep.subr.mxu0 0.0
      %936 = vmatpush1.msra.mxu0 0.0
      %937 = vmatprep.subr.mxu0 0.0
      %938 = vmatpush1.msra.mxu0 0.0
      %939 = vmatprep.subr.mxu0 0.0
      %940 = vmatpush1.msra.mxu0 0.0
      %941 = vmatprep.subr.mxu0 0.0
      %942 = vmatpush1.msra.mxu0 0.0
      %943 = vmatprep.subr.mxu0 0.0
      %944 = vmatpush1.msra.mxu0 0.0
      %945 = vmatprep.subr.mxu0 0.0
      %946 = vmatpush1.msra.mxu0 0.0
      %947 = vmatprep.subr.mxu0 0.0
      %948 = vmatpush1.msra.mxu0 0.0
      %949 = vmatprep.subr.mxu0 0.0
      %950 = vmatpush1.msra.mxu0 0.0
      %951 = vmatprep.subr.mxu0 0.0
      %952 = vmatpush1.msra.mxu0 0.0
      %953 = vmatprep.subr.mxu0 0.0
      %954 = vmatpush1.msra.mxu0 0.0
      %955 = vmatprep.subr.mxu0 0.0
      %956 = vmatpush1.msra.mxu0 0.0
      %957 = vmatprep.subr.mxu0 0.0
      %958 = vmatpush1.msra.mxu0 0.0
      %959 = vmatprep.subr.mxu0 0.0
      %960 = vmatpush1.msra.mxu0 0.0
      %961 = vmatprep.subr.mxu0 0.0
      %962 = vmatpush1.msra.mxu0 0.0
      %963 = vmatprep.subr.mxu0 0.0
      %964 = vmatpush1.msra.mxu0 0.0
      %965 = vmatprep.subr.mxu0 0.0
      %966 = vmatpush1.msra.mxu0 0.0
      %967 = vmatprep.subr.mxu0 0.0
      %968 = vmatpush1.msra.mxu0 0.0
      %969 = vmatprep.subr.mxu0 0.0
      %970 = vmatpush1.msra.mxu0 0.0
      %971 = vmatprep.subr.mxu0 0.0
      %972 = vmatpush1.msra.mxu0 0.0
      %973 = vmatprep.subr.mxu0 0.0
      %974 = vmatpush1.msra.mxu0 0.0
      %975 = vmatprep.mubr.f32.mxu0 0.0
      %976 = vmatmul.mubr.f32.gmra.mrb[0].mxu0 %v906
      %v977 = vpop.f32.mrb[0].mxu0
      %v978 = vadd.f32 0.0, %v977
      %v979 = vpop.f32.mrb[0].mxu0
      %980 = vmatprep.mubr.f32.mxu0 0.0
      %981 = vmatmul.mubr.f32.gmra.mrb[0].mxu0 %v909
      %v982 = vpop.f32.mrb[0].mxu0
      %v983 = vadd.f32 0.0, %v982
      %v984 = vpop.f32.mrb[0].mxu0
      %985 = vdwg.mxu0
      %v987 = vsel %vm904, %v891, 0
      %v990 = vsel %vm904, %v892, 0
      %992 = vmatprep.subr.mxu0 0.0
      %993 = vmatpush1.msra.mxu0 %v883
      %994 = vmatprep.subr.mxu0 0.0
      %995 = vmatpush1.msra.mxu0 %v888
      %996 = vmatprep.subr.mxu0 0.0
      %997 = vmatpush1.msra.mxu0 0.0
      %998 = vmatprep.subr.mxu0 0.0
      %999 = vmatpush1.msra.mxu0 0.0
      %1000 = vmatprep.subr.mxu0 0.0
      %1001 = vmatpush1.msra.mxu0 0.0
      %1002 = vmatprep.subr.mxu0 0.0
      %1003 = vmatpush1.msra.mxu0 0.0
      %1004 = vmatprep.subr.mxu0 0.0
      %1005 = vmatpush1.msra.mxu0 0.0
      %1006 = vmatprep.subr.mxu0 0.0
      %1007 = vmatpush1.msra.mxu0 0.0
      %1008 = vmatprep.subr.mxu0 0.0
      %1009 = vmatpush1.msra.mxu0 0.0
      %1010 = vmatprep.subr.mxu0 0.0
      %1011 = vmatpush1.msra.mxu0 0.0
      %1012 = vmatprep.subr.mxu0 0.0
      %1013 = vmatpush1.msra.mxu0 0.0
      %1014 = vmatprep.subr.mxu0 0.0
      %1015 = vmatpush1.msra.mxu0 0.0
      %1016 = vmatprep.subr.mxu0 0.0
      %1017 = vmatpush1.msra.mxu0 0.0
      %1018 = vmatprep.subr.mxu0 0.0
      %1019 = vmatpush1.msra.mxu0 0.0
      %1020 = vmatprep.subr.mxu0 0.0
      %1021 = vmatpush1.msra.mxu0 0.0
      %1022 = vmatprep.subr.mxu0 0.0
      %1023 = vmatpush1.msra.mxu0 0.0
      %1024 = vmatprep.subr.mxu0 0.0
      %1025 = vmatpush1.msra.mxu0 0.0
      %1026 = vmatprep.subr.mxu0 0.0
      %1027 = vmatpush1.msra.mxu0 0.0
      %1028 = vmatprep.subr.mxu0 0.0
      %1029 = vmatpush1.msra.mxu0 0.0
      %1030 = vmatprep.subr.mxu0 0.0
      %1031 = vmatpush1.msra.mxu0 0.0
      %1032 = vmatprep.subr.mxu0 0.0
      %1033 = vmatpush1.msra.mxu0 0.0
      %1034 = vmatprep.subr.mxu0 0.0
      %1035 = vmatpush1.msra.mxu0 0.0
      %1036 = vmatprep.subr.mxu0 0.0
      %1037 = vmatpush1.msra.mxu0 0.0
      %1038 = vmatprep.subr.mxu0 0.0
      %1039 = vmatpush1.msra.mxu0 0.0
      %1040 = vmatprep.subr.mxu0 0.0
      %1041 = vmatpush1.msra.mxu0 0.0
      %1042 = vmatprep.subr.mxu0 0.0
      %1043 = vmatpush1.msra.mxu0 0.0
      %1044 = vmatprep.subr.mxu0 0.0
      %1045 = vmatpush1.msra.mxu0 0.0
      %1046 = vmatprep.subr.mxu0 0.0
      %1047 = vmatpush1.msra.mxu0 0.0
      %1048 = vmatprep.subr.mxu0 0.0
      %1049 = vmatpush1.msra.mxu0 0.0
      %1050 = vmatprep.subr.mxu0 0.0
      %1051 = vmatpush1.msra.mxu0 0.0
      %1052 = vmatprep.subr.mxu0 0.0
      %1053 = vmatpush1.msra.mxu0 0.0
      %1054 = vmatprep.subr.mxu0 0.0
      %1055 = vmatpush1.msra.mxu0 0.0
      %1056 = vmatprep.mubr.f32.mxu0 0.0
      %1057 = vmatmul.mubr.f32.gmra.mrb[0].mxu0 %v987
      %v1058 = vpop.f32.mrb[0].mxu0
      %v1059 = vadd.f32 %v978, %v1058
      %v1060 = vpop.f32.mrb[0].mxu0
      %1061 = vmatprep.mubr.f32.mxu0 0.0
      %1062 = vmatmul.mubr.f32.gmra.mrb[0].mxu0 %v990
      %v1063 = vpop.f32.mrb[0].mxu0
      %v1064 = vadd.f32 %v983, %v1063
      %v1065 = vpop.f32.mrb[0].mxu0
      %1066 = vdwg.mxu0
      %s1067 = scalar_lea.vmem %s698, 32
      %v1068 = vld [vmem:[%s1067] sm:$0xff]
      %v1069 = vld [vmem:[%s1067 + $0x8] sm:$0xff]
      %1070 = vrot.lane.b32.xlu0 %v883, 64
      %v1071 = vpop.permute.xlu0 %1070
      %1072 = vrot.lane.b32.xlu0 %v888, 64
      %v1073 = vpop.permute.xlu0 %1072
      %v1077 = vsel %vm904, %v1068, 0
      %v1080 = vsel %vm904, %v1069, 0
      %1082 = vmatprep.subr.mxu0 0.0
      %1083 = vmatpush1.msra.mxu0 %v1071
      %1084 = vmatprep.subr.mxu0 0.0
      %1085 = vmatpush1.msra.mxu0 %v1073
      %1086 = vmatprep.subr.mxu0 0.0
      %1087 = vmatpush1.msra.mxu0 0.0
      %1088 = vmatprep.subr.mxu0 0.0
      %1089 = vmatpush1.msra.mxu0 0.0
      %1090 = vmatprep.subr.mxu0 0.0
      %1091 = vmatpush1.msra.mxu0 0.0
      %1092 = vmatprep.subr.mxu0 0.0
      %1093 = vmatpush1.msra.mxu0 0.0
      %1094 = vmatprep.subr.mxu0 0.0
      %1095 = vmatpush1.msra.mxu0 0.0
      %1096 = vmatprep.subr.mxu0 0.0
      %1097 = vmatpush1.msra.mxu0 0.0
      %1098 = vmatprep.subr.mxu0 0.0
      %1099 = vmatpush1.msra.mxu0 0.0
      %1100 = vmatprep.subr.mxu0 0.0
      %1101 = vmatpush1.msra.mxu0 0.0
      %1102 = vmatprep.subr.mxu0 0.0
      %1103 = vmatpush1.msra.mxu0 0.0
      %1104 = vmatprep.subr.mxu0 0.0
      %1105 = vmatpush1.msra.mxu0 0.0
      %1106 = vmatprep.subr.mxu0 0.0
      %1107 = vmatpush1.msra.mxu0 0.0
      %1108 = vmatprep.subr.mxu0 0.0
      %1109 = vmatpush1.msra.mxu0 0.0
      %1110 = vmatprep.subr.mxu0 0.0
      %1111 = vmatpush1.msra.mxu0 0.0
      %1112 = vmatprep.subr.mxu0 0.0
      %1113 = vmatpush1.msra.mxu0 0.0
      %1114 = vmatprep.subr.mxu0 0.0
      %1115 = vmatpush1.msra.mxu0 0.0
      %1116 = vmatprep.subr.mxu0 0.0
      %1117 = vmatpush1.msra.mxu0 0.0
      %1118 = vmatprep.subr.mxu0 0.0
      %1119 = vmatpush1.msra.mxu0 0.0
      %1120 = vmatprep.subr.mxu0 0.0
      %1121 = vmatpush1.msra.mxu0 0.0
      %1122 = vmatprep.subr.mxu0 0.0
      %1123 = vmatpush1.msra.mxu0 0.0
      %1124 = vmatprep.subr.mxu0 0.0
      %1125 = vmatpush1.msra.mxu0 0.0
      %1126 = vmatprep.subr.mxu0 0.0
      %1127 = vmatpush1.msra.mxu0 0.0
      %1128 = vmatprep.subr.mxu0 0.0
      %1129 = vmatpush1.msra.mxu0 0.0
      %1130 = vmatprep.subr.mxu0 0.0
      %1131 = vmatpush1.msra.mxu0 0.0
      %1132 = vmatprep.subr.mxu0 0.0
      %1133 = vmatpush1.msra.mxu0 0.0
      %1134 = vmatprep.subr.mxu0 0.0
      %1135 = vmatpush1.msra.mxu0 0.0
      %1136 = vmatprep.subr.mxu0 0.0
      %1137 = vmatpush1.msra.mxu0 0.0
      %1138 = vmatprep.subr.mxu0 0.0
      %1139 = vmatpush1.msra.mxu0 0.0
      %1140 = vmatprep.subr.mxu0 0.0
      %1141 = vmatpush1.msra.mxu0 0.0
      %1142 = vmatprep.subr.mxu0 0.0
      %1143 = vmatpush1.msra.mxu0 0.0
      %1144 = vmatprep.subr.mxu0 0.0
      %1145 = vmatpush1.msra.mxu0 0.0
      %1146 = vmatprep.mubr.f32.mxu0 0.0
      %1147 = vmatmul.mubr.f32.gmra.mrb[0].mxu0 %v1077
      %v1148 = vpop.f32.mrb[0].mxu0
      %v1149 = vadd.f32 0.0, %v1148
      %v1150 = vpop.f32.mrb[0].mxu0
      %1151 = vmatprep.mubr.f32.mxu0 0.0
      %1152 = vmatmul.mubr.f32.gmra.mrb[0].mxu0 %v1080
      %v1153 = vpop.f32.mrb[0].mxu0
      %v1154 = vadd.f32 0.0, %v1153
      %v1155 = vpop.f32.mrb[0].mxu0
      %1156 = vdwg.mxu0
      %v1157 = vadd.f32 %v1059, %v1149
      %v1158 = vadd.f32 %v1064, %v1154
      %v1159 = vld [vmem:[%s5] sm:$0x1]
      %v1161 = vlaneseq
      %v1162 = vshrl.u32 %v1161, 7
      %v1163 = vsub.s32 0, %v1162
      %v1164 = vrot.slane %v1159, %v1163
      %v1166 = vadd.f32 %v1157, %v1164
      %v1167 = vadd.f32 %v1158, %v1164
      %v1168 = vmax.f32 %v1166, 0.0
      %v1169 = vmax.f32 %v1167, 0.0
      %v1170 = vld [vmem:[%s6] sm:$0xff]
      %v1171 = vld [vmem:[%s6 + $0x8] sm:$0xff]
      %v1172 = vld [vmem:[%s6 + $0x10] sm:$0xff]
      %v1173 = vld [vmem:[%s6 + $0x18] sm:$0xff]
      %v1174 = vld [vmem:[%s7] sm:$0x1]
      %v1176 = vlaneseq
      %v1177 = vshrl.u32 %v1176, 7
      %v1178 = vsub.s32 0, %v1177
      %v1179 = vrot.slane %v1174, %v1178
      %v1182 = vsel %vm809, %v1168, 0
      %v1185 = vsel %vm809, %v1169, 0
      %1187 = vmatprep.subr.mxu0 0.0
      %1188 = vmatpush1.msra.mxu0 %v1170
      %1189 = vmatprep.subr.mxu0 0.0
      %1190 = vmatpush1.msra.mxu0 %v1171
      %1191 = vmatprep.subr.mxu0 0.0
      %1192 = vmatpush1.msra.mxu0 %v1172
      %1193 = vmatprep.subr.mxu0 0.0
      %1194 = vmatpush1.msra.mxu0 %v1173
      %1195 = vmatprep.subr.mxu0 0.0
      %1196 = vmatpush1.msra.mxu0 0.0
      %1197 = vmatprep.subr.mxu0 0.0
      %1198 = vmatpush1.msra.mxu0 0.0
      %1199 = vmatprep.subr.mxu0 0.0
      %1200 = vmatpush1.msra.mxu0 0.0
      %1201 = vmatprep.subr.mxu0 0.0
      %1202 = vmatpush1.msra.mxu0 0.0
      %1203 = vmatprep.subr.mxu0 0.0
      %1204 = vmatpush1.msra.mxu0 0.0
      %1205 = vmatprep.subr.mxu0 0.0
      %1206 = vmatpush1.msra.mxu0 0.0
      %1207 = vmatprep.subr.mxu0 0.0
      %1208 = vmatpush1.msra.mxu0 0.0
      %1209 = vmatprep.subr.mxu0 0.0
      %1210 = vmatpush1.msra.mxu0 0.0
      %1211 = vmatprep.subr.mxu0 0.0
      %1212 = vmatpush1.msra.mxu0 0.0
      %1213 = vmatprep.subr.mxu0 0.0
      %1214 = vmatpush1.msra.mxu0 0.0
      %1215 = vmatprep.subr.mxu0 0.0
      %1216 = vmatpush1.msra.mxu0 0.0
      %1217 = vmatprep.subr.mxu0 0.0
      %1218 = vmatpush1.msra.mxu0 0.0
      %1219 = vmatprep.subr.mxu0 0.0
      %1220 = vmatpush1.msra.mxu0 0.0
      %1221 = vmatprep.subr.mxu0 0.0
      %1222 = vmatpush1.msra.mxu0 0.0
      %1223 = vmatprep.subr.mxu0 0.0
      %1224 = vmatpush1.msra.mxu0 0.0
      %1225 = vmatprep.subr.mxu0 0.0
      %1226 = vmatpush1.msra.mxu0 0.0
      %1227 = vmatprep.subr.mxu0 0.0
      %1228 = vmatpush1.msra.mxu0 0.0
      %1229 = vmatprep.subr.mxu0 0.0
      %1230 = vmatpush1.msra.mxu0 0.0
      %1231 = vmatprep.subr.mxu0 0.0
      %1232 = vmatpush1.msra.mxu0 0.0
      %1233 = vmatprep.subr.mxu0 0.0
      %1234 = vmatpush1.msra.mxu0 0.0
      %1235 = vmatprep.subr.mxu0 0.0
      %1236 = vmatpush1.msra.mxu0 0.0
      %1237 = vmatprep.subr.mxu0 0.0
      %1238 = vmatpush1.msra.mxu0 0.0
      %1239 = vmatprep.subr.mxu0 0.0
      %1240 = vmatpush1.msra.mxu0 0.0
      %1241 = vmatprep.subr.mxu0 0.0
      %1242 = vmatpush1.msra.mxu0 0.0
      %1243 = vmatprep.subr.mxu0 0.0
      %1244 = vmatpush1.msra.mxu0 0.0
      %1245 = vmatprep.subr.mxu0 0.0
      %1246 = vmatpush1.msra.mxu0 0.0
      %1247 = vmatprep.subr.mxu0 0.0
      %1248 = vmatpush1.msra.mxu0 0.0
      %1249 = vmatprep.subr.mxu0 0.0
      %1250 = vmatpush1.msra.mxu0 0.0
      %1251 = vmatprep.mubr.f32.mxu0 0.0
      %1252 = vmatmul.mubr.f32.gmra.mrb[0].mxu0 %v1182
      %v1253 = vpop.f32.mrb[0].mxu0
      %v1254 = vadd.f32 %v1179, %v1253
      %v1255 = vpop.f32.mrb[0].mxu0
      %1256 = vmatprep.mubr.f32.mxu0 0.0
      %1257 = vmatmul.mubr.f32.gmra.mrb[0].mxu0 %v1185
      %v1258 = vpop.f32.mrb[0].mxu0
      %v1259 = vadd.f32 %v1179, %v1258
      %v1260 = vpop.f32.mrb[0].mxu0
      %1261 = vdwg.mxu0
      %1264 = vrot.lane.b32.xlu0 %v1254, 96
      %v1265 = vpop.permute.xlu0 %1264
      %1266 = vrot.lane.b32.xlu0 %v1259, 96
      %v1267 = vpop.permute.xlu0 %1266
      %v1270 = vmul.f32 %v1254, %v1265
      %v1271 = vmul.f32 %v1259, %v1267
      %v1273 = vsel %vm809, %v1270, 0
      %v1276 = vsel %vm809, %v1271, 0
      %1278 = vmatprep.subr.mxu0 0.0
      %1279 = vmatpush1.msra.mxu0 %v704
      %1280 = vmatprep.subr.mxu0 0.0
      %1281 = vmatpush1.msra.mxu0 %v705
      %1282 = vmatprep.subr.mxu0 0.0
      %1283 = vmatpush1.msra.mxu0 %v706
      %1284 = vmatprep.subr.mxu0 0.0
      %1285 = vmatpush1.msra.mxu0 %v707
      %1286 = vmatprep.subr.mxu0 0.0
      %1287 = vmatpush1.msra.mxu0 0.0
      %1288 = vmatprep.subr.mxu0 0.0
      %1289 = vmatpush1.msra.mxu0 0.0
      %1290 = vmatprep.subr.mxu0 0.0
      %1291 = vmatpush1.msra.mxu0 0.0
      %1292 = vmatprep.subr.mxu0 0.0
      %1293 = vmatpush1.msra.mxu0 0.0
      %1294 = vmatprep.subr.mxu0 0.0
      %1295 = vmatpush1.msra.mxu0 0.0
      %1296 = vmatprep.subr.mxu0 0.0
      %1297 = vmatpush1.msra.mxu0 0.0
      %1298 = vmatprep.subr.mxu0 0.0
      %1299 = vmatpush1.msra.mxu0 0.0
      %1300 = vmatprep.subr.mxu0 0.0
      %1301 = vmatpush1.msra.mxu0 0.0
      %1302 = vmatprep.subr.mxu0 0.0
      %1303 = vmatpush1.msra.mxu0 0.0
      %1304 = vmatprep.subr.mxu0 0.0
      %1305 = vmatpush1.msra.mxu0 0.0
      %1306 = vmatprep.subr.mxu0 0.0
      %1307 = vmatpush1.msra.mxu0 0.0
      %1308 = vmatprep.subr.mxu0 0.0
      %1309 = vmatpush1.msra.mxu0 0.0
      %1310 = vmatprep.subr.mxu0 0.0
      %1311 = vmatpush1.msra.mxu0 0.0
      %1312 = vmatprep.subr.mxu0 0.0
      %1313 = vmatpush1.msra.mxu0 0.0
      %1314 = vmatprep.subr.mxu0 0.0
      %1315 = vmatpush1.msra.mxu0 0.0
      %1316 = vmatprep.subr.mxu0 0.0
      %1317 = vmatpush1.msra.mxu0 0.0
      %1318 = vmatprep.subr.mxu0 0.0
      %1319 = vmatpush1.msra.mxu0 0.0
      %1320 = vmatprep.subr.mxu0 0.0
      %1321 = vmatpush1.msra.mxu0 0.0
      %1322 = vmatprep.subr.mxu0 0.0
      %1323 = vmatpush1.msra.mxu0 0.0
      %1324 = vmatprep.subr.mxu0 0.0
      %1325 = vmatpush1.msra.mxu0 0.0
      %1326 = vmatprep.subr.mxu0 0.0
      %1327 = vmatpush1.msra.mxu0 0.0
      %1328 = vmatprep.subr.mxu0 0.0
      %1329 = vmatpush1.msra.mxu0 0.0
      %1330 = vmatprep.subr.mxu0 0.0
      %1331 = vmatpush1.msra.mxu0 0.0
      %1332 = vmatprep.subr.mxu0 0.0
      %1333 = vmatpush1.msra.mxu0 0.0
      %1334 = vmatprep.subr.mxu0 0.0
      %1335 = vmatpush1.msra.mxu0 0.0
      %1336 = vmatprep.subr.mxu0 0.0
      %1337 = vmatpush1.msra.mxu0 0.0
      %1338 = vmatprep.subr.mxu0 0.0
      %1339 = vmatpush1.msra.mxu0 0.0
      %1340 = vmatprep.subr.mxu0 0.0
      %1341 = vmatpush1.msra.mxu0 0.0
      %1342 = vmatprep.mubr.f32.mxu0 0.0
      %1343 = vmatmul.mubr.f32.gmra.mrb[0].mxu0 %v1273
      %v1344 = vpop.f32.mrb[0].mxu0
      %v1345 = vadd.f32 0.0, %v1344
      %v1346 = vpop.f32.mrb[0].mxu0
      %1347 = vmatprep.mubr.f32.mxu0 0.0
      %1348 = vmatmul.mubr.f32.gmra.mrb[0].mxu0 %v1276
      %v1349 = vpop.f32.mrb[0].mxu0
      %v1350 = vadd.f32 0.0, %v1349
      %v1351 = vpop.f32.mrb[0].mxu0
      %1352 = vdwg.mxu0
      %v1354 = vsel %vm719, %v1345, 0
      %v1357 = vsel %vm719, %v1350, 0
      %v1360 = vsel %vm726, %v708, 0
      %1362 = vmatprep.subr.mxu0 0.0
      %1363 = vmatpush1.msra.mxu0 %v1360
      %1364 = vmatprep.subr.mxu0 0.0
      %1365 = vmatpush1.msra.mxu0 0.0
      %1366 = vmatprep.subr.mxu0 0.0
      %1367 = vmatpush1.msra.mxu0 0.0
      %1368 = vmatprep.subr.mxu0 0.0
      %1369 = vmatpush1.msra.mxu0 0.0
      %1370 = vmatprep.subr.mxu0 0.0
      %1371 = vmatpush1.msra.mxu0 0.0
      %1372 = vmatprep.subr.mxu0 0.0
      %1373 = vmatpush1.msra.mxu0 0.0
      %1374 = vmatprep.subr.mxu0 0.0
      %1375 = vmatpush1.msra.mxu0 0.0
      %1376 = vmatprep.subr.mxu0 0.0
      %1377 = vmatpush1.msra.mxu0 0.0
      %1378 = vmatprep.subr.mxu0 0.0
      %1379 = vmatpush1.msra.mxu0 0.0
      %1380 = vmatprep.subr.mxu0 0.0
      %1381 = vmatpush1.msra.mxu0 0.0
      %1382 = vmatprep.subr.mxu0 0.0
      %1383 = vmatpush1.msra.mxu0 0.0
      %1384 = vmatprep.subr.mxu0 0.0
      %1385 = vmatpush1.msra.mxu0 0.0
      %1386 = vmatprep.subr.mxu0 0.0
      %1387 = vmatpush1.msra.mxu0 0.0
      %1388 = vmatprep.subr.mxu0 0.0
      %1389 = vmatpush1.msra.mxu0 0.0
      %1390 = vmatprep.subr.mxu0 0.0
      %1391 = vmatpush1.msra.mxu0 0.0
      %1392 = vmatprep.subr.mxu0 0.0
      %1393 = vmatpush1.msra.mxu0 0.0
      %1394 = vmatprep.subr.mxu0 0.0
      %1395 = vmatpush1.msra.mxu0 0.0
      %1396 = vmatprep.subr.mxu0 0.0
      %1397 = vmatpush1.msra.mxu0 0.0
      %1398 = vmatprep.subr.mxu0 0.0
      %1399 = vmatpush1.msra.mxu0 0.0
      %1400 = vmatprep.subr.mxu0 0.0
      %1401 = vmatpush1.msra.mxu0 0.0
      %1402 = vmatprep.subr.mxu0 0.0
      %1403 = vmatpush1.msra.mxu0 0.0
      %1404 = vmatprep.subr.mxu0 0.0
      %1405 = vmatpush1.msra.mxu0 0.0
      %1406 = vmatprep.subr.mxu0 0.0
      %1407 = vmatpush1.msra.mxu0 0.0
      %1408 = vmatprep.subr.mxu0 0.0
      %1409 = vmatpush1.msra.mxu0 0.0
      %1410 = vmatprep.subr.mxu0 0.0
      %1411 = vmatpush1.msra.mxu0 0.0
      %1412 = vmatprep.subr.mxu0 0.0
      %1413 = vmatpush1.msra.mxu0 0.0
      %1414 = vmatprep.subr.mxu0 0.0
      %1415 = vmatpush1.msra.mxu0 0.0
      %1416 = vmatprep.subr.mxu0 0.0
      %1417 = vmatpush1.msra.mxu0 0.0
      %1418 = vmatprep.subr.mxu0 0.0
      %1419 = vmatpush1.msra.mxu0 0.0
      %1420 = vmatprep.subr.mxu0 0.0
      %1421 = vmatpush1.msra.mxu0 0.0
      %1422 = vmatprep.subr.mxu0 0.0
      %1423 = vmatpush1.msra.mxu0 0.0
      %1424 = vmatprep.subr.mxu0 0.0
      %1425 = vmatpush1.msra.mxu0 0.0
      %1426 = vmatprep.mubr.f32.mxu0 0.0
      %1427 = vmatmul.mubr.f32.gmra.mrb[0].mxu0 %v1354
      %v1428 = vpop.f32.mrb[0].mxu0
      %v1429 = vadd.f32 0.0, %v1428
      %v1430 = vpop.f32.mrb[0].mxu0
      %1431 = vmatprep.mubr.f32.mxu0 0.0
      %1432 = vmatmul.mubr.f32.gmra.mrb[0].mxu0 %v1357
      %v1433 = vpop.f32.mrb[0].mxu0
      %v1434 = vadd.f32 0.0, %v1433
      %v1435 = vpop.f32.mrb[0].mxu0
      %1436 = vdwg.mxu0
      %1437 = vrot.lane.b32.xlu0 %v1254, 64
      %v1438 = vpop.permute.xlu0 %1437
      %1439 = vrot.lane.b32.xlu0 %v1259, 64
      %v1440 = vpop.permute.xlu0 %1439
      %v1443 = vmul.f32 %v1429, %v1438
      %v1444 = vmul.f32 %v1434, %v1440
      %v1445 = vld [vmem:[%s8] sm:$0xff]
      %v1446 = vld [vmem:[%s8 + $0x8] sm:$0xff]
      %v1447 = vld [vmem:[%s8 + $0x10] sm:$0xff]
      %v1448 = vld [vmem:[%s8 + $0x18] sm:$0xff]
      %v1449 = vld [vmem:[%s9] sm:$0x1]
      %v1451 = vlaneseq
      %v1452 = vshrl.u32 %v1451, 7
      %v1453 = vsub.s32 0, %v1452
      %v1454 = vrot.slane %v1449, %v1453
      %v1457 = vsel %vm809, %v1443, 0
      %v1460 = vsel %vm809, %v1444, 0
      %1462 = vmatprep.subr.mxu0 0.0
      %1463 = vmatpush1.msra.mxu0 %v1445
      %1464 = vmatprep.subr.mxu0 0.0
      %1465 = vmatpush1.msra.mxu0 %v1446
      %1466 = vmatprep.subr.mxu0 0.0
      %1467 = vmatpush1.msra.mxu0 %v1447
      %1468 = vmatprep.subr.mxu0 0.0
      %1469 = vmatpush1.msra.mxu0 %v1448
      %1470 = vmatprep.subr.mxu0 0.0
      %1471 = vmatpush1.msra.mxu0 0.0
      %1472 = vmatprep.subr.mxu0 0.0
      %1473 = vmatpush1.msra.mxu0 0.0
      %1474 = vmatprep.subr.mxu0 0.0
      %1475 = vmatpush1.msra.mxu0 0.0
      %1476 = vmatprep.subr.mxu0 0.0
      %1477 = vmatpush1.msra.mxu0 0.0
      %1478 = vmatprep.subr.mxu0 0.0
      %1479 = vmatpush1.msra.mxu0 0.0
      %1480 = vmatprep.subr.mxu0 0.0
      %1481 = vmatpush1.msra.mxu0 0.0
      %1482 = vmatprep.subr.mxu0 0.0
      %1483 = vmatpush1.msra.mxu0 0.0
      %1484 = vmatprep.subr.mxu0 0.0
      %1485 = vmatpush1.msra.mxu0 0.0
      %1486 = vmatprep.subr.mxu0 0.0
      %1487 = vmatpush1.msra.mxu0 0.0
      %1488 = vmatprep.subr.mxu0 0.0
      %1489 = vmatpush1.msra.mxu0 0.0
      %1490 = vmatprep.subr.mxu0 0.0
      %1491 = vmatpush1.msra.mxu0 0.0
      %1492 = vmatprep.subr.mxu0 0.0
      %1493 = vmatpush1.msra.mxu0 0.0
      %1494 = vmatprep.subr.mxu0 0.0
      %1495 = vmatpush1.msra.mxu0 0.0
      %1496 = vmatprep.subr.mxu0 0.0
      %1497 = vmatpush1.msra.mxu0 0.0
      %1498 = vmatprep.subr.mxu0 0.0
      %1499 = vmatpush1.msra.mxu0 0.0
      %1500 = vmatprep.subr.mxu0 0.0
      %1501 = vmatpush1.msra.mxu0 0.0
      %1502 = vmatprep.subr.mxu0 0.0
      %1503 = vmatpush1.msra.mxu0 0.0
      %1504 = vmatprep.subr.mxu0 0.0
      %1505 = vmatpush1.msra.mxu0 0.0
      %1506 = vmatprep.subr.mxu0 0.0
      %1507 = vmatpush1.msra.mxu0 0.0
      %1508 = vmatprep.subr.mxu0 0.0
      %1509 = vmatpush1.msra.mxu0 0.0
      %1510 = vmatprep.subr.mxu0 0.0
      %1511 = vmatpush1.msra.mxu0 0.0
      %1512 = vmatprep.subr.mxu0 0.0
      %1513 = vmatpush1.msra.mxu0 0.0
      %1514 = vmatprep.subr.mxu0 0.0
      %1515 = vmatpush1.msra.mxu0 0.0
      %1516 = vmatprep.subr.mxu0 0.0
      %1517 = vmatpush1.msra.mxu0 0.0
      %1518 = vmatprep.subr.mxu0 0.0
      %1519 = vmatpush1.msra.mxu0 0.0
      %1520 = vmatprep.subr.mxu0 0.0
      %1521 = vmatpush1.msra.mxu0 0.0
      %1522 = vmatprep.subr.mxu0 0.0
      %1523 = vmatpush1.msra.mxu0 0.0
      %1524 = vmatprep.subr.mxu0 0.0
      %1525 = vmatpush1.msra.mxu0 0.0
      %1526 = vmatprep.mubr.f32.mxu0 0.0
      %1527 = vmatmul.mubr.f32.gmra.mrb[0].mxu0 %v1457
      %v1528 = vpop.f32.mrb[0].mxu0
      %v1529 = vadd.f32 %v1454, %v1528
      %v1530 = vpop.f32.mrb[0].mxu0
      %1531 = vmatprep.mubr.f32.mxu0 0.0
      %1532 = vmatmul.mubr.f32.gmra.mrb[0].mxu0 %v1460
      %v1533 = vpop.f32.mrb[0].mxu0
      %v1534 = vadd.f32 %v1454, %v1533
      %v1535 = vpop.f32.mrb[0].mxu0
      %1536 = vdwg.mxu0
      %v1538 = vsel %vm809, %v1529, 0
      %v1541 = vsel %vm809, %v1534, 0
      %1543 = vmatprep.subr.mxu0 0.0
      %1544 = vmatpush1.msra.mxu0 %v704
      %1545 = vmatprep.subr.mxu0 0.0
      %1546 = vmatpush1.msra.mxu0 %v705
      %1547 = vmatprep.subr.mxu0 0.0
      %1548 = vmatpush1.msra.mxu0 %v706
      %1549 = vmatprep.subr.mxu0 0.0
      %1550 = vmatpush1.msra.mxu0 %v707
      %1551 = vmatprep.subr.mxu0 0.0
      %1552 = vmatpush1.msra.mxu0 0.0
      %1553 = vmatprep.subr.mxu0 0.0
      %1554 = vmatpush1.msra.mxu0 0.0
      %1555 = vmatprep.subr.mxu0 0.0
      %1556 = vmatpush1.msra.mxu0 0.0
      %1557 = vmatprep.subr.mxu0 0.0
      %1558 = vmatpush1.msra.mxu0 0.0
      %1559 = vmatprep.subr.mxu0 0.0
      %1560 = vmatpush1.msra.mxu0 0.0
      %1561 = vmatprep.subr.mxu0 0.0
      %1562 = vmatpush1.msra.mxu0 0.0
      %1563 = vmatprep.subr.mxu0 0.0
      %1564 = vmatpush1.msra.mxu0 0.0
      %1565 = vmatprep.subr.mxu0 0.0
      %1566 = vmatpush1.msra.mxu0 0.0
      %1567 = vmatprep.subr.mxu0 0.0
      %1568 = vmatpush1.msra.mxu0 0.0
      %1569 = vmatprep.subr.mxu0 0.0
      %1570 = vmatpush1.msra.mxu0 0.0
      %1571 = vmatprep.subr.mxu0 0.0
      %1572 = vmatpush1.msra.mxu0 0.0
      %1573 = vmatprep.subr.mxu0 0.0
      %1574 = vmatpush1.msra.mxu0 0.0
      %1575 = vmatprep.subr.mxu0 0.0
      %1576 = vmatpush1.msra.mxu0 0.0
      %1577 = vmatprep.subr.mxu0 0.0
      %1578 = vmatpush1.msra.mxu0 0.0
      %1579 = vmatprep.subr.mxu0 0.0
      %1580 = vmatpush1.msra.mxu0 0.0
      %1581 = vmatprep.subr.mxu0 0.0
      %1582 = vmatpush1.msra.mxu0 0.0
      %1583 = vmatprep.subr.mxu0 0.0
      %1584 = vmatpush1.msra.mxu0 0.0
      %1585 = vmatprep.subr.mxu0 0.0
      %1586 = vmatpush1.msra.mxu0 0.0
      %1587 = vmatprep.subr.mxu0 0.0
      %1588 = vmatpush1.msra.mxu0 0.0
      %1589 = vmatprep.subr.mxu0 0.0
      %1590 = vmatpush1.msra.mxu0 0.0
      %1591 = vmatprep.subr.mxu0 0.0
      %1592 = vmatpush1.msra.mxu0 0.0
      %1593 = vmatprep.subr.mxu0 0.0
      %1594 = vmatpush1.msra.mxu0 0.0
      %1595 = vmatprep.subr.mxu0 0.0
      %1596 = vmatpush1.msra.mxu0 0.0
      %1597 = vmatprep.subr.mxu0 0.0
      %1598 = vmatpush1.msra.mxu0 0.0
      %1599 = vmatprep.subr.mxu0 0.0
      %1600 = vmatpush1.msra.mxu0 0.0
      %1601 = vmatprep.subr.mxu0 0.0
      %1602 = vmatpush1.msra.mxu0 0.0
      %1603 = vmatprep.subr.mxu0 0.0
      %1604 = vmatpush1.msra.mxu0 0.0
      %1605 = vmatprep.subr.mxu0 0.0
      %1606 = vmatpush1.msra.mxu0 0.0
      %1607 = vmatprep.mubr.f32.mxu0 0.0
      %1608 = vmatmul.mubr.f32.gmra.mrb[0].mxu0 %v1538
      %v1609 = vpop.f32.mrb[0].mxu0
      %v1610 = vadd.f32 0.0, %v1609
      %v1611 = vpop.f32.mrb[0].mxu0
      %1612 = vmatprep.mubr.f32.mxu0 0.0
      %1613 = vmatmul.mubr.f32.gmra.mrb[0].mxu0 %v1541
      %v1614 = vpop.f32.mrb[0].mxu0
      %v1615 = vadd.f32 0.0, %v1614
      %v1616 = vpop.f32.mrb[0].mxu0
      %1617 = vdwg.mxu0
      %v1618 = vmul.f32 %v1610, 0.125
      %v1619 = vmul.f32 %v1615, 0.125
      %v1621 = vsel %vm719, %v1618, 0
      %v1624 = vsel %vm719, %v1619, 0
      %1626 = vmatprep.subr.mxu0 0.0
      %1627 = vmatpush1.msra.mxu0 %v1360
      %1628 = vmatprep.subr.mxu0 0.0
      %1629 = vmatpush1.msra.mxu0 0.0
      %1630 = vmatprep.subr.mxu0 0.0
      %1631 = vmatpush1.msra.mxu0 0.0
      %1632 = vmatprep.subr.mxu0 0.0
      %1633 = vmatpush1.msra.mxu0 0.0
      %1634 = vmatprep.subr.mxu0 0.0
      %1635 = vmatpush1.msra.mxu0 0.0
      %1636 = vmatprep.subr.mxu0 0.0
      %1637 = vmatpush1.msra.mxu0 0.0
      %1638 = vmatprep.subr.mxu0 0.0
      %1639 = vmatpush1.msra.mxu0 0.0
      %1640 = vmatprep.subr.mxu0 0.0
      %1641 = vmatpush1.msra.mxu0 0.0
      %1642 = vmatprep.subr.mxu0 0.0
      %1643 = vmatpush1.msra.mxu0 0.0
      %1644 = vmatprep.subr.mxu0 0.0
      %1645 = vmatpush1.msra.mxu0 0.0
      %1646 = vmatprep.subr.mxu0 0.0
      %1647 = vmatpush1.msra.mxu0 0.0
      %1648 = vmatprep.subr.mxu0 0.0
      %1649 = vmatpush1.msra.mxu0 0.0
      %1650 = vmatprep.subr.mxu0 0.0
      %1651 = vmatpush1.msra.mxu0 0.0
      %1652 = vmatprep.subr.mxu0 0.0
      %1653 = vmatpush1.msra.mxu0 0.0
      %1654 = vmatprep.subr.mxu0 0.0
      %1655 = vmatpush1.msra.mxu0 0.0
      %1656 = vmatprep.subr.mxu0 0.0
      %1657 = vmatpush1.msra.mxu0 0.0
      %1658 = vmatprep.subr.mxu0 0.0
      %1659 = vmatpush1.msra.mxu0 0.0
      %1660 = vmatprep.subr.mxu0 0.0
      %1661 = vmatpush1.msra.mxu0 0.0
      %1662 = vmatprep.subr.mxu0 0.0
      %1663 = vmatpush1.msra.mxu0 0.0
      %1664 = vmatprep.subr.mxu0 0.0
      %1665 = vmatpush1.msra.mxu0 0.0
      %1666 = vmatprep.subr.mxu0 0.0
      %1667 = vmatpush1.msra.mxu0 0.0
      %1668 = vmatprep.subr.mxu0 0.0
      %1669 = vmatpush1.msra.mxu0 0.0
      %1670 = vmatprep.subr.mxu0 0.0
      %1671 = vmatpush1.msra.mxu0 0.0
      %1672 = vmatprep.subr.mxu0 0.0
      %1673 = vmatpush1.msra.mxu0 0.0
      %1674 = vmatprep.subr.mxu0 0.0
      %1675 = vmatpush1.msra.mxu0 0.0
      %1676 = vmatprep.subr.mxu0 0.0
      %1677 = vmatpush1.msra.mxu0 0.0
      %1678 = vmatprep.subr.mxu0 0.0
      %1679 = vmatpush1.msra.mxu0 0.0
      %1680 = vmatprep.subr.mxu0 0.0
      %1681 = vmatpush1.msra.mxu0 0.0
      %1682 = vmatprep.subr.mxu0 0.0
      %1683 = vmatpush1.msra.mxu0 0.0
      %1684 = vmatprep.subr.mxu0 0.0
      %1685 = vmatpush1.msra.mxu0 0.0
      %1686 = vmatprep.subr.mxu0 0.0
      %1687 = vmatpush1.msra.mxu0 0.0
      %1688 = vmatprep.subr.mxu0 0.0
      %1689 = vmatpush1.msra.mxu0 0.0
      %1690 = vmatprep.mubr.f32.mxu0 0.0
      %1691 = vmatmul.mubr.f32.gmra.mrb[0].mxu0 %v1621
      %v1692 = vpop.f32.mrb[0].mxu0
      %v1693 = vadd.f32 0.0, %v1692
      %v1694 = vpop.f32.mrb[0].mxu0
      %1695 = vmatprep.mubr.f32.mxu0 0.0
      %1696 = vmatmul.mubr.f32.gmra.mrb[0].mxu0 %v1624
      %v1697 = vpop.f32.mrb[0].mxu0
      %v1698 = vadd.f32 0.0, %v1697
      %v1699 = vpop.f32.mrb[0].mxu0
      %1700 = vdwg.mxu0
      %v1701 = vsub.f32 %v1529, %v1693
      %v1702 = vsub.f32 %v1534, %v1698
      %v1703 = vmul.f32 %v1701, %v1701
      %v1704 = vmul.f32 %v1702, %v1702
      %v1706 = vsel %vm809, %v1703, 0
      %v1709 = vsel %vm809, %v1704, 0
      %1711 = vmatprep.subr.mxu0 0.0
      %1712 = vmatpush1.msra.mxu0 %v704
      %1713 = vmatprep.subr.mxu0 0.0
      %1714 = vmatpush1.msra.mxu0 %v705
      %1715 = vmatprep.subr.mxu0 0.0
      %1716 = vmatpush1.msra.mxu0 %v706
      %1717 = vmatprep.subr.mxu0 0.0
      %1718 = vmatpush1.msra.mxu0 %v707
      %1719 = vmatprep.subr.mxu0 0.0
      %1720 = vmatpush1.msra.mxu0 0.0
      %1721 = vmatprep.subr.mxu0 0.0
      %1722 = vmatpush1.msra.mxu0 0.0
      %1723 = vmatprep.subr.mxu0 0.0
      %1724 = vmatpush1.msra.mxu0 0.0
      %1725 = vmatprep.subr.mxu0 0.0
      %1726 = vmatpush1.msra.mxu0 0.0
      %1727 = vmatprep.subr.mxu0 0.0
      %1728 = vmatpush1.msra.mxu0 0.0
      %1729 = vmatprep.subr.mxu0 0.0
      %1730 = vmatpush1.msra.mxu0 0.0
      %1731 = vmatprep.subr.mxu0 0.0
      %1732 = vmatpush1.msra.mxu0 0.0
      %1733 = vmatprep.subr.mxu0 0.0
      %1734 = vmatpush1.msra.mxu0 0.0
      %1735 = vmatprep.subr.mxu0 0.0
      %1736 = vmatpush1.msra.mxu0 0.0
      %1737 = vmatprep.subr.mxu0 0.0
      %1738 = vmatpush1.msra.mxu0 0.0
      %1739 = vmatprep.subr.mxu0 0.0
      %1740 = vmatpush1.msra.mxu0 0.0
      %1741 = vmatprep.subr.mxu0 0.0
      %1742 = vmatpush1.msra.mxu0 0.0
      %1743 = vmatprep.subr.mxu0 0.0
      %1744 = vmatpush1.msra.mxu0 0.0
      %1745 = vmatprep.subr.mxu0 0.0
      %1746 = vmatpush1.msra.mxu0 0.0
      %1747 = vmatprep.subr.mxu0 0.0
      %1748 = vmatpush1.msra.mxu0 0.0
      %1749 = vmatprep.subr.mxu0 0.0
      %1750 = vmatpush1.msra.mxu0 0.0
      %1751 = vmatprep.subr.mxu0 0.0
      %1752 = vmatpush1.msra.mxu0 0.0
      %1753 = vmatprep.subr.mxu0 0.0
      %1754 = vmatpush1.msra.mxu0 0.0
      %1755 = vmatprep.subr.mxu0 0.0
      %1756 = vmatpush1.msra.mxu0 0.0
      %1757 = vmatprep.subr.mxu0 0.0
      %1758 = vmatpush1.msra.mxu0 0.0
      %1759 = vmatprep.subr.mxu0 0.0
      %1760 = vmatpush1.msra.mxu0 0.0
      %1761 = vmatprep.subr.mxu0 0.0
      %1762 = vmatpush1.msra.mxu0 0.0
      %1763 = vmatprep.subr.mxu0 0.0
      %1764 = vmatpush1.msra.mxu0 0.0
      %1765 = vmatprep.subr.mxu0 0.0
      %1766 = vmatpush1.msra.mxu0 0.0
      %1767 = vmatprep.subr.mxu0 0.0
      %1768 = vmatpush1.msra.mxu0 0.0
      %1769 = vmatprep.subr.mxu0 0.0
      %1770 = vmatpush1.msra.mxu0 0.0
      %1771 = vmatprep.subr.mxu0 0.0
      %1772 = vmatpush1.msra.mxu0 0.0
      %1773 = vmatprep.subr.mxu0 0.0
      %1774 = vmatpush1.msra.mxu0 0.0
      %1775 = vmatprep.mubr.f32.mxu0 0.0
      %1776 = vmatmul.mubr.f32.gmra.mrb[0].mxu0 %v1706
      %v1777 = vpop.f32.mrb[0].mxu0
      %v1778 = vadd.f32 0.0, %v1777
      %v1779 = vpop.f32.mrb[0].mxu0
      %1780 = vmatprep.mubr.f32.mxu0 0.0
      %1781 = vmatmul.mubr.f32.gmra.mrb[0].mxu0 %v1709
      %v1782 = vpop.f32.mrb[0].mxu0
      %v1783 = vadd.f32 0.0, %v1782
      %v1784 = vpop.f32.mrb[0].mxu0
      %1785 = vdwg.mxu0
      %v1786 = vmul.f32 %v1778, 0.125
      %v1787 = vmul.f32 %v1783, 0.125
      %v1789 = vsel %vm719, %v1786, 0
      %v1792 = vsel %vm719, %v1787, 0
      %1794 = vmatprep.subr.mxu0 0.0
      %1795 = vmatpush1.msra.mxu0 %v1360
      %1796 = vmatprep.subr.mxu0 0.0
      %1797 = vmatpush1.msra.mxu0 0.0
      %1798 = vmatprep.subr.mxu0 0.0
      %1799 = vmatpush1.msra.mxu0 0.0
      %1800 = vmatprep.subr.mxu0 0.0
      %1801 = vmatpush1.msra.mxu0 0.0
      %1802 = vmatprep.subr.mxu0 0.0
      %1803 = vmatpush1.msra.mxu0 0.0
      %1804 = vmatprep.subr.mxu0 0.0
      %1805 = vmatpush1.msra.mxu0 0.0
      %1806 = vmatprep.subr.mxu0 0.0
      %1807 = vmatpush1.msra.mxu0 0.0
      %1808 = vmatprep.subr.mxu0 0.0
      %1809 = vmatpush1.msra.mxu0 0.0
      %1810 = vmatprep.subr.mxu0 0.0
      %1811 = vmatpush1.msra.mxu0 0.0
      %1812 = vmatprep.subr.mxu0 0.0
      %1813 = vmatpush1.msra.mxu0 0.0
      %1814 = vmatprep.subr.mxu0 0.0
      %1815 = vmatpush1.msra.mxu0 0.0
      %1816 = vmatprep.subr.mxu0 0.0
      %1817 = vmatpush1.msra.mxu0 0.0
      %1818 = vmatprep.subr.mxu0 0.0
      %1819 = vmatpush1.msra.mxu0 0.0
      %1820 = vmatprep.subr.mxu0 0.0
      %1821 = vmatpush1.msra.mxu0 0.0
      %1822 = vmatprep.subr.mxu0 0.0
      %1823 = vmatpush1.msra.mxu0 0.0
      %1824 = vmatprep.subr.mxu0 0.0
      %1825 = vmatpush1.msra.mxu0 0.0
      %1826 = vmatprep.subr.mxu0 0.0
      %1827 = vmatpush1.msra.mxu0 0.0
      %1828 = vmatprep.subr.mxu0 0.0
      %1829 = vmatpush1.msra.mxu0 0.0
      %1830 = vmatprep.subr.mxu0 0.0
      %1831 = vmatpush1.msra.mxu0 0.0
      %1832 = vmatprep.subr.mxu0 0.0
      %1833 = vmatpush1.msra.mxu0 0.0
      %1834 = vmatprep.subr.mxu0 0.0
      %1835 = vmatpush1.msra.mxu0 0.0
      %1836 = vmatprep.subr.mxu0 0.0
      %1837 = vmatpush1.msra.mxu0 0.0
      %1838 = vmatprep.subr.mxu0 0.0
      %1839 = vmatpush1.msra.mxu0 0.0
      %1840 = vmatprep.subr.mxu0 0.0
      %1841 = vmatpush1.msra.mxu0 0.0
      %1842 = vmatprep.subr.mxu0 0.0
      %1843 = vmatpush1.msra.mxu0 0.0
      %1844 = vmatprep.subr.mxu0 0.0
      %1845 = vmatpush1.msra.mxu0 0.0
      %1846 = vmatprep.subr.mxu0 0.0
      %1847 = vmatpush1.msra.mxu0 0.0
      %1848 = vmatprep.subr.mxu0 0.0
      %1849 = vmatpush1.msra.mxu0 0.0
      %1850 = vmatprep.subr.mxu0 0.0
      %1851 = vmatpush1.msra.mxu0 0.0
      %1852 = vmatprep.subr.mxu0 0.0
      %1853 = vmatpush1.msra.mxu0 0.0
      %1854 = vmatprep.subr.mxu0 0.0
      %1855 = vmatpush1.msra.mxu0 0.0
      %1856 = vmatprep.subr.mxu0 0.0
      %1857 = vmatpush1.msra.mxu0 0.0
      %1858 = vmatprep.mubr.f32.mxu0 0.0
      %1859 = vmatmul.mubr.f32.gmra.mrb[0].mxu0 %v1789
      %v1860 = vpop.f32.mrb[0].mxu0
      %v1861 = vadd.f32 1e-05, %v1860
      %v1862 = vpop.f32.mrb[0].mxu0
      %1863 = vmatprep.mubr.f32.mxu0 0.0
      %1864 = vmatmul.mubr.f32.gmra.mrb[0].mxu0 %v1792
      %v1865 = vpop.f32.mrb[0].mxu0
      %v1866 = vadd.f32 1e-05, %v1865
      %v1867 = vpop.f32.mrb[0].mxu0
      %1868 = vdwg.mxu0
      %v1869 = vrsqrt.pop %v1861
      %v1870 = vrsqrt.pop %v1866
      %v1871 = vmul.f32 %v1701, %v1869
      %v1872 = vmul.f32 %v1702, %v1870
      %v1873 = vld [vmem:[%s10] sm:$0x1]
      %v1875 = vlaneseq
      %v1876 = vshrl.u32 %v1875, 7
      %v1877 = vsub.s32 0, %v1876
      %v1878 = vrot.slane %v1873, %v1877
      %v1880 = vmul.f32 %v1871, %v1878
      %v1881 = vmul.f32 %v1872, %v1878
      %v1882 = vld [vmem:[%s11] sm:$0x1]
      %v1884 = vlaneseq
      %v1885 = vshrl.u32 %v1884, 7
      %v1886 = vsub.s32 0, %v1885
      %v1887 = vrot.slane %v1882, %v1886
      %v1889 = vadd.f32 %v1880, %v1887
      %v1890 = vadd.f32 %v1881, %v1887
      %v1891 = vld [vmem:[%s16] sm:$0xff]
      %v1892 = vld [vmem:[%s16 + $0x8] sm:$0xff]
      %v1893 = vld [vmem:[%s16 + $0x10] sm:$0xff]
      %v1894 = vld [vmem:[%s16 + $0x18] sm:$0xff]
      %v1895 = vld [vmem:[%s16 + $0x20] sm:$0xff]
      %v1896 = vld [vmem:[%s16 + $0x28] sm:$0xff]
      %v1897 = vld [vmem:[%s16 + $0x30] sm:$0xff]
      %v1898 = vld [vmem:[%s16 + $0x38] sm:$0xff]
      %v1900 = vsel %vm809, 0.0, 0
      %1902 = vmatprep.subr.mxu0 0.0
      %1903 = vmatpush1.msra.mxu0 %v1895
      %1904 = vmatprep.subr.mxu0 0.0
      %1905 = vmatpush1.msra.mxu0 %v1896
      %1906 = vmatprep.subr.mxu0 0.0
      %1907 = vmatpush1.msra.mxu0 %v1897
      %1908 = vmatprep.subr.mxu0 0.0
      %1909 = vmatpush1.msra.mxu0 %v1898
      %1910 = vmatprep.subr.mxu0 0.0
      %1911 = vmatpush1.msra.mxu0 0.0
      %1912 = vmatprep.subr.mxu0 0.0
      %1913 = vmatpush1.msra.mxu0 0.0
      %1914 = vmatprep.subr.mxu0 0.0
      %1915 = vmatpush1.msra.mxu0 0.0
      %1916 = vmatprep.subr.mxu0 0.0
      %1917 = vmatpush1.msra.mxu0 0.0
      %1918 = vmatprep.subr.mxu0 0.0
      %1919 = vmatpush1.msra.mxu0 0.0
      %1920 = vmatprep.subr.mxu0 0.0
      %1921 = vmatpush1.msra.mxu0 0.0
      %1922 = vmatprep.subr.mxu0 0.0
      %1923 = vmatpush1.msra.mxu0 0.0
      %1924 = vmatprep.subr.mxu0 0.0
      %1925 = vmatpush1.msra.mxu0 0.0
      %1926 = vmatprep.subr.mxu0 0.0
      %1927 = vmatpush1.msra.mxu0 0.0
      %1928 = vmatprep.subr.mxu0 0.0
      %1929 = vmatpush1.msra.mxu0 0.0
      %1930 = vmatprep.subr.mxu0 0.0
      %1931 = vmatpush1.msra.mxu0 0.0
      %1932 = vmatprep.subr.mxu0 0.0
      %1933 = vmatpush1.msra.mxu0 0.0
      %1934 = vmatprep.subr.mxu0 0.0
      %1935 = vmatpush1.msra.mxu0 0.0
      %1936 = vmatprep.subr.mxu0 0.0
      %1937 = vmatpush1.msra.mxu0 0.0
      %1938 = vmatprep.subr.mxu0 0.0
      %1939 = vmatpush1.msra.mxu0 0.0
      %1940 = vmatprep.subr.mxu0 0.0
      %1941 = vmatpush1.msra.mxu0 0.0
      %1942 = vmatprep.subr.mxu0 0.0
      %1943 = vmatpush1.msra.mxu0 0.0
      %1944 = vmatprep.subr.mxu0 0.0
      %1945 = vmatpush1.msra.mxu0 0.0
      %1946 = vmatprep.subr.mxu0 0.0
      %1947 = vmatpush1.msra.mxu0 0.0
      %1948 = vmatprep.subr.mxu0 0.0
      %1949 = vmatpush1.msra.mxu0 0.0
      %1950 = vmatprep.subr.mxu0 0.0
      %1951 = vmatpush1.msra.mxu0 0.0
      %1952 = vmatprep.subr.mxu0 0.0
      %1953 = vmatpush1.msra.mxu0 0.0
      %1954 = vmatprep.subr.mxu0 0.0
      %1955 = vmatpush1.msra.mxu0 0.0
      %1956 = vmatprep.subr.mxu0 0.0
      %1957 = vmatpush1.msra.mxu0 0.0
      %1958 = vmatprep.subr.mxu0 0.0
      %1959 = vmatpush1.msra.mxu0 0.0
      %1960 = vmatprep.subr.mxu0 0.0
      %1961 = vmatpush1.msra.mxu0 0.0
      %1962 = vmatprep.subr.mxu0 0.0
      %1963 = vmatpush1.msra.mxu0 0.0
      %1964 = vmatprep.subr.mxu0 0.0
      %1965 = vmatpush1.msra.mxu0 0.0
      %1966 = vmatprep.mubr.f32.mxu0 0.0
      %1967 = vmatmul.mubr.f32.gmra.mrb[0].mxu0 %v1900
      %v1968 = vpop.f32.mrb[0].mxu0
      %v1969 = vadd.f32 0.0, %v1968
      %v1970 = vpop.f32.mrb[0].mxu0
      %1971 = vmatprep.mubr.f32.mxu0 0.0
      %1972 = vmatmul.mubr.f32.gmra.mrb[0].mxu0 %v1900
      %v1973 = vpop.f32.mrb[0].mxu0
      %v1974 = vadd.f32 0.0, %v1973
      %v1975 = vpop.f32.mrb[0].mxu0
      %1976 = vdwg.mxu0
      %v1978 = vsel %vm809, %v1889, 0
      %v1981 = vsel %vm809, %v1890, 0
      %1983 = vmatprep.subr.mxu0 0.0
      %1984 = vmatpush1.msra.mxu0 %v1891
      %1985 = vmatprep.subr.mxu0 0.0
      %1986 = vmatpush1.msra.mxu0 %v1892
      %1987 = vmatprep.subr.mxu0 0.0
      %1988 = vmatpush1.msra.mxu0 %v1893
      %1989 = vmatprep.subr.mxu0 0.0
      %1990 = vmatpush1.msra.mxu0 %v1894
      %1991 = vmatprep.subr.mxu0 0.0
      %1992 = vmatpush1.msra.mxu0 0.0
      %1993 = vmatprep.subr.mxu0 0.0
      %1994 = vmatpush1.msra.mxu0 0.0
      %1995 = vmatprep.subr.mxu0 0.0
      %1996 = vmatpush1.msra.mxu0 0.0
      %1997 = vmatprep.subr.mxu0 0.0
      %1998 = vmatpush1.msra.mxu0 0.0
      %1999 = vmatprep.subr.mxu0 0.0
      %2000 = vmatpush1.msra.mxu0 0.0
      %2001 = vmatprep.subr.mxu0 0.0
      %2002 = vmatpush1.msra.mxu0 0.0
      %2003 = vmatprep.subr.mxu0 0.0
      %2004 = vmatpush1.msra.mxu0 0.0
      %2005 = vmatprep.subr.mxu0 0.0
      %2006 = vmatpush1.msra.mxu0 0.0
      %2007 = vmatprep.subr.mxu0 0.0
      %2008 = vmatpush1.msra.mxu0 0.0
      %2009 = vmatprep.subr.mxu0 0.0
      %2010 = vmatpush1.msra.mxu0 0.0
      %2011 = vmatprep.subr.mxu0 0.0
      %2012 = vmatpush1.msra.mxu0 0.0
      %2013 = vmatprep.subr.mxu0 0.0
      %2014 = vmatpush1.msra.mxu0 0.0
      %2015 = vmatprep.subr.mxu0 0.0
      %2016 = vmatpush1.msra.mxu0 0.0
      %2017 = vmatprep.subr.mxu0 0.0
      %2018 = vmatpush1.msra.mxu0 0.0
      %2019 = vmatprep.subr.mxu0 0.0
      %2020 = vmatpush1.msra.mxu0 0.0
      %2021 = vmatprep.subr.mxu0 0.0
      %2022 = vmatpush1.msra.mxu0 0.0
      %2023 = vmatprep.subr.mxu0 0.0
      %2024 = vmatpush1.msra.mxu0 0.0
      %2025 = vmatprep.subr.mxu0 0.0
      %2026 = vmatpush1.msra.mxu0 0.0
      %2027 = vmatprep.subr.mxu0 0.0
      %2028 = vmatpush1.msra.mxu0 0.0
      %2029 = vmatprep.subr.mxu0 0.0
      %2030 = vmatpush1.msra.mxu0 0.0
      %2031 = vmatprep.subr.mxu0 0.0
      %2032 = vmatpush1.msra.mxu0 0.0
      %2033 = vmatprep.subr.mxu0 0.0
      %2034 = vmatpush1.msra.mxu0 0.0
      %2035 = vmatprep.subr.mxu0 0.0
      %2036 = vmatpush1.msra.mxu0 0.0
      %2037 = vmatprep.subr.mxu0 0.0
      %2038 = vmatpush1.msra.mxu0 0.0
      %2039 = vmatprep.subr.mxu0 0.0
      %2040 = vmatpush1.msra.mxu0 0.0
      %2041 = vmatprep.subr.mxu0 0.0
      %2042 = vmatpush1.msra.mxu0 0.0
      %2043 = vmatprep.subr.mxu0 0.0
      %2044 = vmatpush1.msra.mxu0 0.0
      %2045 = vmatprep.subr.mxu0 0.0
      %2046 = vmatpush1.msra.mxu0 0.0
      %2047 = vmatprep.mubr.f32.mxu0 0.0
      %2048 = vmatmul.mubr.f32.gmra.mrb[0].mxu0 %v1978
      %v2049 = vpop.f32.mrb[0].mxu0
      %v2050 = vadd.f32 %v1969, %v2049
      %v2051 = vpop.f32.mrb[0].mxu0
      %2052 = vmatprep.mubr.f32.mxu0 0.0
      %2053 = vmatmul.mubr.f32.gmra.mrb[0].mxu0 %v1981
      %v2054 = vpop.f32.mrb[0].mxu0
      %v2055 = vadd.f32 %v1974, %v2054
      %v2056 = vpop.f32.mrb[0].mxu0
      %2057 = vdwg.mxu0
      %v2058 = vld [vmem:[%s17] sm:$0x1]
      %v2060 = vlaneseq
      %v2061 = vshrl.u32 %v2060, 7
      %v2062 = vsub.s32 0, %v2061
      %v2063 = vrot.slane %v2058, %v2062
      %v2065 = vadd.f32 %v2050, %v2063
      %v2066 = vadd.f32 %v2055, %v2063
      %v2067 = vmax.f32 %v2065, 0.0
      %v2068 = vmax.f32 %v2066, 0.0
      %v2069 = vld [vmem:[%s14] sm:$0xff]
      %v2070 = vld [vmem:[%s14 + $0x8] sm:$0xff]
      %v2071 = vld [vmem:[%s14 + $0x10] sm:$0xff]
      %v2072 = vld [vmem:[%s14 + $0x18] sm:$0xff]
      %v2073 = vld [vmem:[%s15] sm:$0x1]
      %v2075 = vlaneseq
      %v2076 = vshrl.u32 %v2075, 7
      %v2077 = vsub.s32 0, %v2076
      %v2078 = vrot.slane %v2073, %v2077
      %2080 = vmatprep.subr.mxu0 0.0
      %2081 = vmatpush1.msra.mxu0 %v2069
      %2082 = vmatprep.subr.mxu0 0.0
      %2083 = vmatpush1.msra.mxu0 %v2070
      %2084 = vmatprep.subr.mxu0 0.0
      %2085 = vmatpush1.msra.mxu0 %v2071
      %2086 = vmatprep.subr.mxu0 0.0
      %2087 = vmatpush1.msra.mxu0 %v2072
      %2088 = vmatprep.subr.mxu0 0.0
      %2089 = vmatpush1.msra.mxu0 0.0
      %2090 = vmatprep.subr.mxu0 0.0
      %2091 = vmatpush1.msra.mxu0 0.0
      %2092 = vmatprep.subr.mxu0 0.0
      %2093 = vmatpush1.msra.mxu0 0.0
      %2094 = vmatprep.subr.mxu0 0.0
      %2095 = vmatpush1.msra.mxu0 0.0
      %2096 = vmatprep.subr.mxu0 0.0
      %2097 = vmatpush1.msra.mxu0 0.0
      %2098 = vmatprep.subr.mxu0 0.0
      %2099 = vmatpush1.msra.mxu0 0.0
      %2100 = vmatprep.subr.mxu0 0.0
      %2101 = vmatpush1.msra.mxu0 0.0
      %2102 = vmatprep.subr.mxu0 0.0
      %2103 = vmatpush1.msra.mxu0 0.0
      %2104 = vmatprep.subr.mxu0 0.0
      %2105 = vmatpush1.msra.mxu0 0.0
      %2106 = vmatprep.subr.mxu0 0.0
      %2107 = vmatpush1.msra.mxu0 0.0
      %2108 = vmatprep.subr.mxu0 0.0
      %2109 = vmatpush1.msra.mxu0 0.0
      %2110 = vmatprep.subr.mxu0 0.0
      %2111 = vmatpush1.msra.mxu0 0.0
      %2112 = vmatprep.subr.mxu0 0.0
      %2113 = vmatpush1.msra.mxu0 0.0
      %2114 = vmatprep.subr.mxu0 0.0
      %2115 = vmatpush1.msra.mxu0 0.0
      %2116 = vmatprep.subr.mxu0 0.0
      %2117 = vmatpush1.msra.mxu0 0.0
      %2118 = vmatprep.subr.mxu0 0.0
      %2119 = vmatpush1.msra.mxu0 0.0
      %2120 = vmatprep.subr.mxu0 0.0
      %2121 = vmatpush1.msra.mxu0 0.0
      %2122 = vmatprep.subr.mxu0 0.0
      %2123 = vmatpush1.msra.mxu0 0.0
      %2124 = vmatprep.subr.mxu0 0.0
      %2125 = vmatpush1.msra.mxu0 0.0
      %2126 = vmatprep.subr.mxu0 0.0
      %2127 = vmatpush1.msra.mxu0 0.0
      %2128 = vmatprep.subr.mxu0 0.0
      %2129 = vmatpush1.msra.mxu0 0.0
      %2130 = vmatprep.subr.mxu0 0.0
      %2131 = vmatpush1.msra.mxu0 0.0
      %2132 = vmatprep.subr.mxu0 0.0
      %2133 = vmatpush1.msra.mxu0 0.0
      %2134 = vmatprep.subr.mxu0 0.0
      %2135 = vmatpush1.msra.mxu0 0.0
      %2136 = vmatprep.subr.mxu0 0.0
      %2137 = vmatpush1.msra.mxu0 0.0
      %2138 = vmatprep.subr.mxu0 0.0
      %2139 = vmatpush1.msra.mxu0 0.0
      %2140 = vmatprep.subr.mxu0 0.0
      %2141 = vmatpush1.msra.mxu0 0.0
      %2142 = vmatprep.subr.mxu0 0.0
      %2143 = vmatpush1.msra.mxu0 0.0
      %2144 = vmatprep.mubr.f32.mxu0 0.0
      %2145 = vmatmul.mubr.f32.gmra.mrb[0].mxu0 %v1900
      %v2146 = vpop.f32.mrb[0].mxu0
      %v2147 = vadd.f32 %v2078, %v2146
      %v2148 = vpop.f32.mrb[0].mxu0
      %2149 = vmatprep.mubr.f32.mxu0 0.0
      %2150 = vmatmul.mubr.f32.gmra.mrb[0].mxu0 %v1900
      %v2151 = vpop.f32.mrb[0].mxu0
      %v2152 = vadd.f32 %v2078, %v2151
      %v2153 = vpop.f32.mrb[0].mxu0
      %2154 = vdwg.mxu0
      %v2155 = vmax.f32 %v2147, 0.0
      %v2156 = vmax.f32 %v2152, 0.0
      %s2157 = scalar_lea.vmem %s4, 32
      %v2158 = vld [vmem:[%s2157] sm:$0xff]
      %v2159 = vld [vmem:[%s2157 + $0x8] sm:$0xff]
      %v2160 = vld [vmem:[%s2157 + $0x10] sm:$0xff]
      %v2161 = vld [vmem:[%s2157 + $0x18] sm:$0xff]
      %v2163 = vsel %vm809, %v2067, 0
      %v2166 = vsel %vm809, %v2068, 0
      %2168 = vmatprep.subr.mxu0 0.0
      %2169 = vmatpush1.msra.mxu0 %v2158
      %2170 = vmatprep.subr.mxu0 0.0
      %2171 = vmatpush1.msra.mxu0 %v2159
      %2172 = vmatprep.subr.mxu0 0.0
      %2173 = vmatpush1.msra.mxu0 %v2160
      %2174 = vmatprep.subr.mxu0 0.0
      %2175 = vmatpush1.msra.mxu0 %v2161
      %2176 = vmatprep.subr.mxu0 0.0
      %2177 = vmatpush1.msra.mxu0 0.0
      %2178 = vmatprep.subr.mxu0 0.0
      %2179 = vmatpush1.msra.mxu0 0.0
      %2180 = vmatprep.subr.mxu0 0.0
      %2181 = vmatpush1.msra.mxu0 0.0
      %2182 = vmatprep.subr.mxu0 0.0
      %2183 = vmatpush1.msra.mxu0 0.0
      %2184 = vmatprep.subr.mxu0 0.0
      %2185 = vmatpush1.msra.mxu0 0.0
      %2186 = vmatprep.subr.mxu0 0.0
      %2187 = vmatpush1.msra.mxu0 0.0
      %2188 = vmatprep.subr.mxu0 0.0
      %2189 = vmatpush1.msra.mxu0 0.0
      %2190 = vmatprep.subr.mxu0 0.0
      %2191 = vmatpush1.msra.mxu0 0.0
      %2192 = vmatprep.subr.mxu0 0.0
      %2193 = vmatpush1.msra.mxu0 0.0
      %2194 = vmatprep.subr.mxu0 0.0
      %2195 = vmatpush1.msra.mxu0 0.0
      %2196 = vmatprep.subr.mxu0 0.0
      %2197 = vmatpush1.msra.mxu0 0.0
      %2198 = vmatprep.subr.mxu0 0.0
      %2199 = vmatpush1.msra.mxu0 0.0
      %2200 = vmatprep.subr.mxu0 0.0
      %2201 = vmatpush1.msra.mxu0 0.0
      %2202 = vmatprep.subr.mxu0 0.0
      %2203 = vmatpush1.msra.mxu0 0.0
      %2204 = vmatprep.subr.mxu0 0.0
      %2205 = vmatpush1.msra.mxu0 0.0
      %2206 = vmatprep.subr.mxu0 0.0
      %2207 = vmatpush1.msra.mxu0 0.0
      %2208 = vmatprep.subr.mxu0 0.0
      %2209 = vmatpush1.msra.mxu0 0.0
      %2210 = vmatprep.subr.mxu0 0.0
      %2211 = vmatpush1.msra.mxu0 0.0
      %2212 = vmatprep.subr.mxu0 0.0
      %2213 = vmatpush1.msra.mxu0 0.0
      %2214 = vmatprep.subr.mxu0 0.0
      %2215 = vmatpush1.msra.mxu0 0.0
      %2216 = vmatprep.subr.mxu0 0.0
      %2217 = vmatpush1.msra.mxu0 0.0
      %2218 = vmatprep.subr.mxu0 0.0
      %2219 = vmatpush1.msra.mxu0 0.0
      %2220 = vmatprep.subr.mxu0 0.0
      %2221 = vmatpush1.msra.mxu0 0.0
      %2222 = vmatprep.subr.mxu0 0.0
      %2223 = vmatpush1.msra.mxu0 0.0
      %2224 = vmatprep.subr.mxu0 0.0
      %2225 = vmatpush1.msra.mxu0 0.0
      %2226 = vmatprep.subr.mxu0 0.0
      %2227 = vmatpush1.msra.mxu0 0.0
      %2228 = vmatprep.subr.mxu0 0.0
      %2229 = vmatpush1.msra.mxu0 0.0
      %2230 = vmatprep.subr.mxu0 0.0
      %2231 = vmatpush1.msra.mxu0 0.0
      %2232 = vmatprep.mubr.f32.mxu0 0.0
      %2233 = vmatmul.mubr.f32.gmra.mrb[0].mxu0 %v2163
      %v2234 = vpop.f32.mrb[0].mxu0
      %v2235 = vadd.f32 0.0, %v2234
      %v2236 = vpop.f32.mrb[0].mxu0
      %2237 = vmatprep.mubr.f32.mxu0 0.0
      %2238 = vmatmul.mubr.f32.gmra.mrb[0].mxu0 %v2166
      %v2239 = vpop.f32.mrb[0].mxu0
      %v2240 = vadd.f32 0.0, %v2239
      %v2241 = vpop.f32.mrb[0].mxu0
      %2242 = vdwg.mxu0
      %2245 = vrot.lane.b32.xlu0 %v2235, 96
      %v2246 = vpop.permute.xlu0 %2245
      %2247 = vrot.lane.b32.xlu0 %v2240, 96
      %v2248 = vpop.permute.xlu0 %2247
      %2251 = vmatprep.subr.mxu0 0.0
      %2252 = vmatpush1.msra.mxu0 %v2246
      %2253 = vmatprep.subr.mxu0 0.0
      %2254 = vmatpush1.msra.mxu0 %v2248
      %2255 = vmatprep.subr.mxu0 0.0
      %2256 = vmatpush1.msra.mxu0 0.0
      %2257 = vmatprep.subr.mxu0 0.0
      %2258 = vmatpush1.msra.mxu0 0.0
      %2259 = vmatprep.subr.mxu0 0.0
      %2260 = vmatpush1.msra.mxu0 0.0
      %2261 = vmatprep.subr.mxu0 0.0
      %2262 = vmatpush1.msra.mxu0 0.0
      %2263 = vmatprep.subr.mxu0 0.0
      %2264 = vmatpush1.msra.mxu0 0.0
      %2265 = vmatprep.subr.mxu0 0.0
      %2266 = vmatpush1.msra.mxu0 0.0
      %2267 = vmatprep.subr.mxu0 0.0
      %2268 = vmatpush1.msra.mxu0 0.0
      %2269 = vmatprep.subr.mxu0 0.0
      %2270 = vmatpush1.msra.mxu0 0.0
      %2271 = vmatprep.subr.mxu0 0.0
      %2272 = vmatpush1.msra.mxu0 0.0
      %2273 = vmatprep.subr.mxu0 0.0
      %2274 = vmatpush1.msra.mxu0 0.0
      %2275 = vmatprep.subr.mxu0 0.0
      %2276 = vmatpush1.msra.mxu0 0.0
      %2277 = vmatprep.subr.mxu0 0.0
      %2278 = vmatpush1.msra.mxu0 0.0
      %2279 = vmatprep.subr.mxu0 0.0
      %2280 = vmatpush1.msra.mxu0 0.0
      %2281 = vmatprep.subr.mxu0 0.0
      %2282 = vmatpush1.msra.mxu0 0.0
      %2283 = vmatprep.subr.mxu0 0.0
      %2284 = vmatpush1.msra.mxu0 0.0
      %2285 = vmatprep.subr.mxu0 0.0
      %2286 = vmatpush1.msra.mxu0 0.0
      %2287 = vmatprep.subr.mxu0 0.0
      %2288 = vmatpush1.msra.mxu0 0.0
      %2289 = vmatprep.subr.mxu0 0.0
      %2290 = vmatpush1.msra.mxu0 0.0
      %2291 = vmatprep.subr.mxu0 0.0
      %2292 = vmatpush1.msra.mxu0 0.0
      %2293 = vmatprep.subr.mxu0 0.0
      %2294 = vmatpush1.msra.mxu0 0.0
      %2295 = vmatprep.subr.mxu0 0.0
      %2296 = vmatpush1.msra.mxu0 0.0
      %2297 = vmatprep.subr.mxu0 0.0
      %2298 = vmatpush1.msra.mxu0 0.0
      %2299 = vmatprep.subr.mxu0 0.0
      %2300 = vmatpush1.msra.mxu0 0.0
      %2301 = vmatprep.subr.mxu0 0.0
      %2302 = vmatpush1.msra.mxu0 0.0
      %2303 = vmatprep.subr.mxu0 0.0
      %2304 = vmatpush1.msra.mxu0 0.0
      %2305 = vmatprep.subr.mxu0 0.0
      %2306 = vmatpush1.msra.mxu0 0.0
      %2307 = vmatprep.subr.mxu0 0.0
      %2308 = vmatpush1.msra.mxu0 0.0
      %2309 = vmatprep.subr.mxu0 0.0
      %2310 = vmatpush1.msra.mxu0 0.0
      %2311 = vmatprep.subr.mxu0 0.0
      %2312 = vmatpush1.msra.mxu0 0.0
      %2313 = vmatprep.subr.mxu0 0.0
      %2314 = vmatpush1.msra.mxu0 0.0
      %2315 = vmatprep.mubr.f32.mxu0 0.0
      %2316 = vmatmul.mubr.f32.gmra.mrb[0].mxu0 %v906
      %v2317 = vpop.f32.mrb[0].mxu0
      %v2318 = vadd.f32 0.0, %v2317
      %v2319 = vpop.f32.mrb[0].mxu0
      %2320 = vmatprep.mubr.f32.mxu0 0.0
      %2321 = vmatmul.mubr.f32.gmra.mrb[0].mxu0 %v909
      %v2322 = vpop.f32.mrb[0].mxu0
      %v2323 = vadd.f32 0.0, %v2322
      %v2324 = vpop.f32.mrb[0].mxu0
      %2325 = vdwg.mxu0
      %2326 = vmatprep.subr.mxu0 0.0
      %2327 = vmatpush1.msra.mxu0 %v2235
      %2328 = vmatprep.subr.mxu0 0.0
      %2329 = vmatpush1.msra.mxu0 %v2240
      %2330 = vmatprep.subr.mxu0 0.0
      %2331 = vmatpush1.msra.mxu0 0.0
      %2332 = vmatprep.subr.mxu0 0.0
      %2333 = vmatpush1.msra.mxu0 0.0
      %2334 = vmatprep.subr.mxu0 0.0
      %2335 = vmatpush1.msra.mxu0 0.0
      %2336 = vmatprep.subr.mxu0 0.0
      %2337 = vmatpush1.msra.mxu0 0.0
      %2338 = vmatprep.subr.mxu0 0.0
      %2339 = vmatpush1.msra.mxu0 0.0
      %2340 = vmatprep.subr.mxu0 0.0
      %2341 = vmatpush1.msra.mxu0 0.0
      %2342 = vmatprep.subr.mxu0 0.0
      %2343 = vmatpush1.msra.mxu0 0.0
      %2344 = vmatprep.subr.mxu0 0.0
      %2345 = vmatpush1.msra.mxu0 0.0
      %2346 = vmatprep.subr.mxu0 0.0
      %2347 = vmatpush1.msra.mxu0 0.0
      %2348 = vmatprep.subr.mxu0 0.0
      %2349 = vmatpush1.msra.mxu0 0.0
      %2350 = vmatprep.subr.mxu0 0.0
      %2351 = vmatpush1.msra.mxu0 0.0
      %2352 = vmatprep.subr.mxu0 0.0
      %2353 = vmatpush1.msra.mxu0 0.0
      %2354 = vmatprep.subr.mxu0 0.0
      %2355 = vmatpush1.msra.mxu0 0.0
      %2356 = vmatprep.subr.mxu0 0.0
      %2357 = vmatpush1.msra.mxu0 0.0
      %2358 = vmatprep.subr.mxu0 0.0
      %2359 = vmatpush1.msra.mxu0 0.0
      %2360 = vmatprep.subr.mxu0 0.0
      %2361 = vmatpush1.msra.mxu0 0.0
      %2362 = vmatprep.subr.mxu0 0.0
      %2363 = vmatpush1.msra.mxu0 0.0
      %2364 = vmatprep.subr.mxu0 0.0
      %2365 = vmatpush1.msra.mxu0 0.0
      %2366 = vmatprep.subr.mxu0 0.0
      %2367 = vmatpush1.msra.mxu0 0.0
      %2368 = vmatprep.subr.mxu0 0.0
      %2369 = vmatpush1.msra.mxu0 0.0
      %2370 = vmatprep.subr.mxu0 0.0
      %2371 = vmatpush1.msra.mxu0 0.0
      %2372 = vmatprep.subr.mxu0 0.0
      %2373 = vmatpush1.msra.mxu0 0.0
      %2374 = vmatprep.subr.mxu0 0.0
      %2375 = vmatpush1.msra.mxu0 0.0
      %2376 = vmatprep.subr.mxu0 0.0
      %2377 = vmatpush1.msra.mxu0 0.0
      %2378 = vmatprep.subr.mxu0 0.0
      %2379 = vmatpush1.msra.mxu0 0.0
      %2380 = vmatprep.subr.mxu0 0.0
      %2381 = vmatpush1.msra.mxu0 0.0
      %2382 = vmatprep.subr.mxu0 0.0
      %2383 = vmatpush1.msra.mxu0 0.0
      %2384 = vmatprep.subr.mxu0 0.0
      %2385 = vmatpush1.msra.mxu0 0.0
      %2386 = vmatprep.subr.mxu0 0.0
      %2387 = vmatpush1.msra.mxu0 0.0
      %2388 = vmatprep.subr.mxu0 0.0
      %2389 = vmatpush1.msra.mxu0 0.0
      %2390 = vmatprep.mubr.f32.mxu0 0.0
      %2391 = vmatmul.mubr.f32.gmra.mrb[0].mxu0 %v987
      %v2392 = vpop.f32.mrb[0].mxu0
      %v2393 = vadd.f32 %v2318, %v2392
      %v2394 = vpop.f32.mrb[0].mxu0
      %2395 = vmatprep.mubr.f32.mxu0 0.0
      %2396 = vmatmul.mubr.f32.gmra.mrb[0].mxu0 %v990
      %v2397 = vpop.f32.mrb[0].mxu0
      %v2398 = vadd.f32 %v2323, %v2397
      %v2399 = vpop.f32.mrb[0].mxu0
      %2400 = vdwg.mxu0
      %2401 = vrot.lane.b32.xlu0 %v2235, 64
      %v2402 = vpop.permute.xlu0 %2401
      %2403 = vrot.lane.b32.xlu0 %v2240, 64
      %v2404 = vpop.permute.xlu0 %2403
      %2407 = vmatprep.subr.mxu0 0.0
      %2408 = vmatpush1.msra.mxu0 %v2402
      %2409 = vmatprep.subr.mxu0 0.0
      %2410 = vmatpush1.msra.mxu0 %v2404
      %2411 = vmatprep.subr.mxu0 0.0
      %2412 = vmatpush1.msra.mxu0 0.0
      %2413 = vmatprep.subr.mxu0 0.0
      %2414 = vmatpush1.msra.mxu0 0.0
      %2415 = vmatprep.subr.mxu0 0.0
      %2416 = vmatpush1.msra.mxu0 0.0
      %2417 = vmatprep.subr.mxu0 0.0
      %2418 = vmatpush1.msra.mxu0 0.0
      %2419 = vmatprep.subr.mxu0 0.0
      %2420 = vmatpush1.msra.mxu0 0.0
      %2421 = vmatprep.subr.mxu0 0.0
      %2422 = vmatpush1.msra.mxu0 0.0
      %2423 = vmatprep.subr.mxu0 0.0
      %2424 = vmatpush1.msra.mxu0 0.0
      %2425 = vmatprep.subr.mxu0 0.0
      %2426 = vmatpush1.msra.mxu0 0.0
      %2427 = vmatprep.subr.mxu0 0.0
      %2428 = vmatpush1.msra.mxu0 0.0
      %2429 = vmatprep.subr.mxu0 0.0
      %2430 = vmatpush1.msra.mxu0 0.0
      %2431 = vmatprep.subr.mxu0 0.0
      %2432 = vmatpush1.msra.mxu0 0.0
      %2433 = vmatprep.subr.mxu0 0.0
      %2434 = vmatpush1.msra.mxu0 0.0
      %2435 = vmatprep.subr.mxu0 0.0
      %2436 = vmatpush1.msra.mxu0 0.0
      %2437 = vmatprep.subr.mxu0 0.0
      %2438 = vmatpush1.msra.mxu0 0.0
      %2439 = vmatprep.subr.mxu0 0.0
      %2440 = vmatpush1.msra.mxu0 0.0
      %2441 = vmatprep.subr.mxu0 0.0
      %2442 = vmatpush1.msra.mxu0 0.0
      %2443 = vmatprep.subr.mxu0 0.0
      %2444 = vmatpush1.msra.mxu0 0.0
      %2445 = vmatprep.subr.mxu0 0.0
      %2446 = vmatpush1.msra.mxu0 0.0
      %2447 = vmatprep.subr.mxu0 0.0
      %2448 = vmatpush1.msra.mxu0 0.0
      %2449 = vmatprep.subr.mxu0 0.0
      %2450 = vmatpush1.msra.mxu0 0.0
      %2451 = vmatprep.subr.mxu0 0.0
      %2452 = vmatpush1.msra.mxu0 0.0
      %2453 = vmatprep.subr.mxu0 0.0
      %2454 = vmatpush1.msra.mxu0 0.0
      %2455 = vmatprep.subr.mxu0 0.0
      %2456 = vmatpush1.msra.mxu0 0.0
      %2457 = vmatprep.subr.mxu0 0.0
      %2458 = vmatpush1.msra.mxu0 0.0
      %2459 = vmatprep.subr.mxu0 0.0
      %2460 = vmatpush1.msra.mxu0 0.0
      %2461 = vmatprep.subr.mxu0 0.0
      %2462 = vmatpush1.msra.mxu0 0.0
      %2463 = vmatprep.subr.mxu0 0.0
      %2464 = vmatpush1.msra.mxu0 0.0
      %2465 = vmatprep.subr.mxu0 0.0
      %2466 = vmatpush1.msra.mxu0 0.0
      %2467 = vmatprep.subr.mxu0 0.0
      %2468 = vmatpush1.msra.mxu0 0.0
      %2469 = vmatprep.subr.mxu0 0.0
      %2470 = vmatpush1.msra.mxu0 0.0
      %2471 = vmatprep.mubr.f32.mxu0 0.0
      %2472 = vmatmul.mubr.f32.gmra.mrb[0].mxu0 %v1077
      %v2473 = vpop.f32.mrb[0].mxu0
      %v2474 = vadd.f32 0.0, %v2473
      %v2475 = vpop.f32.mrb[0].mxu0
      %2476 = vmatprep.mubr.f32.mxu0 0.0
      %2477 = vmatmul.mubr.f32.gmra.mrb[0].mxu0 %v1080
      %v2478 = vpop.f32.mrb[0].mxu0
      %v2479 = vadd.f32 0.0, %v2478
      %v2480 = vpop.f32.mrb[0].mxu0
      %2481 = vdwg.mxu0
      %v2482 = vadd.f32 %v2393, %v2474
      %v2483 = vadd.f32 %v2398, %v2479
      %s2484 = scalar_lea.vmem %s5, 1
      %v2485 = vld [vmem:[%s2484] sm:$0x1]
      %v2487 = vlaneseq
      %v2488 = vshrl.u32 %v2487, 7
      %v2489 = vsub.s32 0, %v2488
      %v2490 = vrot.slane %v2485, %v2489
      %v2492 = vadd.f32 %v2482, %v2490
      %v2493 = vadd.f32 %v2483, %v2490
      %v2494 = vmax.f32 %v2492, 0.0
      %v2495 = vmax.f32 %v2493, 0.0
      %s2496 = scalar_lea.vmem %s6, 32
      %v2497 = vld [vmem:[%s2496] sm:$0xff]
      %v2498 = vld [vmem:[%s2496 + $0x8] sm:$0xff]
      %v2499 = vld [vmem:[%s2496 + $0x10] sm:$0xff]
      %v2500 = vld [vmem:[%s2496 + $0x18] sm:$0xff]
      %s2501 = scalar_lea.vmem %s7, 1
      %v2502 = vld [vmem:[%s2501] sm:$0x1]
      %v2504 = vlaneseq
      %v2505 = vshrl.u32 %v2504, 7
      %v2506 = vsub.s32 0, %v2505
      %v2507 = vrot.slane %v2502, %v2506
      %v2510 = vsel %vm809, %v2494, 0
      %v2513 = vsel %vm809, %v2495, 0
      %2515 = vmatprep.subr.mxu0 0.0
      %2516 = vmatpush1.msra.mxu0 %v2497
      %2517 = vmatprep.subr.mxu0 0.0
      %2518 = vmatpush1.msra.mxu0 %v2498
      %2519 = vmatprep.subr.mxu0 0.0
      %2520 = vmatpush1.msra.mxu0 %v2499
      %2521 = vmatprep.subr.mxu0 0.0
      %2522 = vmatpush1.msra.mxu0 %v2500
      %2523 = vmatprep.subr.mxu0 0.0
      %2524 = vmatpush1.msra.mxu0 0.0
      %2525 = vmatprep.subr.mxu0 0.0
      %2526 = vmatpush1.msra.mxu0 0.0
      %2527 = vmatprep.subr.mxu0 0.0
      %2528 = vmatpush1.msra.mxu0 0.0
      %2529 = vmatprep.subr.mxu0 0.0
      %2530 = vmatpush1.msra.mxu0 0.0
      %2531 = vmatprep.subr.mxu0 0.0
      %2532 = vmatpush1.msra.mxu0 0.0
      %2533 = vmatprep.subr.mxu0 0.0
      %2534 = vmatpush1.msra.mxu0 0.0
      %2535 = vmatprep.subr.mxu0 0.0
      %2536 = vmatpush1.msra.mxu0 0.0
      %2537 = vmatprep.subr.mxu0 0.0
      %2538 = vmatpush1.msra.mxu0 0.0
      %2539 = vmatprep.subr.mxu0 0.0
      %2540 = vmatpush1.msra.mxu0 0.0
      %2541 = vmatprep.subr.mxu0 0.0
      %2542 = vmatpush1.msra.mxu0 0.0
      %2543 = vmatprep.subr.mxu0 0.0
      %2544 = vmatpush1.msra.mxu0 0.0
      %2545 = vmatprep.subr.mxu0 0.0
      %2546 = vmatpush1.msra.mxu0 0.0
      %2547 = vmatprep.subr.mxu0 0.0
      %2548 = vmatpush1.msra.mxu0 0.0
      %2549 = vmatprep.subr.mxu0 0.0
      %2550 = vmatpush1.msra.mxu0 0.0
      %2551 = vmatprep.subr.mxu0 0.0
      %2552 = vmatpush1.msra.mxu0 0.0
      %2553 = vmatprep.subr.mxu0 0.0
      %2554 = vmatpush1.msra.mxu0 0.0
      %2555 = vmatprep.subr.mxu0 0.0
      %2556 = vmatpush1.msra.mxu0 0.0
      %2557 = vmatprep.subr.mxu0 0.0
      %2558 = vmatpush1.msra.mxu0 0.0
      %2559 = vmatprep.subr.mxu0 0.0
      %2560 = vmatpush1.msra.mxu0 0.0
      %2561 = vmatprep.subr.mxu0 0.0
      %2562 = vmatpush1.msra.mxu0 0.0
      %2563 = vmatprep.subr.mxu0 0.0
      %2564 = vmatpush1.msra.mxu0 0.0
      %2565 = vmatprep.subr.mxu0 0.0
      %2566 = vmatpush1.msra.mxu0 0.0
      %2567 = vmatprep.subr.mxu0 0.0
      %2568 = vmatpush1.msra.mxu0 0.0
      %2569 = vmatprep.subr.mxu0 0.0
      %2570 = vmatpush1.msra.mxu0 0.0
      %2571 = vmatprep.subr.mxu0 0.0
      %2572 = vmatpush1.msra.mxu0 0.0
      %2573 = vmatprep.subr.mxu0 0.0
      %2574 = vmatpush1.msra.mxu0 0.0
      %2575 = vmatprep.subr.mxu0 0.0
      %2576 = vmatpush1.msra.mxu0 0.0
      %2577 = vmatprep.subr.mxu0 0.0
      %2578 = vmatpush1.msra.mxu0 0.0
      %2579 = vmatprep.mubr.f32.mxu0 0.0
      %2580 = vmatmul.mubr.f32.gmra.mrb[0].mxu0 %v2510
      %v2581 = vpop.f32.mrb[0].mxu0
      %v2582 = vadd.f32 %v2507, %v2581
      %v2583 = vpop.f32.mrb[0].mxu0
      %2584 = vmatprep.mubr.f32.mxu0 0.0
      %2585 = vmatmul.mubr.f32.gmra.mrb[0].mxu0 %v2513
      %v2586 = vpop.f32.mrb[0].mxu0
      %v2587 = vadd.f32 %v2507, %v2586
      %v2588 = vpop.f32.mrb[0].mxu0
      %2589 = vdwg.mxu0
      %2592 = vrot.lane.b32.xlu0 %v2582, 96
      %v2593 = vpop.permute.xlu0 %2592
      %2594 = vrot.lane.b32.xlu0 %v2587, 96
      %v2595 = vpop.permute.xlu0 %2594
      %v2598 = vmul.f32 %v2582, %v2593
      %v2599 = vmul.f32 %v2587, %v2595
      %v2601 = vsel %vm809, %v2598, 0
      %v2604 = vsel %vm809, %v2599, 0
      %2606 = vmatprep.subr.mxu0 0.0
      %2607 = vmatpush1.msra.mxu0 %v704
      %2608 = vmatprep.subr.mxu0 0.0
      %2609 = vmatpush1.msra.mxu0 %v705
      %2610 = vmatprep.subr.mxu0 0.0
      %2611 = vmatpush1.msra.mxu0 %v706
      %2612 = vmatprep.subr.mxu0 0.0
      %2613 = vmatpush1.msra.mxu0 %v707
      %2614 = vmatprep.subr.mxu0 0.0
      %2615 = vmatpush1.msra.mxu0 0.0
      %2616 = vmatprep.subr.mxu0 0.0
      %2617 = vmatpush1.msra.mxu0 0.0
      %2618 = vmatprep.subr.mxu0 0.0
      %2619 = vmatpush1.msra.mxu0 0.0
      %2620 = vmatprep.subr.mxu0 0.0
      %2621 = vmatpush1.msra.mxu0 0.0
      %2622 = vmatprep.subr.mxu0 0.0
      %2623 = vmatpush1.msra.mxu0 0.0
      %2624 = vmatprep.subr.mxu0 0.0
      %2625 = vmatpush1.msra.mxu0 0.0
      %2626 = vmatprep.subr.mxu0 0.0
      %2627 = vmatpush1.msra.mxu0 0.0
      %2628 = vmatprep.subr.mxu0 0.0
      %2629 = vmatpush1.msra.mxu0 0.0
      %2630 = vmatprep.subr.mxu0 0.0
      %2631 = vmatpush1.msra.mxu0 0.0
      %2632 = vmatprep.subr.mxu0 0.0
      %2633 = vmatpush1.msra.mxu0 0.0
      %2634 = vmatprep.subr.mxu0 0.0
      %2635 = vmatpush1.msra.mxu0 0.0
      %2636 = vmatprep.subr.mxu0 0.0
      %2637 = vmatpush1.msra.mxu0 0.0
      %2638 = vmatprep.subr.mxu0 0.0
      %2639 = vmatpush1.msra.mxu0 0.0
      %2640 = vmatprep.subr.mxu0 0.0
      %2641 = vmatpush1.msra.mxu0 0.0
      %2642 = vmatprep.subr.mxu0 0.0
      %2643 = vmatpush1.msra.mxu0 0.0
      %2644 = vmatprep.subr.mxu0 0.0
      %2645 = vmatpush1.msra.mxu0 0.0
      %2646 = vmatprep.subr.mxu0 0.0
      %2647 = vmatpush1.msra.mxu0 0.0
      %2648 = vmatprep.subr.mxu0 0.0
      %2649 = vmatpush1.msra.mxu0 0.0
      %2650 = vmatprep.subr.mxu0 0.0
      %2651 = vmatpush1.msra.mxu0 0.0
      %2652 = vmatprep.subr.mxu0 0.0
      %2653 = vmatpush1.msra.mxu0 0.0
      %2654 = vmatprep.subr.mxu0 0.0
      %2655 = vmatpush1.msra.mxu0 0.0
      %2656 = vmatprep.subr.mxu0 0.0
      %2657 = vmatpush1.msra.mxu0 0.0
      %2658 = vmatprep.subr.mxu0 0.0
      %2659 = vmatpush1.msra.mxu0 0.0
      %2660 = vmatprep.subr.mxu0 0.0
      %2661 = vmatpush1.msra.mxu0 0.0
      %2662 = vmatprep.subr.mxu0 0.0
      %2663 = vmatpush1.msra.mxu0 0.0
      %2664 = vmatprep.subr.mxu0 0.0
      %2665 = vmatpush1.msra.mxu0 0.0
      %2666 = vmatprep.subr.mxu0 0.0
      %2667 = vmatpush1.msra.mxu0 0.0
      %2668 = vmatprep.subr.mxu0 0.0
      %2669 = vmatpush1.msra.mxu0 0.0
      %2670 = vmatprep.mubr.f32.mxu0 0.0
      %2671 = vmatmul.mubr.f32.gmra.mrb[0].mxu0 %v2601
      %v2672 = vpop.f32.mrb[0].mxu0
      %v2673 = vadd.f32 0.0, %v2672
      %v2674 = vpop.f32.mrb[0].mxu0
      %2675 = vmatprep.mubr.f32.mxu0 0.0
      %2676 = vmatmul.mubr.f32.gmra.mrb[0].mxu0 %v2604
      %v2677 = vpop.f32.mrb[0].mxu0
      %v2678 = vadd.f32 0.0, %v2677
      %v2679 = vpop.f32.mrb[0].mxu0
      %2680 = vdwg.mxu0
      %v2682 = vsel %vm719, %v2673, 0
      %v2685 = vsel %vm719, %v2678, 0
      %2687 = vmatprep.subr.mxu0 0.0
      %2688 = vmatpush1.msra.mxu0 %v1360
      %2689 = vmatprep.subr.mxu0 0.0
      %2690 = vmatpush1.msra.mxu0 0.0
      %2691 = vmatprep.subr.mxu0 0.0
      %2692 = vmatpush1.msra.mxu0 0.0
      %2693 = vmatprep.subr.mxu0 0.0
      %2694 = vmatpush1.msra.mxu0 0.0
      %2695 = vmatprep.subr.mxu0 0.0
      %2696 = vmatpush1.msra.mxu0 0.0
      %2697 = vmatprep.subr.mxu0 0.0
      %2698 = vmatpush1.msra.mxu0 0.0
      %2699 = vmatprep.subr.mxu0 0.0
      %2700 = vmatpush1.msra.mxu0 0.0
      %2701 = vmatprep.subr.mxu0 0.0
      %2702 = vmatpush1.msra.mxu0 0.0
      %2703 = vmatprep.subr.mxu0 0.0
      %2704 = vmatpush1.msra.mxu0 0.0
      %2705 = vmatprep.subr.mxu0 0.0
      %2706 = vmatpush1.msra.mxu0 0.0
      %2707 = vmatprep.subr.mxu0 0.0
      %2708 = vmatpush1.msra.mxu0 0.0
      %2709 = vmatprep.subr.mxu0 0.0
      %2710 = vmatpush1.msra.mxu0 0.0
      %2711 = vmatprep.subr.mxu0 0.0
      %2712 = vmatpush1.msra.mxu0 0.0
      %2713 = vmatprep.subr.mxu0 0.0
      %2714 = vmatpush1.msra.mxu0 0.0
      %2715 = vmatprep.subr.mxu0 0.0
      %2716 = vmatpush1.msra.mxu0 0.0
      %2717 = vmatprep.subr.mxu0 0.0
      %2718 = vmatpush1.msra.mxu0 0.0
      %2719 = vmatprep.subr.mxu0 0.0
      %2720 = vmatpush1.msra.mxu0 0.0
      %2721 = vmatprep.subr.mxu0 0.0
      %2722 = vmatpush1.msra.mxu0 0.0
      %2723 = vmatprep.subr.mxu0 0.0
      %2724 = vmatpush1.msra.mxu0 0.0
      %2725 = vmatprep.subr.mxu0 0.0
      %2726 = vmatpush1.msra.mxu0 0.0
      %2727 = vmatprep.subr.mxu0 0.0
      %2728 = vmatpush1.msra.mxu0 0.0
      %2729 = vmatprep.subr.mxu0 0.0
      %2730 = vmatpush1.msra.mxu0 0.0
      %2731 = vmatprep.subr.mxu0 0.0
      %2732 = vmatpush1.msra.mxu0 0.0
      %2733 = vmatprep.subr.mxu0 0.0
      %2734 = vmatpush1.msra.mxu0 0.0
      %2735 = vmatprep.subr.mxu0 0.0
      %2736 = vmatpush1.msra.mxu0 0.0
      %2737 = vmatprep.subr.mxu0 0.0
      %2738 = vmatpush1.msra.mxu0 0.0
      %2739 = vmatprep.subr.mxu0 0.0
      %2740 = vmatpush1.msra.mxu0 0.0
      %2741 = vmatprep.subr.mxu0 0.0
      %2742 = vmatpush1.msra.mxu0 0.0
      %2743 = vmatprep.subr.mxu0 0.0
      %2744 = vmatpush1.msra.mxu0 0.0
      %2745 = vmatprep.subr.mxu0 0.0
      %2746 = vmatpush1.msra.mxu0 0.0
      %2747 = vmatprep.subr.mxu0 0.0
      %2748 = vmatpush1.msra.mxu0 0.0
      %2749 = vmatprep.subr.mxu0 0.0
      %2750 = vmatpush1.msra.mxu0 0.0
      %2751 = vmatprep.mubr.f32.mxu0 0.0
      %2752 = vmatmul.mubr.f32.gmra.mrb[0].mxu0 %v2682
      %v2753 = vpop.f32.mrb[0].mxu0
      %v2754 = vadd.f32 0.0, %v2753
      %v2755 = vpop.f32.mrb[0].mxu0
      %2756 = vmatprep.mubr.f32.mxu0 0.0
      %2757 = vmatmul.mubr.f32.gmra.mrb[0].mxu0 %v2685
      %v2758 = vpop.f32.mrb[0].mxu0
      %v2759 = vadd.f32 0.0, %v2758
      %v2760 = vpop.f32.mrb[0].mxu0
      %2761 = vdwg.mxu0
      %2762 = vrot.lane.b32.xlu0 %v2582, 64
      %v2763 = vpop.permute.xlu0 %2762
      %2764 = vrot.lane.b32.xlu0 %v2587, 64
      %v2765 = vpop.permute.xlu0 %2764
      %v2768 = vmul.f32 %v2754, %v2763
      %v2769 = vmul.f32 %v2759, %v2765
      %s2770 = scalar_lea.vmem %s8, 32
      %v2771 = vld [vmem:[%s2770] sm:$0xff]
      %v2772 = vld [vmem:[%s2770 + $0x8] sm:$0xff]
      %v2773 = vld [vmem:[%s2770 + $0x10] sm:$0xff]
      %v2774 = vld [vmem:[%s2770 + $0x18] sm:$0xff]
      %s2775 = scalar_lea.vmem %s9, 1
      %v2776 = vld [vmem:[%s2775] sm:$0x1]
      %v2778 = vlaneseq
      %v2779 = vshrl.u32 %v2778, 7
      %v2780 = vsub.s32 0, %v2779
      %v2781 = vrot.slane %v2776, %v2780
      %v2784 = vsel %vm809, %v2768, 0
      %v2787 = vsel %vm809, %v2769, 0
      %2789 = vmatprep.subr.mxu0 0.0
      %2790 = vmatpush1.msra.mxu0 %v2771
      %2791 = vmatprep.subr.mxu0 0.0
      %2792 = vmatpush1.msra.mxu0 %v2772
      %2793 = vmatprep.subr.mxu0 0.0
      %2794 = vmatpush1.msra.mxu0 %v2773
      %2795 = vmatprep.subr.mxu0 0.0
      %2796 = vmatpush1.msra.mxu0 %v2774
      %2797 = vmatprep.subr.mxu0 0.0
      %2798 = vmatpush1.msra.mxu0 0.0
      %2799 = vmatprep.subr.mxu0 0.0
      %2800 = vmatpush1.msra.mxu0 0.0
      %2801 = vmatprep.subr.mxu0 0.0
      %2802 = vmatpush1.msra.mxu0 0.0
      %2803 = vmatprep.subr.mxu0 0.0
      %2804 = vmatpush1.msra.mxu0 0.0
      %2805 = vmatprep.subr.mxu0 0.0
      %2806 = vmatpush1.msra.mxu0 0.0
      %2807 = vmatprep.subr.mxu0 0.0
      %2808 = vmatpush1.msra.mxu0 0.0
      %2809 = vmatprep.subr.mxu0 0.0
      %2810 = vmatpush1.msra.mxu0 0.0
      %2811 = vmatprep.subr.mxu0 0.0
      %2812 = vmatpush1.msra.mxu0 0.0
      %2813 = vmatprep.subr.mxu0 0.0
      %2814 = vmatpush1.msra.mxu0 0.0
      %2815 = vmatprep.subr.mxu0 0.0
      %2816 = vmatpush1.msra.mxu0 0.0
      %2817 = vmatprep.subr.mxu0 0.0
      %2818 = vmatpush1.msra.mxu0 0.0
      %2819 = vmatprep.subr.mxu0 0.0
      %2820 = vmatpush1.msra.mxu0 0.0
      %2821 = vmatprep.subr.mxu0 0.0
      %2822 = vmatpush1.msra.mxu0 0.0
      %2823 = vmatprep.subr.mxu0 0.0
      %2824 = vmatpush1.msra.mxu0 0.0
      %2825 = vmatprep.subr.mxu0 0.0
      %2826 = vmatpush1.msra.mxu0 0.0
      %2827 = vmatprep.subr.mxu0 0.0
      %2828 = vmatpush1.msra.mxu0 0.0
      %2829 = vmatprep.subr.mxu0 0.0
      %2830 = vmatpush1.msra.mxu0 0.0
      %2831 = vmatprep.subr.mxu0 0.0
      %2832 = vmatpush1.msra.mxu0 0.0
      %2833 = vmatprep.subr.mxu0 0.0
      %2834 = vmatpush1.msra.mxu0 0.0
      %2835 = vmatprep.subr.mxu0 0.0
      %2836 = vmatpush1.msra.mxu0 0.0
      %2837 = vmatprep.subr.mxu0 0.0
      %2838 = vmatpush1.msra.mxu0 0.0
      %2839 = vmatprep.subr.mxu0 0.0
      %2840 = vmatpush1.msra.mxu0 0.0
      %2841 = vmatprep.subr.mxu0 0.0
      %2842 = vmatpush1.msra.mxu0 0.0
      %2843 = vmatprep.subr.mxu0 0.0
      %2844 = vmatpush1.msra.mxu0 0.0
      %2845 = vmatprep.subr.mxu0 0.0
      %2846 = vmatpush1.msra.mxu0 0.0
      %2847 = vmatprep.subr.mxu0 0.0
      %2848 = vmatpush1.msra.mxu0 0.0
      %2849 = vmatprep.subr.mxu0 0.0
      %2850 = vmatpush1.msra.mxu0 0.0
      %2851 = vmatprep.subr.mxu0 0.0
      %2852 = vmatpush1.msra.mxu0 0.0
      %2853 = vmatprep.mubr.f32.mxu0 0.0
      %2854 = vmatmul.mubr.f32.gmra.mrb[0].mxu0 %v2784
      %v2855 = vpop.f32.mrb[0].mxu0
      %v2856 = vadd.f32 %v2781, %v2855
      %v2857 = vpop.f32.mrb[0].mxu0
      %2858 = vmatprep.mubr.f32.mxu0 0.0
      %2859 = vmatmul.mubr.f32.gmra.mrb[0].mxu0 %v2787
      %v2860 = vpop.f32.mrb[0].mxu0
      %v2861 = vadd.f32 %v2781, %v2860
      %v2862 = vpop.f32.mrb[0].mxu0
      %2863 = vdwg.mxu0
      %v2865 = vsel %vm809, %v2856, 0
      %v2868 = vsel %vm809, %v2861, 0
      %2870 = vmatprep.subr.mxu0 0.0
      %2871 = vmatpush1.msra.mxu0 %v704
      %2872 = vmatprep.subr.mxu0 0.0
      %2873 = vmatpush1.msra.mxu0 %v705
      %2874 = vmatprep.subr.mxu0 0.0
      %2875 = vmatpush1.msra.mxu0 %v706
      %2876 = vmatprep.subr.mxu0 0.0
      %2877 = vmatpush1.msra.mxu0 %v707
      %2878 = vmatprep.subr.mxu0 0.0
      %2879 = vmatpush1.msra.mxu0 0.0
      %2880 = vmatprep.subr.mxu0 0.0
      %2881 = vmatpush1.msra.mxu0 0.0
      %2882 = vmatprep.subr.mxu0 0.0
      %2883 = vmatpush1.msra.mxu0 0.0
      %2884 = vmatprep.subr.mxu0 0.0
      %2885 = vmatpush1.msra.mxu0 0.0
      %2886 = vmatprep.subr.mxu0 0.0
      %2887 = vmatpush1.msra.mxu0 0.0
      %2888 = vmatprep.subr.mxu0 0.0
      %2889 = vmatpush1.msra.mxu0 0.0
      %2890 = vmatprep.subr.mxu0 0.0
      %2891 = vmatpush1.msra.mxu0 0.0
      %2892 = vmatprep.subr.mxu0 0.0
      %2893 = vmatpush1.msra.mxu0 0.0
      %2894 = vmatprep.subr.mxu0 0.0
      %2895 = vmatpush1.msra.mxu0 0.0
      %2896 = vmatprep.subr.mxu0 0.0
      %2897 = vmatpush1.msra.mxu0 0.0
      %2898 = vmatprep.subr.mxu0 0.0
      %2899 = vmatpush1.msra.mxu0 0.0
      %2900 = vmatprep.subr.mxu0 0.0
      %2901 = vmatpush1.msra.mxu0 0.0
      %2902 = vmatprep.subr.mxu0 0.0
      %2903 = vmatpush1.msra.mxu0 0.0
      %2904 = vmatprep.subr.mxu0 0.0
      %2905 = vmatpush1.msra.mxu0 0.0
      %2906 = vmatprep.subr.mxu0 0.0
      %2907 = vmatpush1.msra.mxu0 0.0
      %2908 = vmatprep.subr.mxu0 0.0
      %2909 = vmatpush1.msra.mxu0 0.0
      %2910 = vmatprep.subr.mxu0 0.0
      %2911 = vmatpush1.msra.mxu0 0.0
      %2912 = vmatprep.subr.mxu0 0.0
      %2913 = vmatpush1.msra.mxu0 0.0
      %2914 = vmatprep.subr.mxu0 0.0
      %2915 = vmatpush1.msra.mxu0 0.0
      %2916 = vmatprep.subr.mxu0 0.0
      %2917 = vmatpush1.msra.mxu0 0.0
      %2918 = vmatprep.subr.mxu0 0.0
      %2919 = vmatpush1.msra.mxu0 0.0
      %2920 = vmatprep.subr.mxu0 0.0
      %2921 = vmatpush1.msra.mxu0 0.0
      %2922 = vmatprep.subr.mxu0 0.0
      %2923 = vmatpush1.msra.mxu0 0.0
      %2924 = vmatprep.subr.mxu0 0.0
      %2925 = vmatpush1.msra.mxu0 0.0
      %2926 = vmatprep.subr.mxu0 0.0
      %2927 = vmatpush1.msra.mxu0 0.0
      %2928 = vmatprep.subr.mxu0 0.0
      %2929 = vmatpush1.msra.mxu0 0.0
      %2930 = vmatprep.subr.mxu0 0.0
      %2931 = vmatpush1.msra.mxu0 0.0
      %2932 = vmatprep.subr.mxu0 0.0
      %2933 = vmatpush1.msra.mxu0 0.0
      %2934 = vmatprep.mubr.f32.mxu0 0.0
      %2935 = vmatmul.mubr.f32.gmra.mrb[0].mxu0 %v2865
      %v2936 = vpop.f32.mrb[0].mxu0
      %v2937 = vadd.f32 0.0, %v2936
      %v2938 = vpop.f32.mrb[0].mxu0
      %2939 = vmatprep.mubr.f32.mxu0 0.0
      %2940 = vmatmul.mubr.f32.gmra.mrb[0].mxu0 %v2868
      %v2941 = vpop.f32.mrb[0].mxu0
      %v2942 = vadd.f32 0.0, %v2941
      %v2943 = vpop.f32.mrb[0].mxu0
      %2944 = vdwg.mxu0
      %v2945 = vmul.f32 %v2937, 0.125
      %v2946 = vmul.f32 %v2942, 0.125
      %v2948 = vsel %vm719, %v2945, 0
      %v2951 = vsel %vm719, %v2946, 0
      %2953 = vmatprep.subr.mxu0 0.0
      %2954 = vmatpush1.msra.mxu0 %v1360
      %2955 = vmatprep.subr.mxu0 0.0
      %2956 = vmatpush1.msra.mxu0 0.0
      %2957 = vmatprep.subr.mxu0 0.0
      %2958 = vmatpush1.msra.mxu0 0.0
      %2959 = vmatprep.subr.mxu0 0.0
      %2960 = vmatpush1.msra.mxu0 0.0
      %2961 = vmatprep.subr.mxu0 0.0
      %2962 = vmatpush1.msra.mxu0 0.0
      %2963 = vmatprep.subr.mxu0 0.0
      %2964 = vmatpush1.msra.mxu0 0.0
      %2965 = vmatprep.subr.mxu0 0.0
      %2966 = vmatpush1.msra.mxu0 0.0
      %2967 = vmatprep.subr.mxu0 0.0
      %2968 = vmatpush1.msra.mxu0 0.0
      %2969 = vmatprep.subr.mxu0 0.0
      %2970 = vmatpush1.msra.mxu0 0.0
      %2971 = vmatprep.subr.mxu0 0.0
      %2972 = vmatpush1.msra.mxu0 0.0
      %2973 = vmatprep.subr.mxu0 0.0
      %2974 = vmatpush1.msra.mxu0 0.0
      %2975 = vmatprep.subr.mxu0 0.0
      %2976 = vmatpush1.msra.mxu0 0.0
      %2977 = vmatprep.subr.mxu0 0.0
      %2978 = vmatpush1.msra.mxu0 0.0
      %2979 = vmatprep.subr.mxu0 0.0
      %2980 = vmatpush1.msra.mxu0 0.0
      %2981 = vmatprep.subr.mxu0 0.0
      %2982 = vmatpush1.msra.mxu0 0.0
      %2983 = vmatprep.subr.mxu0 0.0
      %2984 = vmatpush1.msra.mxu0 0.0
      %2985 = vmatprep.subr.mxu0 0.0
      %2986 = vmatpush1.msra.mxu0 0.0
      %2987 = vmatprep.subr.mxu0 0.0
      %2988 = vmatpush1.msra.mxu0 0.0
      %2989 = vmatprep.subr.mxu0 0.0
      %2990 = vmatpush1.msra.mxu0 0.0
      %2991 = vmatprep.subr.mxu0 0.0
      %2992 = vmatpush1.msra.mxu0 0.0
      %2993 = vmatprep.subr.mxu0 0.0
      %2994 = vmatpush1.msra.mxu0 0.0
      %2995 = vmatprep.subr.mxu0 0.0
      %2996 = vmatpush1.msra.mxu0 0.0
      %2997 = vmatprep.subr.mxu0 0.0
      %2998 = vmatpush1.msra.mxu0 0.0
      %2999 = vmatprep.subr.mxu0 0.0
      %3000 = vmatpush1.msra.mxu0 0.0
      %3001 = vmatprep.subr.mxu0 0.0
      %3002 = vmatpush1.msra.mxu0 0.0
      %3003 = vmatprep.subr.mxu0 0.0
      %3004 = vmatpush1.msra.mxu0 0.0
      %3005 = vmatprep.subr.mxu0 0.0
      %3006 = vmatpush1.msra.mxu0 0.0
      %3007 = vmatprep.subr.mxu0 0.0
      %3008 = vmatpush1.msra.mxu0 0.0
      %3009 = vmatprep.subr.mxu0 0.0
      %3010 = vmatpush1.msra.mxu0 0.0
      %3011 = vmatprep.subr.mxu0 0.0
      %3012 = vmatpush1.msra.mxu0 0.0
      %3013 = vmatprep.subr.mxu0 0.0
      %3014 = vmatpush1.msra.mxu0 0.0
      %3015 = vmatprep.subr.mxu0 0.0
      %3016 = vmatpush1.msra.mxu0 0.0
      %3017 = vmatprep.mubr.f32.mxu0 0.0
      %3018 = vmatmul.mubr.f32.gmra.mrb[0].mxu0 %v2948
      %v3019 = vpop.f32.mrb[0].mxu0
      %v3020 = vadd.f32 0.0, %v3019
      %v3021 = vpop.f32.mrb[0].mxu0
      %3022 = vmatprep.mubr.f32.mxu0 0.0
      %3023 = vmatmul.mubr.f32.gmra.mrb[0].mxu0 %v2951
      %v3024 = vpop.f32.mrb[0].mxu0
      %v3025 = vadd.f32 0.0, %v3024
      %v3026 = vpop.f32.mrb[0].mxu0
      %3027 = vdwg.mxu0
      %v3028 = vsub.f32 %v2856, %v3020
      %v3029 = vsub.f32 %v2861, %v3025
      %v3030 = vmul.f32 %v3028, %v3028
      %v3031 = vmul.f32 %v3029, %v3029
      %v3033 = vsel %vm809, %v3030, 0
      %v3036 = vsel %vm809, %v3031, 0
      %3038 = vmatprep.subr.mxu0 0.0
      %3039 = vmatpush1.msra.mxu0 %v704
      %3040 = vmatprep.subr.mxu0 0.0
      %3041 = vmatpush1.msra.mxu0 %v705
      %3042 = vmatprep.subr.mxu0 0.0
      %3043 = vmatpush1.msra.mxu0 %v706
      %3044 = vmatprep.subr.mxu0 0.0
      %3045 = vmatpush1.msra.mxu0 %v707
      %3046 = vmatprep.subr.mxu0 0.0
      %3047 = vmatpush1.msra.mxu0 0.0
      %3048 = vmatprep.subr.mxu0 0.0
      %3049 = vmatpush1.msra.mxu0 0.0
      %3050 = vmatprep.subr.mxu0 0.0
      %3051 = vmatpush1.msra.mxu0 0.0
      %3052 = vmatprep.subr.mxu0 0.0
      %3053 = vmatpush1.msra.mxu0 0.0
      %3054 = vmatprep.subr.mxu0 0.0
      %3055 = vmatpush1.msra.mxu0 0.0
      %3056 = vmatprep.subr.mxu0 0.0
      %3057 = vmatpush1.msra.mxu0 0.0
      %3058 = vmatprep.subr.mxu0 0.0
      %3059 = vmatpush1.msra.mxu0 0.0
      %3060 = vmatprep.subr.mxu0 0.0
      %3061 = vmatpush1.msra.mxu0 0.0
      %3062 = vmatprep.subr.mxu0 0.0
      %3063 = vmatpush1.msra.mxu0 0.0
      %3064 = vmatprep.subr.mxu0 0.0
      %3065 = vmatpush1.msra.mxu0 0.0
      %3066 = vmatprep.subr.mxu0 0.0
      %3067 = vmatpush1.msra.mxu0 0.0
      %3068 = vmatprep.subr.mxu0 0.0
      %3069 = vmatpush1.msra.mxu0 0.0
      %3070 = vmatprep.subr.mxu0 0.0
      %3071 = vmatpush1.msra.mxu0 0.0
      %3072 = vmatprep.subr.mxu0 0.0
      %3073 = vmatpush1.msra.mxu0 0.0
      %3074 = vmatprep.subr.mxu0 0.0
      %3075 = vmatpush1.msra.mxu0 0.0
      %3076 = vmatprep.subr.mxu0 0.0
      %3077 = vmatpush1.msra.mxu0 0.0
      %3078 = vmatprep.subr.mxu0 0.0
      %3079 = vmatpush1.msra.mxu0 0.0
      %3080 = vmatprep.subr.mxu0 0.0
      %3081 = vmatpush1.msra.mxu0 0.0
      %3082 = vmatprep.subr.mxu0 0.0
      %3083 = vmatpush1.msra.mxu0 0.0
      %3084 = vmatprep.subr.mxu0 0.0
      %3085 = vmatpush1.msra.mxu0 0.0
      %3086 = vmatprep.subr.mxu0 0.0
      %3087 = vmatpush1.msra.mxu0 0.0
      %3088 = vmatprep.subr.mxu0 0.0
      %3089 = vmatpush1.msra.mxu0 0.0
      %3090 = vmatprep.subr.mxu0 0.0
      %3091 = vmatpush1.msra.mxu0 0.0
      %3092 = vmatprep.subr.mxu0 0.0
      %3093 = vmatpush1.msra.mxu0 0.0
      %3094 = vmatprep.subr.mxu0 0.0
      %3095 = vmatpush1.msra.mxu0 0.0
      %3096 = vmatprep.subr.mxu0 0.0
      %3097 = vmatpush1.msra.mxu0 0.0
      %3098 = vmatprep.subr.mxu0 0.0
      %3099 = vmatpush1.msra.mxu0 0.0
      %3100 = vmatprep.subr.mxu0 0.0
      %3101 = vmatpush1.msra.mxu0 0.0
      %3102 = vmatprep.mubr.f32.mxu0 0.0
      %3103 = vmatmul.mubr.f32.gmra.mrb[0].mxu0 %v3033
      %v3104 = vpop.f32.mrb[0].mxu0
      %v3105 = vadd.f32 0.0, %v3104
      %v3106 = vpop.f32.mrb[0].mxu0
      %3107 = vmatprep.mubr.f32.mxu0 0.0
      %3108 = vmatmul.mubr.f32.gmra.mrb[0].mxu0 %v3036
      %v3109 = vpop.f32.mrb[0].mxu0
      %v3110 = vadd.f32 0.0, %v3109
      %v3111 = vpop.f32.mrb[0].mxu0
      %3112 = vdwg.mxu0
      %v3113 = vmul.f32 %v3105, 0.125
      %v3114 = vmul.f32 %v3110, 0.125
      %v3116 = vsel %vm719, %v3113, 0
      %v3119 = vsel %vm719, %v3114, 0
      %3121 = vmatprep.subr.mxu0 0.0
      %3122 = vmatpush1.msra.mxu0 %v1360
      %3123 = vmatprep.subr.mxu0 0.0
      %3124 = vmatpush1.msra.mxu0 0.0
      %3125 = vmatprep.subr.mxu0 0.0
      %3126 = vmatpush1.msra.mxu0 0.0
      %3127 = vmatprep.subr.mxu0 0.0
      %3128 = vmatpush1.msra.mxu0 0.0
      %3129 = vmatprep.subr.mxu0 0.0
      %3130 = vmatpush1.msra.mxu0 0.0
      %3131 = vmatprep.subr.mxu0 0.0
      %3132 = vmatpush1.msra.mxu0 0.0
      %3133 = vmatprep.subr.mxu0 0.0
      %3134 = vmatpush1.msra.mxu0 0.0
      %3135 = vmatprep.subr.mxu0 0.0
      %3136 = vmatpush1.msra.mxu0 0.0
      %3137 = vmatprep.subr.mxu0 0.0
      %3138 = vmatpush1.msra.mxu0 0.0
      %3139 = vmatprep.subr.mxu0 0.0
      %3140 = vmatpush1.msra.mxu0 0.0
      %3141 = vmatprep.subr.mxu0 0.0
      %3142 = vmatpush1.msra.mxu0 0.0
      %3143 = vmatprep.subr.mxu0 0.0
      %3144 = vmatpush1.msra.mxu0 0.0
      %3145 = vmatprep.subr.mxu0 0.0
      %3146 = vmatpush1.msra.mxu0 0.0
      %3147 = vmatprep.subr.mxu0 0.0
      %3148 = vmatpush1.msra.mxu0 0.0
      %3149 = vmatprep.subr.mxu0 0.0
      %3150 = vmatpush1.msra.mxu0 0.0
      %3151 = vmatprep.subr.mxu0 0.0
      %3152 = vmatpush1.msra.mxu0 0.0
      %3153 = vmatprep.subr.mxu0 0.0
      %3154 = vmatpush1.msra.mxu0 0.0
      %3155 = vmatprep.subr.mxu0 0.0
      %3156 = vmatpush1.msra.mxu0 0.0
      %3157 = vmatprep.subr.mxu0 0.0
      %3158 = vmatpush1.msra.mxu0 0.0
      %3159 = vmatprep.subr.mxu0 0.0
      %3160 = vmatpush1.msra.mxu0 0.0
      %3161 = vmatprep.subr.mxu0 0.0
      %3162 = vmatpush1.msra.mxu0 0.0
      %3163 = vmatprep.subr.mxu0 0.0
      %3164 = vmatpush1.msra.mxu0 0.0
      %3165 = vmatprep.subr.mxu0 0.0
      %3166 = vmatpush1.msra.mxu0 0.0
      %3167 = vmatprep.subr.mxu0 0.0
      %3168 = vmatpush1.msra.mxu0 0.0
      %3169 = vmatprep.subr.mxu0 0.0
      %3170 = vmatpush1.msra.mxu0 0.0
      %3171 = vmatprep.subr.mxu0 0.0
      %3172 = vmatpush1.msra.mxu0 0.0
      %3173 = vmatprep.subr.mxu0 0.0
      %3174 = vmatpush1.msra.mxu0 0.0
      %3175 = vmatprep.subr.mxu0 0.0
      %3176 = vmatpush1.msra.mxu0 0.0
      %3177 = vmatprep.subr.mxu0 0.0
      %3178 = vmatpush1.msra.mxu0 0.0
      %3179 = vmatprep.subr.mxu0 0.0
      %3180 = vmatpush1.msra.mxu0 0.0
      %3181 = vmatprep.subr.mxu0 0.0
      %3182 = vmatpush1.msra.mxu0 0.0
      %3183 = vmatprep.subr.mxu0 0.0
      %3184 = vmatpush1.msra.mxu0 0.0
      %3185 = vmatprep.mubr.f32.mxu0 0.0
      %3186 = vmatmul.mubr.f32.gmra.mrb[0].mxu0 %v3116
      %v3187 = vpop.f32.mrb[0].mxu0
      %v3188 = vadd.f32 1e-05, %v3187
      %v3189 = vpop.f32.mrb[0].mxu0
      %3190 = vmatprep.mubr.f32.mxu0 0.0
      %3191 = vmatmul.mubr.f32.gmra.mrb[0].mxu0 %v3119
      %v3192 = vpop.f32.mrb[0].mxu0
      %v3193 = vadd.f32 1e-05, %v3192
      %v3194 = vpop.f32.mrb[0].mxu0
      %3195 = vdwg.mxu0
      %v3196 = vrsqrt.pop %v3188
      %v3197 = vrsqrt.pop %v3193
      %v3198 = vmul.f32 %v3028, %v3196
      %v3199 = vmul.f32 %v3029, %v3197
      %s3200 = scalar_lea.vmem %s10, 1
      %v3201 = vld [vmem:[%s3200] sm:$0x1]
      %v3203 = vlaneseq
      %v3204 = vshrl.u32 %v3203, 7
      %v3205 = vsub.s32 0, %v3204
      %v3206 = vrot.slane %v3201, %v3205
      %v3208 = vmul.f32 %v3198, %v3206
      %v3209 = vmul.f32 %v3199, %v3206
      %s3210 = scalar_lea.vmem %s11, 1
      %v3211 = vld [vmem:[%s3210] sm:$0x1]
      %v3213 = vlaneseq
      %v3214 = vshrl.u32 %v3213, 7
      %v3215 = vsub.s32 0, %v3214
      %v3216 = vrot.slane %v3211, %v3215
      %v3218 = vadd.f32 %v3208, %v3216
      %v3219 = vadd.f32 %v3209, %v3216
      %s3220 = scalar_lea.vmem %s16, 64
      %v3221 = vld [vmem:[%s3220] sm:$0xff]
      %v3222 = vld [vmem:[%s3220 + $0x8] sm:$0xff]
      %v3223 = vld [vmem:[%s3220 + $0x10] sm:$0xff]
      %v3224 = vld [vmem:[%s3220 + $0x18] sm:$0xff]
      %v3225 = vld [vmem:[%s3220 + $0x20] sm:$0xff]
      %v3226 = vld [vmem:[%s3220 + $0x28] sm:$0xff]
      %v3227 = vld [vmem:[%s3220 + $0x30] sm:$0xff]
      %v3228 = vld [vmem:[%s3220 + $0x38] sm:$0xff]
      %v3230 = vsel %vm809, %v2155, 0
      %v3233 = vsel %vm809, %v2156, 0
      %3235 = vmatprep.subr.mxu0 0.0
      %3236 = vmatpush1.msra.mxu0 %v3225
      %3237 = vmatprep.subr.mxu0 0.0
      %3238 = vmatpush1.msra.mxu0 %v3226
      %3239 = vmatprep.subr.mxu0 0.0
      %3240 = vmatpush1.msra.mxu0 %v3227
      %3241 = vmatprep.subr.mxu0 0.0
      %3242 = vmatpush1.msra.mxu0 %v3228
      %3243 = vmatprep.subr.mxu0 0.0
      %3244 = vmatpush1.msra.mxu0 0.0
      %3245 = vmatprep.subr.mxu0 0.0
      %3246 = vmatpush1.msra.mxu0 0.0
      %3247 = vmatprep.subr.mxu0 0.0
      %3248 = vmatpush1.msra.mxu0 0.0
      %3249 = vmatprep.subr.mxu0 0.0
      %3250 = vmatpush1.msra.mxu0 0.0
      %3251 = vmatprep.subr.mxu0 0.0
      %3252 = vmatpush1.msra.mxu0 0.0
      %3253 = vmatprep.subr.mxu0 0.0
      %3254 = vmatpush1.msra.mxu0 0.0
      %3255 = vmatprep.subr.mxu0 0.0
      %3256 = vmatpush1.msra.mxu0 0.0
      %3257 = vmatprep.subr.mxu0 0.0
      %3258 = vmatpush1.msra.mxu0 0.0
      %3259 = vmatprep.subr.mxu0 0.0
      %3260 = vmatpush1.msra.mxu0 0.0
      %3261 = vmatprep.subr.mxu0 0.0
      %3262 = vmatpush1.msra.mxu0 0.0
      %3263 = vmatprep.subr.mxu0 0.0
      %3264 = vmatpush1.msra.mxu0 0.0
      %3265 = vmatprep.subr.mxu0 0.0
      %3266 = vmatpush1.msra.mxu0 0.0
      %3267 = vmatprep.subr.mxu0 0.0
      %3268 = vmatpush1.msra.mxu0 0.0
      %3269 = vmatprep.subr.mxu0 0.0
      %3270 = vmatpush1.msra.mxu0 0.0
      %3271 = vmatprep.subr.mxu0 0.0
      %3272 = vmatpush1.msra.mxu0 0.0
      %3273 = vmatprep.subr.mxu0 0.0
      %3274 = vmatpush1.msra.mxu0 0.0
      %3275 = vmatprep.subr.mxu0 0.0
      %3276 = vmatpush1.msra.mxu0 0.0
      %3277 = vmatprep.subr.mxu0 0.0
      %3278 = vmatpush1.msra.mxu0 0.0
      %3279 = vmatprep.subr.mxu0 0.0
      %3280 = vmatpush1.msra.mxu0 0.0
      %3281 = vmatprep.subr.mxu0 0.0
      %3282 = vmatpush1.msra.mxu0 0.0
      %3283 = vmatprep.subr.mxu0 0.0
      %3284 = vmatpush1.msra.mxu0 0.0
      %3285 = vmatprep.subr.mxu0 0.0
      %3286 = vmatpush1.msra.mxu0 0.0
      %3287 = vmatprep.subr.mxu0 0.0
      %3288 = vmatpush1.msra.mxu0 0.0
      %3289 = vmatprep.subr.mxu0 0.0
      %3290 = vmatpush1.msra.mxu0 0.0
      %3291 = vmatprep.subr.mxu0 0.0
      %3292 = vmatpush1.msra.mxu0 0.0
      %3293 = vmatprep.subr.mxu0 0.0
      %3294 = vmatpush1.msra.mxu0 0.0
      %3295 = vmatprep.subr.mxu0 0.0
      %3296 = vmatpush1.msra.mxu0 0.0
      %3297 = vmatprep.subr.mxu0 0.0
      %3298 = vmatpush1.msra.mxu0 0.0
      %3299 = vmatprep.mubr.f32.mxu0 0.0
      %3300 = vmatmul.mubr.f32.gmra.mrb[0].mxu0 %v3230
      %v3301 = vpop.f32.mrb[0].mxu0
      %v3302 = vadd.f32 0.0, %v3301
      %v3303 = vpop.f32.mrb[0].mxu0
      %3304 = vmatprep.mubr.f32.mxu0 0.0
      %3305 = vmatmul.mubr.f32.gmra.mrb[0].mxu0 %v3233
      %v3306 = vpop.f32.mrb[0].mxu0
      %v3307 = vadd.f32 0.0, %v3306
      %v3308 = vpop.f32.mrb[0].mxu0
      %3309 = vdwg.mxu0
      %v3311 = vsel %vm809, %v3218, 0
      %v3314 = vsel %vm809, %v3219, 0
      %3316 = vmatprep.subr.mxu0 0.0
      %3317 = vmatpush1.msra.mxu0 %v3221
      %3318 = vmatprep.subr.mxu0 0.0
      %3319 = vmatpush1.msra.mxu0 %v3222
      %3320 = vmatprep.subr.mxu0 0.0
      %3321 = vmatpush1.msra.mxu0 %v3223
      %3322 = vmatprep.subr.mxu0 0.0
      %3323 = vmatpush1.msra.mxu0 %v3224
      %3324 = vmatprep.subr.mxu0 0.0
      %3325 = vmatpush1.msra.mxu0 0.0
      %3326 = vmatprep.subr.mxu0 0.0
      %3327 = vmatpush1.msra.mxu0 0.0
      %3328 = vmatprep.subr.mxu0 0.0
      %3329 = vmatpush1.msra.mxu0 0.0
      %3330 = vmatprep.subr.mxu0 0.0
      %3331 = vmatpush1.msra.mxu0 0.0
      %3332 = vmatprep.subr.mxu0 0.0
      %3333 = vmatpush1.msra.mxu0 0.0
      %3334 = vmatprep.subr.mxu0 0.0
      %3335 = vmatpush1.msra.mxu0 0.0
      %3336 = vmatprep.subr.mxu0 0.0
      %3337 = vmatpush1.msra.mxu0 0.0
      %3338 = vmatprep.subr.mxu0 0.0
      %3339 = vmatpush1.msra.mxu0 0.0
      %3340 = vmatprep.subr.mxu0 0.0
      %3341 = vmatpush1.msra.mxu0 0.0
      %3342 = vmatprep.subr.mxu0 0.0
      %3343 = vmatpush1.msra.mxu0 0.0
      %3344 = vmatprep.subr.mxu0 0.0
      %3345 = vmatpush1.msra.mxu0 0.0
      %3346 = vmatprep.subr.mxu0 0.0
      %3347 = vmatpush1.msra.mxu0 0.0
      %3348 = vmatprep.subr.mxu0 0.0
      %3349 = vmatpush1.msra.mxu0 0.0
      %3350 = vmatprep.subr.mxu0 0.0
      %3351 = vmatpush1.msra.mxu0 0.0
      %3352 = vmatprep.subr.mxu0 0.0
      %3353 = vmatpush1.msra.mxu0 0.0
      %3354 = vmatprep.subr.mxu0 0.0
      %3355 = vmatpush1.msra.mxu0 0.0
      %3356 = vmatprep.subr.mxu0 0.0
      %3357 = vmatpush1.msra.mxu0 0.0
      %3358 = vmatprep.subr.mxu0 0.0
      %3359 = vmatpush1.msra.mxu0 0.0
      %3360 = vmatprep.subr.mxu0 0.0
      %3361 = vmatpush1.msra.mxu0 0.0
      %3362 = vmatprep.subr.mxu0 0.0
      %3363 = vmatpush1.msra.mxu0 0.0
      %3364 = vmatprep.subr.mxu0 0.0
      %3365 = vmatpush1.msra.mxu0 0.0
      %3366 = vmatprep.subr.mxu0 0.0
      %3367 = vmatpush1.msra.mxu0 0.0
      %3368 = vmatprep.subr.mxu0 0.0
      %3369 = vmatpush1.msra.mxu0 0.0
      %3370 = vmatprep.subr.mxu0 0.0
      %3371 = vmatpush1.msra.mxu0 0.0
      %3372 = vmatprep.subr.mxu0 0.0
      %3373 = vmatpush1.msra.mxu0 0.0
      %3374 = vmatprep.subr.mxu0 0.0
      %3375 = vmatpush1.msra.mxu0 0.0
      %3376 = vmatprep.subr.mxu0 0.0
      %3377 = vmatpush1.msra.mxu0 0.0
      %3378 = vmatprep.subr.mxu0 0.0
      %3379 = vmatpush1.msra.mxu0 0.0
      %3380 = vmatprep.mubr.f32.mxu0 0.0
      %3381 = vmatmul.mubr.f32.gmra.mrb[0].mxu0 %v3311
      %v3382 = vpop.f32.mrb[0].mxu0
      %v3383 = vadd.f32 %v3302, %v3382
      %v3384 = vpop.f32.mrb[0].mxu0
      %3385 = vmatprep.mubr.f32.mxu0 0.0
      %3386 = vmatmul.mubr.f32.gmra.mrb[0].mxu0 %v3314
      %v3387 = vpop.f32.mrb[0].mxu0
      %v3388 = vadd.f32 %v3307, %v3387
      %v3389 = vpop.f32.mrb[0].mxu0
      %3390 = vdwg.mxu0
      %s3391 = scalar_lea.vmem %s17, 1
      %v3392 = vld [vmem:[%s3391] sm:$0x1]
      %v3394 = vlaneseq
      %v3395 = vshrl.u32 %v3394, 7
      %v3396 = vsub.s32 0, %v3395
      %v3397 = vrot.slane %v3392, %v3396
      %v3399 = vadd.f32 %v3383, %v3397
      %v3400 = vadd.f32 %v3388, %v3397
      %v3401 = vmax.f32 %v3399, 0.0
      %v3402 = vmax.f32 %v3400, 0.0
      %s3403 = scalar_lea.vmem %s14, 32
      %v3404 = vld [vmem:[%s3403] sm:$0xff]
      %v3405 = vld [vmem:[%s3403 + $0x8] sm:$0xff]
      %v3406 = vld [vmem:[%s3403 + $0x10] sm:$0xff]
      %v3407 = vld [vmem:[%s3403 + $0x18] sm:$0xff]
      %s3408 = scalar_lea.vmem %s15, 1
      %v3409 = vld [vmem:[%s3408] sm:$0x1]
      %v3411 = vlaneseq
      %v3412 = vshrl.u32 %v3411, 7
      %v3413 = vsub.s32 0, %v3412
      %v3414 = vrot.slane %v3409, %v3413
      %3416 = vmatprep.subr.mxu0 0.0
      %3417 = vmatpush1.msra.mxu0 %v3404
      %3418 = vmatprep.subr.mxu0 0.0
      %3419 = vmatpush1.msra.mxu0 %v3405
      %3420 = vmatprep.subr.mxu0 0.0
      %3421 = vmatpush1.msra.mxu0 %v3406
      %3422 = vmatprep.subr.mxu0 0.0
      %3423 = vmatpush1.msra.mxu0 %v3407
      %3424 = vmatprep.subr.mxu0 0.0
      %3425 = vmatpush1.msra.mxu0 0.0
      %3426 = vmatprep.subr.mxu0 0.0
      %3427 = vmatpush1.msra.mxu0 0.0
      %3428 = vmatprep.subr.mxu0 0.0
      %3429 = vmatpush1.msra.mxu0 0.0
      %3430 = vmatprep.subr.mxu0 0.0
      %3431 = vmatpush1.msra.mxu0 0.0
      %3432 = vmatprep.subr.mxu0 0.0
      %3433 = vmatpush1.msra.mxu0 0.0
      %3434 = vmatprep.subr.mxu0 0.0
      %3435 = vmatpush1.msra.mxu0 0.0
      %3436 = vmatprep.subr.mxu0 0.0
      %3437 = vmatpush1.msra.mxu0 0.0
      %3438 = vmatprep.subr.mxu0 0.0
      %3439 = vmatpush1.msra.mxu0 0.0
      %3440 = vmatprep.subr.mxu0 0.0
      %3441 = vmatpush1.msra.mxu0 0.0
      %3442 = vmatprep.subr.mxu0 0.0
      %3443 = vmatpush1.msra.mxu0 0.0
      %3444 = vmatprep.subr.mxu0 0.0
      %3445 = vmatpush1.msra.mxu0 0.0
      %3446 = vmatprep.subr.mxu0 0.0
      %3447 = vmatpush1.msra.mxu0 0.0
      %3448 = vmatprep.subr.mxu0 0.0
      %3449 = vmatpush1.msra.mxu0 0.0
      %3450 = vmatprep.subr.mxu0 0.0
      %3451 = vmatpush1.msra.mxu0 0.0
      %3452 = vmatprep.subr.mxu0 0.0
      %3453 = vmatpush1.msra.mxu0 0.0
      %3454 = vmatprep.subr.mxu0 0.0
      %3455 = vmatpush1.msra.mxu0 0.0
      %3456 = vmatprep.subr.mxu0 0.0
      %3457 = vmatpush1.msra.mxu0 0.0
      %3458 = vmatprep.subr.mxu0 0.0
      %3459 = vmatpush1.msra.mxu0 0.0
      %3460 = vmatprep.subr.mxu0 0.0
      %3461 = vmatpush1.msra.mxu0 0.0
      %3462 = vmatprep.subr.mxu0 0.0
      %3463 = vmatpush1.msra.mxu0 0.0
      %3464 = vmatprep.subr.mxu0 0.0
      %3465 = vmatpush1.msra.mxu0 0.0
      %3466 = vmatprep.subr.mxu0 0.0
      %3467 = vmatpush1.msra.mxu0 0.0
      %3468 = vmatprep.subr.mxu0 0.0
      %3469 = vmatpush1.msra.mxu0 0.0
      %3470 = vmatprep.subr.mxu0 0.0
      %3471 = vmatpush1.msra.mxu0 0.0
      %3472 = vmatprep.subr.mxu0 0.0
      %3473 = vmatpush1.msra.mxu0 0.0
      %3474 = vmatprep.subr.mxu0 0.0
      %3475 = vmatpush1.msra.mxu0 0.0
      %3476 = vmatprep.subr.mxu0 0.0
      %3477 = vmatpush1.msra.mxu0 0.0
      %3478 = vmatprep.subr.mxu0 0.0
      %3479 = vmatpush1.msra.mxu0 0.0
      %3480 = vmatprep.mubr.f32.mxu0 0.0
      %3481 = vmatmul.mubr.f32.gmra.mrb[0].mxu0 %v3230
      %v3482 = vpop.f32.mrb[0].mxu0
      %v3483 = vadd.f32 %v3414, %v3482
      %v3484 = vpop.f32.mrb[0].mxu0
      %3485 = vmatprep.mubr.f32.mxu0 0.0
      %3486 = vmatmul.mubr.f32.gmra.mrb[0].mxu0 %v3233
      %v3487 = vpop.f32.mrb[0].mxu0
      %v3488 = vadd.f32 %v3414, %v3487
      %v3489 = vpop.f32.mrb[0].mxu0
      %3490 = vdwg.mxu0
      %v3491 = vmax.f32 %v3483, 0.0
      %v3492 = vmax.f32 %v3488, 0.0
      %s3493 = scalar_lea.vmem %s4, 64
      %v3494 = vld [vmem:[%s3493] sm:$0xff]
      %v3495 = vld [vmem:[%s3493 + $0x8] sm:$0xff]
      %v3496 = vld [vmem:[%s3493 + $0x10] sm:$0xff]
      %v3497 = vld [vmem:[%s3493 + $0x18] sm:$0xff]
      %v3499 = vsel %vm809, %v3401, 0
      %v3502 = vsel %vm809, %v3402, 0
      %3504 = vmatprep.subr.mxu0 0.0
      %3505 = vmatpush1.msra.mxu0 %v3494
      %3506 = vmatprep.subr.mxu0 0.0
      %3507 = vmatpush1.msra.mxu0 %v3495
      %3508 = vmatprep.subr.mxu0 0.0
      %3509 = vmatpush1.msra.mxu0 %v3496
      %3510 = vmatprep.subr.mxu0 0.0
      %3511 = vmatpush1.msra.mxu0 %v3497
      %3512 = vmatprep.subr.mxu0 0.0
      %3513 = vmatpush1.msra.mxu0 0.0
      %3514 = vmatprep.subr.mxu0 0.0
      %3515 = vmatpush1.msra.mxu0 0.0
      %3516 = vmatprep.subr.mxu0 0.0
      %3517 = vmatpush1.msra.mxu0 0.0
      %3518 = vmatprep.subr.mxu0 0.0
      %3519 = vmatpush1.msra.mxu0 0.0
      %3520 = vmatprep.subr.mxu0 0.0
      %3521 = vmatpush1.msra.mxu0 0.0
      %3522 = vmatprep.subr.mxu0 0.0
      %3523 = vmatpush1.msra.mxu0 0.0
      %3524 = vmatprep.subr.mxu0 0.0
      %3525 = vmatpush1.msra.mxu0 0.0
      %3526 = vmatprep.subr.mxu0 0.0
      %3527 = vmatpush1.msra.mxu0 0.0
      %3528 = vmatprep.subr.mxu0 0.0
      %3529 = vmatpush1.msra.mxu0 0.0
      %3530 = vmatprep.subr.mxu0 0.0
      %3531 = vmatpush1.msra.mxu0 0.0
      %3532 = vmatprep.subr.mxu0 0.0
      %3533 = vmatpush1.msra.mxu0 0.0
      %3534 = vmatprep.subr.mxu0 0.0
      %3535 = vmatpush1.msra.mxu0 0.0
      %3536 = vmatprep.subr.mxu0 0.0
      %3537 = vmatpush1.msra.mxu0 0.0
      %3538 = vmatprep.subr.mxu0 0.0
      %3539 = vmatpush1.msra.mxu0 0.0
      %3540 = vmatprep.subr.mxu0 0.0
      %3541 = vmatpush1.msra.mxu0 0.0
      %3542 = vmatprep.subr.mxu0 0.0
      %3543 = vmatpush1.msra.mxu0 0.0
      %3544 = vmatprep.subr.mxu0 0.0
      %3545 = vmatpush1.msra.mxu0 0.0
      %3546 = vmatprep.subr.mxu0 0.0
      %3547 = vmatpush1.msra.mxu0 0.0
      %3548 = vmatprep.subr.mxu0 0.0
      %3549 = vmatpush1.msra.mxu0 0.0
      %3550 = vmatprep.subr.mxu0 0.0
      %3551 = vmatpush1.msra.mxu0 0.0
      %3552 = vmatprep.subr.mxu0 0.0
      %3553 = vmatpush1.msra.mxu0 0.0
      %3554 = vmatprep.subr.mxu0 0.0
      %3555 = vmatpush1.msra.mxu0 0.0
      %3556 = vmatprep.subr.mxu0 0.0
      %3557 = vmatpush1.msra.mxu0 0.0
      %3558 = vmatprep.subr.mxu0 0.0
      %3559 = vmatpush1.msra.mxu0 0.0
      %3560 = vmatprep.subr.mxu0 0.0
      %3561 = vmatpush1.msra.mxu0 0.0
      %3562 = vmatprep.subr.mxu0 0.0
      %3563 = vmatpush1.msra.mxu0 0.0
      %3564 = vmatprep.subr.mxu0 0.0
      %3565 = vmatpush1.msra.mxu0 0.0
      %3566 = vmatprep.subr.mxu0 0.0
      %3567 = vmatpush1.msra.mxu0 0.0
      %3568 = vmatprep.mubr.f32.mxu0 0.0
      %3569 = vmatmul.mubr.f32.gmra.mrb[0].mxu0 %v3499
      %v3570 = vpop.f32.mrb[0].mxu0
      %v3571 = vadd.f32 0.0, %v3570
      %v3572 = vpop.f32.mrb[0].mxu0
      %3573 = vmatprep.mubr.f32.mxu0 0.0
      %3574 = vmatmul.mubr.f32.gmra.mrb[0].mxu0 %v3502
      %v3575 = vpop.f32.mrb[0].mxu0
      %v3576 = vadd.f32 0.0, %v3575
      %v3577 = vpop.f32.mrb[0].mxu0
      %3578 = vdwg.mxu0
      %3581 = vrot.lane.b32.xlu0 %v3571, 96
      %v3582 = vpop.permute.xlu0 %3581
      %3583 = vrot.lane.b32.xlu0 %v3576, 96
      %v3584 = vpop.permute.xlu0 %3583
      %3587 = vmatprep.subr.mxu0 0.0
      %3588 = vmatpush1.msra.mxu0 %v3582
      %3589 = vmatprep.subr.mxu0 0.0
      %3590 = vmatpush1.msra.mxu0 %v3584
      %3591 = vmatprep.subr.mxu0 0.0
      %3592 = vmatpush1.msra.mxu0 0.0
      %3593 = vmatprep.subr.mxu0 0.0
      %3594 = vmatpush1.msra.mxu0 0.0
      %3595 = vmatprep.subr.mxu0 0.0
      %3596 = vmatpush1.msra.mxu0 0.0
      %3597 = vmatprep.subr.mxu0 0.0
      %3598 = vmatpush1.msra.mxu0 0.0
      %3599 = vmatprep.subr.mxu0 0.0
      %3600 = vmatpush1.msra.mxu0 0.0
      %3601 = vmatprep.subr.mxu0 0.0
      %3602 = vmatpush1.msra.mxu0 0.0
      %3603 = vmatprep.subr.mxu0 0.0
      %3604 = vmatpush1.msra.mxu0 0.0
      %3605 = vmatprep.subr.mxu0 0.0
      %3606 = vmatpush1.msra.mxu0 0.0
      %3607 = vmatprep.subr.mxu0 0.0
      %3608 = vmatpush1.msra.mxu0 0.0
      %3609 = vmatprep.subr.mxu0 0.0
      %3610 = vmatpush1.msra.mxu0 0.0
      %3611 = vmatprep.subr.mxu0 0.0
      %3612 = vmatpush1.msra.mxu0 0.0
      %3613 = vmatprep.subr.mxu0 0.0
      %3614 = vmatpush1.msra.mxu0 0.0
      %3615 = vmatprep.subr.mxu0 0.0
      %3616 = vmatpush1.msra.mxu0 0.0
      %3617 = vmatprep.subr.mxu0 0.0
      %3618 = vmatpush1.msra.mxu0 0.0
      %3619 = vmatprep.subr.mxu0 0.0
      %3620 = vmatpush1.msra.mxu0 0.0
      %3621 = vmatprep.subr.mxu0 0.0
      %3622 = vmatpush1.msra.mxu0 0.0
      %3623 = vmatprep.subr.mxu0 0.0
      %3624 = vmatpush1.msra.mxu0 0.0
      %3625 = vmatprep.subr.mxu0 0.0
      %3626 = vmatpush1.msra.mxu0 0.0
      %3627 = vmatprep.subr.mxu0 0.0
      %3628 = vmatpush1.msra.mxu0 0.0
      %3629 = vmatprep.subr.mxu0 0.0
      %3630 = vmatpush1.msra.mxu0 0.0
      %3631 = vmatprep.subr.mxu0 0.0
      %3632 = vmatpush1.msra.mxu0 0.0
      %3633 = vmatprep.subr.mxu0 0.0
      %3634 = vmatpush1.msra.mxu0 0.0
      %3635 = vmatprep.subr.mxu0 0.0
      %3636 = vmatpush1.msra.mxu0 0.0
      %3637 = vmatprep.subr.mxu0 0.0
      %3638 = vmatpush1.msra.mxu0 0.0
      %3639 = vmatprep.subr.mxu0 0.0
      %3640 = vmatpush1.msra.mxu0 0.0
      %3641 = vmatprep.subr.mxu0 0.0
      %3642 = vmatpush1.msra.mxu0 0.0
      %3643 = vmatprep.subr.mxu0 0.0
      %3644 = vmatpush1.msra.mxu0 0.0
      %3645 = vmatprep.subr.mxu0 0.0
      %3646 = vmatpush1.msra.mxu0 0.0
      %3647 = vmatprep.subr.mxu0 0.0
      %3648 = vmatpush1.msra.mxu0 0.0
      %3649 = vmatprep.subr.mxu0 0.0
      %3650 = vmatpush1.msra.mxu0 0.0
      %3651 = vmatprep.mubr.f32.mxu0 0.0
      %3652 = vmatmul.mubr.f32.gmra.mrb[0].mxu0 %v906
      %v3653 = vpop.f32.mrb[0].mxu0
      %v3654 = vadd.f32 0.0, %v3653
      %v3655 = vpop.f32.mrb[0].mxu0
      %3656 = vmatprep.mubr.f32.mxu0 0.0
      %3657 = vmatmul.mubr.f32.gmra.mrb[0].mxu0 %v909
      %v3658 = vpop.f32.mrb[0].mxu0
      %v3659 = vadd.f32 0.0, %v3658
      %v3660 = vpop.f32.mrb[0].mxu0
      %3661 = vdwg.mxu0
      %3662 = vmatprep.subr.mxu0 0.0
      %3663 = vmatpush1.msra.mxu0 %v3571
      %3664 = vmatprep.subr.mxu0 0.0
      %3665 = vmatpush1.msra.mxu0 %v3576
      %3666 = vmatprep.subr.mxu0 0.0
      %3667 = vmatpush1.msra.mxu0 0.0
      %3668 = vmatprep.subr.mxu0 0.0
      %3669 = vmatpush1.msra.mxu0 0.0
      %3670 = vmatprep.subr.mxu0 0.0
      %3671 = vmatpush1.msra.mxu0 0.0
      %3672 = vmatprep.subr.mxu0 0.0
      %3673 = vmatpush1.msra.mxu0 0.0
      %3674 = vmatprep.subr.mxu0 0.0
      %3675 = vmatpush1.msra.mxu0 0.0
      %3676 = vmatprep.subr.mxu0 0.0
      %3677 = vmatpush1.msra.mxu0 0.0
      %3678 = vmatprep.subr.mxu0 0.0
      %3679 = vmatpush1.msra.mxu0 0.0
      %3680 = vmatprep.subr.mxu0 0.0
      %3681 = vmatpush1.msra.mxu0 0.0
      %3682 = vmatprep.subr.mxu0 0.0
      %3683 = vmatpush1.msra.mxu0 0.0
      %3684 = vmatprep.subr.mxu0 0.0
      %3685 = vmatpush1.msra.mxu0 0.0
      %3686 = vmatprep.subr.mxu0 0.0
      %3687 = vmatpush1.msra.mxu0 0.0
      %3688 = vmatprep.subr.mxu0 0.0
      %3689 = vmatpush1.msra.mxu0 0.0
      %3690 = vmatprep.subr.mxu0 0.0
      %3691 = vmatpush1.msra.mxu0 0.0
      %3692 = vmatprep.subr.mxu0 0.0
      %3693 = vmatpush1.msra.mxu0 0.0
      %3694 = vmatprep.subr.mxu0 0.0
      %3695 = vmatpush1.msra.mxu0 0.0
      %3696 = vmatprep.subr.mxu0 0.0
      %3697 = vmatpush1.msra.mxu0 0.0
      %3698 = vmatprep.subr.mxu0 0.0
      %3699 = vmatpush1.msra.mxu0 0.0
      %3700 = vmatprep.subr.mxu0 0.0
      %3701 = vmatpush1.msra.mxu0 0.0
      %3702 = vmatprep.subr.mxu0 0.0
      %3703 = vmatpush1.msra.mxu0 0.0
      %3704 = vmatprep.subr.mxu0 0.0
      %3705 = vmatpush1.msra.mxu0 0.0
      %3706 = vmatprep.subr.mxu0 0.0
      %3707 = vmatpush1.msra.mxu0 0.0
      %3708 = vmatprep.subr.mxu0 0.0
      %3709 = vmatpush1.msra.mxu0 0.0
      %3710 = vmatprep.subr.mxu0 0.0
      %3711 = vmatpush1.msra.mxu0 0.0
      %3712 = vmatprep.subr.mxu0 0.0
      %3713 = vmatpush1.msra.mxu0 0.0
      %3714 = vmatprep.subr.mxu0 0.0
      %3715 = vmatpush1.msra.mxu0 0.0
      %3716 = vmatprep.subr.mxu0 0.0
      %3717 = vmatpush1.msra.mxu0 0.0
      %3718 = vmatprep.subr.mxu0 0.0
      %3719 = vmatpush1.msra.mxu0 0.0
      %3720 = vmatprep.subr.mxu0 0.0
      %3721 = vmatpush1.msra.mxu0 0.0
      %3722 = vmatprep.subr.mxu0 0.0
      %3723 = vmatpush1.msra.mxu0 0.0
      %3724 = vmatprep.subr.mxu0 0.0
      %3725 = vmatpush1.msra.mxu0 0.0
      %3726 = vmatprep.mubr.f32.mxu0 0.0
      %3727 = vmatmul.mubr.f32.gmra.mrb[0].mxu0 %v987
      %v3728 = vpop.f32.mrb[0].mxu0
      %v3729 = vadd.f32 %v3654, %v3728
      %v3730 = vpop.f32.mrb[0].mxu0
      %3731 = vmatprep.mubr.f32.mxu0 0.0
      %3732 = vmatmul.mubr.f32.gmra.mrb[0].mxu0 %v990
      %v3733 = vpop.f32.mrb[0].mxu0
      %v3734 = vadd.f32 %v3659, %v3733
      %v3735 = vpop.f32.mrb[0].mxu0
      %3736 = vdwg.mxu0
      %3737 = vrot.lane.b32.xlu0 %v3571, 64
      %v3738 = vpop.permute.xlu0 %3737
      %3739 = vrot.lane.b32.xlu0 %v3576, 64
      %v3740 = vpop.permute.xlu0 %3739
      %3743 = vmatprep.subr.mxu0 0.0
      %3744 = vmatpush1.msra.mxu0 %v3738
      %3745 = vmatprep.subr.mxu0 0.0
      %3746 = vmatpush1.msra.mxu0 %v3740
      %3747 = vmatprep.subr.mxu0 0.0
      %3748 = vmatpush1.msra.mxu0 0.0
      %3749 = vmatprep.subr.mxu0 0.0
      %3750 = vmatpush1.msra.mxu0 0.0
      %3751 = vmatprep.subr.mxu0 0.0
      %3752 = vmatpush1.msra.mxu0 0.0
      %3753 = vmatprep.subr.mxu0 0.0
      %3754 = vmatpush1.msra.mxu0 0.0
      %3755 = vmatprep.subr.mxu0 0.0
      %3756 = vmatpush1.msra.mxu0 0.0
      %3757 = vmatprep.subr.mxu0 0.0
      %3758 = vmatpush1.msra.mxu0 0.0
      %3759 = vmatprep.subr.mxu0 0.0
      %3760 = vmatpush1.msra.mxu0 0.0
      %3761 = vmatprep.subr.mxu0 0.0
      %3762 = vmatpush1.msra.mxu0 0.0
      %3763 = vmatprep.subr.mxu0 0.0
      %3764 = vmatpush1.msra.mxu0 0.0
      %3765 = vmatprep.subr.mxu0 0.0
      %3766 = vmatpush1.msra.mxu0 0.0
      %3767 = vmatprep.subr.mxu0 0.0
      %3768 = vmatpush1.msra.mxu0 0.0
      %3769 = vmatprep.subr.mxu0 0.0
      %3770 = vmatpush1.msra.mxu0 0.0
      %3771 = vmatprep.subr.mxu0 0.0
      %3772 = vmatpush1.msra.mxu0 0.0
      %3773 = vmatprep.subr.mxu0 0.0
      %3774 = vmatpush1.msra.mxu0 0.0
      %3775 = vmatprep.subr.mxu0 0.0
      %3776 = vmatpush1.msra.mxu0 0.0
      %3777 = vmatprep.subr.mxu0 0.0
      %3778 = vmatpush1.msra.mxu0 0.0
      %3779 = vmatprep.subr.mxu0 0.0
      %3780 = vmatpush1.msra.mxu0 0.0
      %3781 = vmatprep.subr.mxu0 0.0
      %3782 = vmatpush1.msra.mxu0 0.0
      %3783 = vmatprep.subr.mxu0 0.0
      %3784 = vmatpush1.msra.mxu0 0.0
      %3785 = vmatprep.subr.mxu0 0.0
      %3786 = vmatpush1.msra.mxu0 0.0
      %3787 = vmatprep.subr.mxu0 0.0
      %3788 = vmatpush1.msra.mxu0 0.0
      %3789 = vmatprep.subr.mxu0 0.0
      %3790 = vmatpush1.msra.mxu0 0.0
      %3791 = vmatprep.subr.mxu0 0.0
      %3792 = vmatpush1.msra.mxu0 0.0
      %3793 = vmatprep.subr.mxu0 0.0
      %3794 = vmatpush1.msra.mxu0 0.0
      %3795 = vmatprep.subr.mxu0 0.0
      %3796 = vmatpush1.msra.mxu0 0.0
      %3797 = vmatprep.subr.mxu0 0.0
      %3798 = vmatpush1.msra.mxu0 0.0
      %3799 = vmatprep.subr.mxu0 0.0
      %3800 = vmatpush1.msra.mxu0 0.0
      %3801 = vmatprep.subr.mxu0 0.0
      %3802 = vmatpush1.msra.mxu0 0.0
      %3803 = vmatprep.subr.mxu0 0.0
      %3804 = vmatpush1.msra.mxu0 0.0
      %3805 = vmatprep.subr.mxu0 0.0
      %3806 = vmatpush1.msra.mxu0 0.0
      %3807 = vmatprep.mubr.f32.mxu0 0.0
      %3808 = vmatmul.mubr.f32.gmra.mrb[0].mxu0 %v1077
      %v3809 = vpop.f32.mrb[0].mxu0
      %v3810 = vadd.f32 0.0, %v3809
      %v3811 = vpop.f32.mrb[0].mxu0
      %3812 = vmatprep.mubr.f32.mxu0 0.0
      %3813 = vmatmul.mubr.f32.gmra.mrb[0].mxu0 %v1080
      %v3814 = vpop.f32.mrb[0].mxu0
      %v3815 = vadd.f32 0.0, %v3814
      %v3816 = vpop.f32.mrb[0].mxu0
      %3817 = vdwg.mxu0
      %v3818 = vadd.f32 %v3729, %v3810
      %v3819 = vadd.f32 %v3734, %v3815
      %s3820 = scalar_lea.vmem %s5, 2
      %v3821 = vld [vmem:[%s3820] sm:$0x1]
      %v3823 = vlaneseq
      %v3824 = vshrl.u32 %v3823, 7
      %v3825 = vsub.s32 0, %v3824
      %v3826 = vrot.slane %v3821, %v3825
      %v3828 = vadd.f32 %v3818, %v3826
      %v3829 = vadd.f32 %v3819, %v3826
      %v3830 = vmax.f32 %v3828, 0.0
      %v3831 = vmax.f32 %v3829, 0.0
      %s3832 = scalar_lea.vmem %s6, 64
      %v3833 = vld [vmem:[%s3832] sm:$0xff]
      %v3834 = vld [vmem:[%s3832 + $0x8] sm:$0xff]
      %v3835 = vld [vmem:[%s3832 + $0x10] sm:$0xff]
      %v3836 = vld [vmem:[%s3832 + $0x18] sm:$0xff]
      %s3837 = scalar_lea.vmem %s7, 2
      %v3838 = vld [vmem:[%s3837] sm:$0x1]
      %v3840 = vlaneseq
      %v3841 = vshrl.u32 %v3840, 7
      %v3842 = vsub.s32 0, %v3841
      %v3843 = vrot.slane %v3838, %v3842
      %v3846 = vsel %vm809, %v3830, 0
      %v3849 = vsel %vm809, %v3831, 0
      %3851 = vmatprep.subr.mxu0 0.0
      %3852 = vmatpush1.msra.mxu0 %v3833
      %3853 = vmatprep.subr.mxu0 0.0
      %3854 = vmatpush1.msra.mxu0 %v3834
      %3855 = vmatprep.subr.mxu0 0.0
      %3856 = vmatpush1.msra.mxu0 %v3835
      %3857 = vmatprep.subr.mxu0 0.0
      %3858 = vmatpush1.msra.mxu0 %v3836
      %3859 = vmatprep.subr.mxu0 0.0
      %3860 = vmatpush1.msra.mxu0 0.0
      %3861 = vmatprep.subr.mxu0 0.0
      %3862 = vmatpush1.msra.mxu0 0.0
      %3863 = vmatprep.subr.mxu0 0.0
      %3864 = vmatpush1.msra.mxu0 0.0
      %3865 = vmatprep.subr.mxu0 0.0
      %3866 = vmatpush1.msra.mxu0 0.0
      %3867 = vmatprep.subr.mxu0 0.0
      %3868 = vmatpush1.msra.mxu0 0.0
      %3869 = vmatprep.subr.mxu0 0.0
      %3870 = vmatpush1.msra.mxu0 0.0
      %3871 = vmatprep.subr.mxu0 0.0
      %3872 = vmatpush1.msra.mxu0 0.0
      %3873 = vmatprep.subr.mxu0 0.0
      %3874 = vmatpush1.msra.mxu0 0.0
      %3875 = vmatprep.subr.mxu0 0.0
      %3876 = vmatpush1.msra.mxu0 0.0
      %3877 = vmatprep.subr.mxu0 0.0
      %3878 = vmatpush1.msra.mxu0 0.0
      %3879 = vmatprep.subr.mxu0 0.0
      %3880 = vmatpush1.msra.mxu0 0.0
      %3881 = vmatprep.subr.mxu0 0.0
      %3882 = vmatpush1.msra.mxu0 0.0
      %3883 = vmatprep.subr.mxu0 0.0
      %3884 = vmatpush1.msra.mxu0 0.0
      %3885 = vmatprep.subr.mxu0 0.0
      %3886 = vmatpush1.msra.mxu0 0.0
      %3887 = vmatprep.subr.mxu0 0.0
      %3888 = vmatpush1.msra.mxu0 0.0
      %3889 = vmatprep.subr.mxu0 0.0
      %3890 = vmatpush1.msra.mxu0 0.0
      %3891 = vmatprep.subr.mxu0 0.0
      %3892 = vmatpush1.msra.mxu0 0.0
      %3893 = vmatprep.subr.mxu0 0.0
      %3894 = vmatpush1.msra.mxu0 0.0
      %3895 = vmatprep.subr.mxu0 0.0
      %3896 = vmatpush1.msra.mxu0 0.0
      %3897 = vmatprep.subr.mxu0 0.0
      %3898 = vmatpush1.msra.mxu0 0.0
      %3899 = vmatprep.subr.mxu0 0.0
      %3900 = vmatpush1.msra.mxu0 0.0
      %3901 = vmatprep.subr.mxu0 0.0
      %3902 = vmatpush1.msra.mxu0 0.0
      %3903 = vmatprep.subr.mxu0 0.0
      %3904 = vmatpush1.msra.mxu0 0.0
      %3905 = vmatprep.subr.mxu0 0.0
      %3906 = vmatpush1.msra.mxu0 0.0
      %3907 = vmatprep.subr.mxu0 0.0
      %3908 = vmatpush1.msra.mxu0 0.0
      %3909 = vmatprep.subr.mxu0 0.0
      %3910 = vmatpush1.msra.mxu0 0.0
      %3911 = vmatprep.subr.mxu0 0.0
      %3912 = vmatpush1.msra.mxu0 0.0
      %3913 = vmatprep.subr.mxu0 0.0
      %3914 = vmatpush1.msra.mxu0 0.0
      %3915 = vmatprep.mubr.f32.mxu0 0.0
      %3916 = vmatmul.mubr.f32.gmra.mrb[0].mxu0 %v3846
      %v3917 = vpop.f32.mrb[0].mxu0
      %v3918 = vadd.f32 %v3843, %v3917
      %v3919 = vpop.f32.mrb[0].mxu0
      %3920 = vmatprep.mubr.f32.mxu0 0.0
      %3921 = vmatmul.mubr.f32.gmra.mrb[0].mxu0 %v3849
      %v3922 = vpop.f32.mrb[0].mxu0
      %v3923 = vadd.f32 %v3843, %v3922
      %v3924 = vpop.f32.mrb[0].mxu0
      %3925 = vdwg.mxu0
      %3928 = vrot.lane.b32.xlu0 %v3918, 96
      %v3929 = vpop.permute.xlu0 %3928
      %3930 = vrot.lane.b32.xlu0 %v3923, 96
      %v3931 = vpop.permute.xlu0 %3930
      %v3934 = vmul.f32 %v3918, %v3929
      %v3935 = vmul.f32 %v3923, %v3931
      %v3937 = vsel %vm809, %v3934, 0
      %v3940 = vsel %vm809, %v3935, 0
      %3942 = vmatprep.subr.mxu0 0.0
      %3943 = vmatpush1.msra.mxu0 %v704
      %3944 = vmatprep.subr.mxu0 0.0
      %3945 = vmatpush1.msra.mxu0 %v705
      %3946 = vmatprep.subr.mxu0 0.0
      %3947 = vmatpush1.msra.mxu0 %v706
      %3948 = vmatprep.subr.mxu0 0.0
      %3949 = vmatpush1.msra.mxu0 %v707
      %3950 = vmatprep.subr.mxu0 0.0
      %3951 = vmatpush1.msra.mxu0 0.0
      %3952 = vmatprep.subr.mxu0 0.0
      %3953 = vmatpush1.msra.mxu0 0.0
      %3954 = vmatprep.subr.mxu0 0.0
      %3955 = vmatpush1.msra.mxu0 0.0
      %3956 = vmatprep.subr.mxu0 0.0
      %3957 = vmatpush1.msra.mxu0 0.0
      %3958 = vmatprep.subr.mxu0 0.0
      %3959 = vmatpush1.msra.mxu0 0.0
      %3960 = vmatprep.subr.mxu0 0.0
      %3961 = vmatpush1.msra.mxu0 0.0
      %3962 = vmatprep.subr.mxu0 0.0
      %3963 = vmatpush1.msra.mxu0 0.0
      %3964 = vmatprep.subr.mxu0 0.0
      %3965 = vmatpush1.msra.mxu0 0.0
      %3966 = vmatprep.subr.mxu0 0.0
      %3967 = vmatpush1.msra.mxu0 0.0
      %3968 = vmatprep.subr.mxu0 0.0
      %3969 = vmatpush1.msra.mxu0 0.0
      %3970 = vmatprep.subr.mxu0 0.0
      %3971 = vmatpush1.msra.mxu0 0.0
      %3972 = vmatprep.subr.mxu0 0.0
      %3973 = vmatpush1.msra.mxu0 0.0
      %3974 = vmatprep.subr.mxu0 0.0
      %3975 = vmatpush1.msra.mxu0 0.0
      %3976 = vmatprep.subr.mxu0 0.0
      %3977 = vmatpush1.msra.mxu0 0.0
      %3978 = vmatprep.subr.mxu0 0.0
      %3979 = vmatpush1.msra.mxu0 0.0
      %3980 = vmatprep.subr.mxu0 0.0
      %3981 = vmatpush1.msra.mxu0 0.0
      %3982 = vmatprep.subr.mxu0 0.0
      %3983 = vmatpush1.msra.mxu0 0.0
      %3984 = vmatprep.subr.mxu0 0.0
      %3985 = vmatpush1.msra.mxu0 0.0
      %3986 = vmatprep.subr.mxu0 0.0
      %3987 = vmatpush1.msra.mxu0 0.0
      %3988 = vmatprep.subr.mxu0 0.0
      %3989 = vmatpush1.msra.mxu0 0.0
      %3990 = vmatprep.subr.mxu0 0.0
      %3991 = vmatpush1.msra.mxu0 0.0
      %3992 = vmatprep.subr.mxu0 0.0
      %3993 = vmatpush1.msra.mxu0 0.0
      %3994 = vmatprep.subr.mxu0 0.0
      %3995 = vmatpush1.msra.mxu0 0.0
      %3996 = vmatprep.subr.mxu0 0.0
      %3997 = vmatpush1.msra.mxu0 0.0
      %3998 = vmatprep.subr.mxu0 0.0
      %3999 = vmatpush1.msra.mxu0 0.0
      %4000 = vmatprep.subr.mxu0 0.0
      %4001 = vmatpush1.msra.mxu0 0.0
      %4002 = vmatprep.subr.mxu0 0.0
      %4003 = vmatpush1.msra.mxu0 0.0
      %4004 = vmatprep.subr.mxu0 0.0
      %4005 = vmatpush1.msra.mxu0 0.0
      %4006 = vmatprep.mubr.f32.mxu0 0.0
      %4007 = vmatmul.mubr.f32.gmra.mrb[0].mxu0 %v3937
      %v4008 = vpop.f32.mrb[0].mxu0
      %v4009 = vadd.f32 0.0, %v4008
      %v4010 = vpop.f32.mrb[0].mxu0
      %4011 = vmatprep.mubr.f32.mxu0 0.0
      %4012 = vmatmul.mubr.f32.gmra.mrb[0].mxu0 %v3940
      %v4013 = vpop.f32.mrb[0].mxu0
      %v4014 = vadd.f32 0.0, %v4013
      %v4015 = vpop.f32.mrb[0].mxu0
      %4016 = vdwg.mxu0
      %v4018 = vsel %vm719, %v4009, 0
      %v4021 = vsel %vm719, %v4014, 0
      %4023 = vmatprep.subr.mxu0 0.0
      %4024 = vmatpush1.msra.mxu0 %v1360
      %4025 = vmatprep.subr.mxu0 0.0
      %4026 = vmatpush1.msra.mxu0 0.0
      %4027 = vmatprep.subr.mxu0 0.0
      %4028 = vmatpush1.msra.mxu0 0.0
      %4029 = vmatprep.subr.mxu0 0.0
      %4030 = vmatpush1.msra.mxu0 0.0
      %4031 = vmatprep.subr.mxu0 0.0
      %4032 = vmatpush1.msra.mxu0 0.0
      %4033 = vmatprep.subr.mxu0 0.0
      %4034 = vmatpush1.msra.mxu0 0.0
      %4035 = vmatprep.subr.mxu0 0.0
      %4036 = vmatpush1.msra.mxu0 0.0
      %4037 = vmatprep.subr.mxu0 0.0
      %4038 = vmatpush1.msra.mxu0 0.0
      %4039 = vmatprep.subr.mxu0 0.0
      %4040 = vmatpush1.msra.mxu0 0.0
      %4041 = vmatprep.subr.mxu0 0.0
      %4042 = vmatpush1.msra.mxu0 0.0
      %4043 = vmatprep.subr.mxu0 0.0
      %4044 = vmatpush1.msra.mxu0 0.0
      %4045 = vmatprep.subr.mxu0 0.0
      %4046 = vmatpush1.msra.mxu0 0.0
      %4047 = vmatprep.subr.mxu0 0.0
      %4048 = vmatpush1.msra.mxu0 0.0
      %4049 = vmatprep.subr.mxu0 0.0
      %4050 = vmatpush1.msra.mxu0 0.0
      %4051 = vmatprep.subr.mxu0 0.0
      %4052 = vmatpush1.msra.mxu0 0.0
      %4053 = vmatprep.subr.mxu0 0.0
      %4054 = vmatpush1.msra.mxu0 0.0
      %4055 = vmatprep.subr.mxu0 0.0
      %4056 = vmatpush1.msra.mxu0 0.0
      %4057 = vmatprep.subr.mxu0 0.0
      %4058 = vmatpush1.msra.mxu0 0.0
      %4059 = vmatprep.subr.mxu0 0.0
      %4060 = vmatpush1.msra.mxu0 0.0
      %4061 = vmatprep.subr.mxu0 0.0
      %4062 = vmatpush1.msra.mxu0 0.0
      %4063 = vmatprep.subr.mxu0 0.0
      %4064 = vmatpush1.msra.mxu0 0.0
      %4065 = vmatprep.subr.mxu0 0.0
      %4066 = vmatpush1.msra.mxu0 0.0
      %4067 = vmatprep.subr.mxu0 0.0
      %4068 = vmatpush1.msra.mxu0 0.0
      %4069 = vmatprep.subr.mxu0 0.0
      %4070 = vmatpush1.msra.mxu0 0.0
      %4071 = vmatprep.subr.mxu0 0.0
      %4072 = vmatpush1.msra.mxu0 0.0
      %4073 = vmatprep.subr.mxu0 0.0
      %4074 = vmatpush1.msra.mxu0 0.0
      %4075 = vmatprep.subr.mxu0 0.0
      %4076 = vmatpush1.msra.mxu0 0.0
      %4077 = vmatprep.subr.mxu0 0.0
      %4078 = vmatpush1.msra.mxu0 0.0
      %4079 = vmatprep.subr.mxu0 0.0
      %4080 = vmatpush1.msra.mxu0 0.0
      %4081 = vmatprep.subr.mxu0 0.0
      %4082 = vmatpush1.msra.mxu0 0.0
      %4083 = vmatprep.subr.mxu0 0.0
      %4084 = vmatpush1.msra.mxu0 0.0
      %4085 = vmatprep.subr.mxu0 0.0
      %4086 = vmatpush1.msra.mxu0 0.0
      %4087 = vmatprep.mubr.f32.mxu0 0.0
      %4088 = vmatmul.mubr.f32.gmra.mrb[0].mxu0 %v4018
      %v4089 = vpop.f32.mrb[0].mxu0
      %v4090 = vadd.f32 0.0, %v4089
      %v4091 = vpop.f32.mrb[0].mxu0
      %4092 = vmatprep.mubr.f32.mxu0 0.0
      %4093 = vmatmul.mubr.f32.gmra.mrb[0].mxu0 %v4021
      %v4094 = vpop.f32.mrb[0].mxu0
      %v4095 = vadd.f32 0.0, %v4094
      %v4096 = vpop.f32.mrb[0].mxu0
      %4097 = vdwg.mxu0
      %4098 = vrot.lane.b32.xlu0 %v3918, 64
      %v4099 = vpop.permute.xlu0 %4098
      %4100 = vrot.lane.b32.xlu0 %v3923, 64
      %v4101 = vpop.permute.xlu0 %4100
      %v4104 = vmul.f32 %v4090, %v4099
      %v4105 = vmul.f32 %v4095, %v4101
      %s4106 = scalar_lea.vmem %s8, 64
      %v4107 = vld [vmem:[%s4106] sm:$0xff]
      %v4108 = vld [vmem:[%s4106 + $0x8] sm:$0xff]
      %v4109 = vld [vmem:[%s4106 + $0x10] sm:$0xff]
      %v4110 = vld [vmem:[%s4106 + $0x18] sm:$0xff]
      %s4111 = scalar_lea.vmem %s9, 2
      %v4112 = vld [vmem:[%s4111] sm:$0x1]
      %v4114 = vlaneseq
      %v4115 = vshrl.u32 %v4114, 7
      %v4116 = vsub.s32 0, %v4115
      %v4117 = vrot.slane %v4112, %v4116
      %v4120 = vsel %vm809, %v4104, 0
      %v4123 = vsel %vm809, %v4105, 0
      %4125 = vmatprep.subr.mxu0 0.0
      %4126 = vmatpush1.msra.mxu0 %v4107
      %4127 = vmatprep.subr.mxu0 0.0
      %4128 = vmatpush1.msra.mxu0 %v4108
      %4129 = vmatprep.subr.mxu0 0.0
      %4130 = vmatpush1.msra.mxu0 %v4109
      %4131 = vmatprep.subr.mxu0 0.0
      %4132 = vmatpush1.msra.mxu0 %v4110
      %4133 = vmatprep.subr.mxu0 0.0
      %4134 = vmatpush1.msra.mxu0 0.0
      %4135 = vmatprep.subr.mxu0 0.0
      %4136 = vmatpush1.msra.mxu0 0.0
      %4137 = vmatprep.subr.mxu0 0.0
      %4138 = vmatpush1.msra.mxu0 0.0
      %4139 = vmatprep.subr.mxu0 0.0
      %4140 = vmatpush1.msra.mxu0 0.0
      %4141 = vmatprep.subr.mxu0 0.0
      %4142 = vmatpush1.msra.mxu0 0.0
      %4143 = vmatprep.subr.mxu0 0.0
      %4144 = vmatpush1.msra.mxu0 0.0
      %4145 = vmatprep.subr.mxu0 0.0
      %4146 = vmatpush1.msra.mxu0 0.0
      %4147 = vmatprep.subr.mxu0 0.0
      %4148 = vmatpush1.msra.mxu0 0.0
      %4149 = vmatprep.subr.mxu0 0.0
      %4150 = vmatpush1.msra.mxu0 0.0
      %4151 = vmatprep.subr.mxu0 0.0
      %4152 = vmatpush1.msra.mxu0 0.0
      %4153 = vmatprep.subr.mxu0 0.0
      %4154 = vmatpush1.msra.mxu0 0.0
      %4155 = vmatprep.subr.mxu0 0.0
      %4156 = vmatpush1.msra.mxu0 0.0
      %4157 = vmatprep.subr.mxu0 0.0
      %4158 = vmatpush1.msra.mxu0 0.0
      %4159 = vmatprep.subr.mxu0 0.0
      %4160 = vmatpush1.msra.mxu0 0.0
      %4161 = vmatprep.subr.mxu0 0.0
      %4162 = vmatpush1.msra.mxu0 0.0
      %4163 = vmatprep.subr.mxu0 0.0
      %4164 = vmatpush1.msra.mxu0 0.0
      %4165 = vmatprep.subr.mxu0 0.0
      %4166 = vmatpush1.msra.mxu0 0.0
      %4167 = vmatprep.subr.mxu0 0.0
      %4168 = vmatpush1.msra.mxu0 0.0
      %4169 = vmatprep.subr.mxu0 0.0
      %4170 = vmatpush1.msra.mxu0 0.0
      %4171 = vmatprep.subr.mxu0 0.0
      %4172 = vmatpush1.msra.mxu0 0.0
      %4173 = vmatprep.subr.mxu0 0.0
      %4174 = vmatpush1.msra.mxu0 0.0
      %4175 = vmatprep.subr.mxu0 0.0
      %4176 = vmatpush1.msra.mxu0 0.0
      %4177 = vmatprep.subr.mxu0 0.0
      %4178 = vmatpush1.msra.mxu0 0.0
      %4179 = vmatprep.subr.mxu0 0.0
      %4180 = vmatpush1.msra.mxu0 0.0
      %4181 = vmatprep.subr.mxu0 0.0
      %4182 = vmatpush1.msra.mxu0 0.0
      %4183 = vmatprep.subr.mxu0 0.0
      %4184 = vmatpush1.msra.mxu0 0.0
      %4185 = vmatprep.subr.mxu0 0.0
      %4186 = vmatpush1.msra.mxu0 0.0
      %4187 = vmatprep.subr.mxu0 0.0
      %4188 = vmatpush1.msra.mxu0 0.0
      %4189 = vmatprep.mubr.f32.mxu0 0.0
      %4190 = vmatmul.mubr.f32.gmra.mrb[0].mxu0 %v4120
      %v4191 = vpop.f32.mrb[0].mxu0
      %v4192 = vadd.f32 %v4117, %v4191
      %v4193 = vpop.f32.mrb[0].mxu0
      %4194 = vmatprep.mubr.f32.mxu0 0.0
      %4195 = vmatmul.mubr.f32.gmra.mrb[0].mxu0 %v4123
      %v4196 = vpop.f32.mrb[0].mxu0
      %v4197 = vadd.f32 %v4117, %v4196
      %v4198 = vpop.f32.mrb[0].mxu0
      %4199 = vdwg.mxu0
      %v4201 = vsel %vm809, %v4192, 0
      %v4204 = vsel %vm809, %v4197, 0
      %4206 = vmatprep.subr.mxu0 0.0
      %4207 = vmatpush1.msra.mxu0 %v704
      %4208 = vmatprep.subr.mxu0 0.0
      %4209 = vmatpush1.msra.mxu0 %v705
      %4210 = vmatprep.subr.mxu0 0.0
      %4211 = vmatpush1.msra.mxu0 %v706
      %4212 = vmatprep.subr.mxu0 0.0
      %4213 = vmatpush1.msra.mxu0 %v707
      %4214 = vmatprep.subr.mxu0 0.0
      %4215 = vmatpush1.msra.mxu0 0.0
      %4216 = vmatprep.subr.mxu0 0.0
      %4217 = vmatpush1.msra.mxu0 0.0
      %4218 = vmatprep.subr.mxu0 0.0
      %4219 = vmatpush1.msra.mxu0 0.0
      %4220 = vmatprep.subr.mxu0 0.0
      %4221 = vmatpush1.msra.mxu0 0.0
      %4222 = vmatprep.subr.mxu0 0.0
      %4223 = vmatpush1.msra.mxu0 0.0
      %4224 = vmatprep.subr.mxu0 0.0
      %4225 = vmatpush1.msra.mxu0 0.0
      %4226 = vmatprep.subr.mxu0 0.0
      %4227 = vmatpush1.msra.mxu0 0.0
      %4228 = vmatprep.subr.mxu0 0.0
      %4229 = vmatpush1.msra.mxu0 0.0
      %4230 = vmatprep.subr.mxu0 0.0
      %4231 = vmatpush1.msra.mxu0 0.0
      %4232 = vmatprep.subr.mxu0 0.0
      %4233 = vmatpush1.msra.mxu0 0.0
      %4234 = vmatprep.subr.mxu0 0.0
      %4235 = vmatpush1.msra.mxu0 0.0
      %4236 = vmatprep.subr.mxu0 0.0
      %4237 = vmatpush1.msra.mxu0 0.0
      %4238 = vmatprep.subr.mxu0 0.0
      %4239 = vmatpush1.msra.mxu0 0.0
      %4240 = vmatprep.subr.mxu0 0.0
      %4241 = vmatpush1.msra.mxu0 0.0
      %4242 = vmatprep.subr.mxu0 0.0
      %4243 = vmatpush1.msra.mxu0 0.0
      %4244 = vmatprep.subr.mxu0 0.0
      %4245 = vmatpush1.msra.mxu0 0.0
      %4246 = vmatprep.subr.mxu0 0.0
      %4247 = vmatpush1.msra.mxu0 0.0
      %4248 = vmatprep.subr.mxu0 0.0
      %4249 = vmatpush1.msra.mxu0 0.0
      %4250 = vmatprep.subr.mxu0 0.0
      %4251 = vmatpush1.msra.mxu0 0.0
      %4252 = vmatprep.subr.mxu0 0.0
      %4253 = vmatpush1.msra.mxu0 0.0
      %4254 = vmatprep.subr.mxu0 0.0
      %4255 = vmatpush1.msra.mxu0 0.0
      %4256 = vmatprep.subr.mxu0 0.0
      %4257 = vmatpush1.msra.mxu0 0.0
      %4258 = vmatprep.subr.mxu0 0.0
      %4259 = vmatpush1.msra.mxu0 0.0
      %4260 = vmatprep.subr.mxu0 0.0
      %4261 = vmatpush1.msra.mxu0 0.0
      %4262 = vmatprep.subr.mxu0 0.0
      %4263 = vmatpush1.msra.mxu0 0.0
      %4264 = vmatprep.subr.mxu0 0.0
      %4265 = vmatpush1.msra.mxu0 0.0
      %4266 = vmatprep.subr.mxu0 0.0
      %4267 = vmatpush1.msra.mxu0 0.0
      %4268 = vmatprep.subr.mxu0 0.0
      %4269 = vmatpush1.msra.mxu0 0.0
      %4270 = vmatprep.mubr.f32.mxu0 0.0
      %4271 = vmatmul.mubr.f32.gmra.mrb[0].mxu0 %v4201
      %v4272 = vpop.f32.mrb[0].mxu0
      %v4273 = vadd.f32 0.0, %v4272
      %v4274 = vpop.f32.mrb[0].mxu0
      %4275 = vmatprep.mubr.f32.mxu0 0.0
      %4276 = vmatmul.mubr.f32.gmra.mrb[0].mxu0 %v4204
      %v4277 = vpop.f32.mrb[0].mxu0
      %v4278 = vadd.f32 0.0, %v4277
      %v4279 = vpop.f32.mrb[0].mxu0
      %4280 = vdwg.mxu0
      %v4281 = vmul.f32 %v4273, 0.125
      %v4282 = vmul.f32 %v4278, 0.125
      %v4284 = vsel %vm719, %v4281, 0
      %v4287 = vsel %vm719, %v4282, 0
      %4289 = vmatprep.subr.mxu0 0.0
      %4290 = vmatpush1.msra.mxu0 %v1360
      %4291 = vmatprep.subr.mxu0 0.0
      %4292 = vmatpush1.msra.mxu0 0.0
      %4293 = vmatprep.subr.mxu0 0.0
      %4294 = vmatpush1.msra.mxu0 0.0
      %4295 = vmatprep.subr.mxu0 0.0
      %4296 = vmatpush1.msra.mxu0 0.0
      %4297 = vmatprep.subr.mxu0 0.0
      %4298 = vmatpush1.msra.mxu0 0.0
      %4299 = vmatprep.subr.mxu0 0.0
      %4300 = vmatpush1.msra.mxu0 0.0
      %4301 = vmatprep.subr.mxu0 0.0
      %4302 = vmatpush1.msra.mxu0 0.0
      %4303 = vmatprep.subr.mxu0 0.0
      %4304 = vmatpush1.msra.mxu0 0.0
      %4305 = vmatprep.subr.mxu0 0.0
      %4306 = vmatpush1.msra.mxu0 0.0
      %4307 = vmatprep.subr.mxu0 0.0
      %4308 = vmatpush1.msra.mxu0 0.0
      %4309 = vmatprep.subr.mxu0 0.0
      %4310 = vmatpush1.msra.mxu0 0.0
      %4311 = vmatprep.subr.mxu0 0.0
      %4312 = vmatpush1.msra.mxu0 0.0
      %4313 = vmatprep.subr.mxu0 0.0
      %4314 = vmatpush1.msra.mxu0 0.0
      %4315 = vmatprep.subr.mxu0 0.0
      %4316 = vmatpush1.msra.mxu0 0.0
      %4317 = vmatprep.subr.mxu0 0.0
      %4318 = vmatpush1.msra.mxu0 0.0
      %4319 = vmatprep.subr.mxu0 0.0
      %4320 = vmatpush1.msra.mxu0 0.0
      %4321 = vmatprep.subr.mxu0 0.0
      %4322 = vmatpush1.msra.mxu0 0.0
      %4323 = vmatprep.subr.mxu0 0.0
      %4324 = vmatpush1.msra.mxu0 0.0
      %4325 = vmatprep.subr.mxu0 0.0
      %4326 = vmatpush1.msra.mxu0 0.0
      %4327 = vmatprep.subr.mxu0 0.0
      %4328 = vmatpush1.msra.mxu0 0.0
      %4329 = vmatprep.subr.mxu0 0.0
      %4330 = vmatpush1.msra.mxu0 0.0
      %4331 = vmatprep.subr.mxu0 0.0
      %4332 = vmatpush1.msra.mxu0 0.0
      %4333 = vmatprep.subr.mxu0 0.0
      %4334 = vmatpush1.msra.mxu0 0.0
      %4335 = vmatprep.subr.mxu0 0.0
      %4336 = vmatpush1.msra.mxu0 0.0
      %4337 = vmatprep.subr.mxu0 0.0
      %4338 = vmatpush1.msra.mxu0 0.0
      %4339 = vmatprep.subr.mxu0 0.0
      %4340 = vmatpush1.msra.mxu0 0.0
      %4341 = vmatprep.subr.mxu0 0.0
      %4342 = vmatpush1.msra.mxu0 0.0
      %4343 = vmatprep.subr.mxu0 0.0
      %4344 = vmatpush1.msra.mxu0 0.0
      %4345 = vmatprep.subr.mxu0 0.0
      %4346 = vmatpush1.msra.mxu0 0.0
      %4347 = vmatprep.subr.mxu0 0.0
      %4348 = vmatpush1.msra.mxu0 0.0
      %4349 = vmatprep.subr.mxu0 0.0
      %4350 = vmatpush1.msra.mxu0 0.0
      %4351 = vmatprep.subr.mxu0 0.0
      %4352 = vmatpush1.msra.mxu0 0.0
      %4353 = vmatprep.mubr.f32.mxu0 0.0
      %4354 = vmatmul.mubr.f32.gmra.mrb[0].mxu0 %v4284
      %v4355 = vpop.f32.mrb[0].mxu0
      %v4356 = vadd.f32 0.0, %v4355
      %v4357 = vpop.f32.mrb[0].mxu0
      %4358 = vmatprep.mubr.f32.mxu0 0.0
      %4359 = vmatmul.mubr.f32.gmra.mrb[0].mxu0 %v4287
      %v4360 = vpop.f32.mrb[0].mxu0
      %v4361 = vadd.f32 0.0, %v4360
      %v4362 = vpop.f32.mrb[0].mxu0
      %4363 = vdwg.mxu0
      %v4364 = vsub.f32 %v4192, %v4356
      %v4365 = vsub.f32 %v4197, %v4361
      %v4366 = vmul.f32 %v4364, %v4364
      %v4367 = vmul.f32 %v4365, %v4365
      %v4369 = vsel %vm809, %v4366, 0
      %v4372 = vsel %vm809, %v4367, 0
      %4374 = vmatprep.subr.mxu0 0.0
      %4375 = vmatpush1.msra.mxu0 %v704
      %4376 = vmatprep.subr.mxu0 0.0
      %4377 = vmatpush1.msra.mxu0 %v705
      %4378 = vmatprep.subr.mxu0 0.0
      %4379 = vmatpush1.msra.mxu0 %v706
      %4380 = vmatprep.subr.mxu0 0.0
      %4381 = vmatpush1.msra.mxu0 %v707
      %4382 = vmatprep.subr.mxu0 0.0
      %4383 = vmatpush1.msra.mxu0 0.0
      %4384 = vmatprep.subr.mxu0 0.0
      %4385 = vmatpush1.msra.mxu0 0.0
      %4386 = vmatprep.subr.mxu0 0.0
      %4387 = vmatpush1.msra.mxu0 0.0
      %4388 = vmatprep.subr.mxu0 0.0
      %4389 = vmatpush1.msra.mxu0 0.0
      %4390 = vmatprep.subr.mxu0 0.0
      %4391 = vmatpush1.msra.mxu0 0.0
      %4392 = vmatprep.subr.mxu0 0.0
      %4393 = vmatpush1.msra.mxu0 0.0
      %4394 = vmatprep.subr.mxu0 0.0
      %4395 = vmatpush1.msra.mxu0 0.0
      %4396 = vmatprep.subr.mxu0 0.0
      %4397 = vmatpush1.msra.mxu0 0.0
      %4398 = vmatprep.subr.mxu0 0.0
      %4399 = vmatpush1.msra.mxu0 0.0
      %4400 = vmatprep.subr.mxu0 0.0
      %4401 = vmatpush1.msra.mxu0 0.0
      %4402 = vmatprep.subr.mxu0 0.0
      %4403 = vmatpush1.msra.mxu0 0.0
      %4404 = vmatprep.subr.mxu0 0.0
      %4405 = vmatpush1.msra.mxu0 0.0
      %4406 = vmatprep.subr.mxu0 0.0
      %4407 = vmatpush1.msra.mxu0 0.0
      %4408 = vmatprep.subr.mxu0 0.0
      %4409 = vmatpush1.msra.mxu0 0.0
      %4410 = vmatprep.subr.mxu0 0.0
      %4411 = vmatpush1.msra.mxu0 0.0
      %4412 = vmatprep.subr.mxu0 0.0
      %4413 = vmatpush1.msra.mxu0 0.0
      %4414 = vmatprep.subr.mxu0 0.0
      %4415 = vmatpush1.msra.mxu0 0.0
      %4416 = vmatprep.subr.mxu0 0.0
      %4417 = vmatpush1.msra.mxu0 0.0
      %4418 = vmatprep.subr.mxu0 0.0
      %4419 = vmatpush1.msra.mxu0 0.0
      %4420 = vmatprep.subr.mxu0 0.0
      %4421 = vmatpush1.msra.mxu0 0.0
      %4422 = vmatprep.subr.mxu0 0.0
      %4423 = vmatpush1.msra.mxu0 0.0
      %4424 = vmatprep.subr.mxu0 0.0
      %4425 = vmatpush1.msra.mxu0 0.0
      %4426 = vmatprep.subr.mxu0 0.0
      %4427 = vmatpush1.msra.mxu0 0.0
      %4428 = vmatprep.subr.mxu0 0.0
      %4429 = vmatpush1.msra.mxu0 0.0
      %4430 = vmatprep.subr.mxu0 0.0
      %4431 = vmatpush1.msra.mxu0 0.0
      %4432 = vmatprep.subr.mxu0 0.0
      %4433 = vmatpush1.msra.mxu0 0.0
      %4434 = vmatprep.subr.mxu0 0.0
      %4435 = vmatpush1.msra.mxu0 0.0
      %4436 = vmatprep.subr.mxu0 0.0
      %4437 = vmatpush1.msra.mxu0 0.0
      %4438 = vmatprep.mubr.f32.mxu0 0.0
      %4439 = vmatmul.mubr.f32.gmra.mrb[0].mxu0 %v4369
      %v4440 = vpop.f32.mrb[0].mxu0
      %v4441 = vadd.f32 0.0, %v4440
      %v4442 = vpop.f32.mrb[0].mxu0
      %4443 = vmatprep.mubr.f32.mxu0 0.0
      %4444 = vmatmul.mubr.f32.gmra.mrb[0].mxu0 %v4372
      %v4445 = vpop.f32.mrb[0].mxu0
      %v4446 = vadd.f32 0.0, %v4445
      %v4447 = vpop.f32.mrb[0].mxu0
      %4448 = vdwg.mxu0
      %v4449 = vmul.f32 %v4441, 0.125
      %v4450 = vmul.f32 %v4446, 0.125
      %v4452 = vsel %vm719, %v4449, 0
      %v4455 = vsel %vm719, %v4450, 0
      %4457 = vmatprep.subr.mxu0 0.0
      %4458 = vmatpush1.msra.mxu0 %v1360
      %4459 = vmatprep.subr.mxu0 0.0
      %4460 = vmatpush1.msra.mxu0 0.0
      %4461 = vmatprep.subr.mxu0 0.0
      %4462 = vmatpush1.msra.mxu0 0.0
      %4463 = vmatprep.subr.mxu0 0.0
      %4464 = vmatpush1.msra.mxu0 0.0
      %4465 = vmatprep.subr.mxu0 0.0
      %4466 = vmatpush1.msra.mxu0 0.0
      %4467 = vmatprep.subr.mxu0 0.0
      %4468 = vmatpush1.msra.mxu0 0.0
      %4469 = vmatprep.subr.mxu0 0.0
      %4470 = vmatpush1.msra.mxu0 0.0
      %4471 = vmatprep.subr.mxu0 0.0
      %4472 = vmatpush1.msra.mxu0 0.0
      %4473 = vmatprep.subr.mxu0 0.0
      %4474 = vmatpush1.msra.mxu0 0.0
      %4475 = vmatprep.subr.mxu0 0.0
      %4476 = vmatpush1.msra.mxu0 0.0
      %4477 = vmatprep.subr.mxu0 0.0
      %4478 = vmatpush1.msra.mxu0 0.0
      %4479 = vmatprep.subr.mxu0 0.0
      %4480 = vmatpush1.msra.mxu0 0.0
      %4481 = vmatprep.subr.mxu0 0.0
      %4482 = vmatpush1.msra.mxu0 0.0
      %4483 = vmatprep.subr.mxu0 0.0
      %4484 = vmatpush1.msra.mxu0 0.0
      %4485 = vmatprep.subr.mxu0 0.0
      %4486 = vmatpush1.msra.mxu0 0.0
      %4487 = vmatprep.subr.mxu0 0.0
      %4488 = vmatpush1.msra.mxu0 0.0
      %4489 = vmatprep.subr.mxu0 0.0
      %4490 = vmatpush1.msra.mxu0 0.0
      %4491 = vmatprep.subr.mxu0 0.0
      %4492 = vmatpush1.msra.mxu0 0.0
      %4493 = vmatprep.subr.mxu0 0.0
      %4494 = vmatpush1.msra.mxu0 0.0
      %4495 = vmatprep.subr.mxu0 0.0
      %4496 = vmatpush1.msra.mxu0 0.0
      %4497 = vmatprep.subr.mxu0 0.0
      %4498 = vmatpush1.msra.mxu0 0.0
      %4499 = vmatprep.subr.mxu0 0.0
      %4500 = vmatpush1.msra.mxu0 0.0
      %4501 = vmatprep.subr.mxu0 0.0
      %4502 = vmatpush1.msra.mxu0 0.0
      %4503 = vmatprep.subr.mxu0 0.0
      %4504 = vmatpush1.msra.mxu0 0.0
      %4505 = vmatprep.subr.mxu0 0.0
      %4506 = vmatpush1.msra.mxu0 0.0
      %4507 = vmatprep.subr.mxu0 0.0
      %4508 = vmatpush1.msra.mxu0 0.0
      %4509 = vmatprep.subr.mxu0 0.0
      %4510 = vmatpush1.msra.mxu0 0.0
      %4511 = vmatprep.subr.mxu0 0.0
      %4512 = vmatpush1.msra.mxu0 0.0
      %4513 = vmatprep.subr.mxu0 0.0
      %4514 = vmatpush1.msra.mxu0 0.0
      %4515 = vmatprep.subr.mxu0 0.0
      %4516 = vmatpush1.msra.mxu0 0.0
      %4517 = vmatprep.subr.mxu0 0.0
      %4518 = vmatpush1.msra.mxu0 0.0
      %4519 = vmatprep.subr.mxu0 0.0
      %4520 = vmatpush1.msra.mxu0 0.0
      %4521 = vmatprep.mubr.f32.mxu0 0.0
      %4522 = vmatmul.mubr.f32.gmra.mrb[0].mxu0 %v4452
      %v4523 = vpop.f32.mrb[0].mxu0
      %v4524 = vadd.f32 1e-05, %v4523
      %v4525 = vpop.f32.mrb[0].mxu0
      %4526 = vmatprep.mubr.f32.mxu0 0.0
      %4527 = vmatmul.mubr.f32.gmra.mrb[0].mxu0 %v4455
      %v4528 = vpop.f32.mrb[0].mxu0
      %v4529 = vadd.f32 1e-05, %v4528
      %v4530 = vpop.f32.mrb[0].mxu0
      %4531 = vdwg.mxu0
      %v4532 = vrsqrt.pop %v4524
      %v4533 = vrsqrt.pop %v4529
      %v4534 = vmul.f32 %v4364, %v4532
      %v4535 = vmul.f32 %v4365, %v4533
      %s4536 = scalar_lea.vmem %s10, 2
      %v4537 = vld [vmem:[%s4536] sm:$0x1]
      %v4539 = vlaneseq
      %v4540 = vshrl.u32 %v4539, 7
      %v4541 = vsub.s32 0, %v4540
      %v4542 = vrot.slane %v4537, %v4541
      %v4544 = vmul.f32 %v4534, %v4542
      %v4545 = vmul.f32 %v4535, %v4542
      %s4546 = scalar_lea.vmem %s11, 2
      %v4547 = vld [vmem:[%s4546] sm:$0x1]
      %v4549 = vlaneseq
      %v4550 = vshrl.u32 %v4549, 7
      %v4551 = vsub.s32 0, %v4550
      %v4552 = vrot.slane %v4547, %v4551
      %v4554 = vadd.f32 %v4544, %v4552
      %v4555 = vadd.f32 %v4545, %v4552
      %s4556 = scalar_lea.vmem %s16, 128
      %v4557 = vld [vmem:[%s4556] sm:$0xff]
      %v4558 = vld [vmem:[%s4556 + $0x8] sm:$0xff]
      %v4559 = vld [vmem:[%s4556 + $0x10] sm:$0xff]
      %v4560 = vld [vmem:[%s4556 + $0x18] sm:$0xff]
      %v4561 = vld [vmem:[%s4556 + $0x20] sm:$0xff]
      %v4562 = vld [vmem:[%s4556 + $0x28] sm:$0xff]
      %v4563 = vld [vmem:[%s4556 + $0x30] sm:$0xff]
      %v4564 = vld [vmem:[%s4556 + $0x38] sm:$0xff]
      %v4566 = vsel %vm809, %v3491, 0
      %v4569 = vsel %vm809, %v3492, 0
      %4571 = vmatprep.subr.mxu0 0.0
      %4572 = vmatpush1.msra.mxu0 %v4561
      %4573 = vmatprep.subr.mxu0 0.0
      %4574 = vmatpush1.msra.mxu0 %v4562
      %4575 = vmatprep.subr.mxu0 0.0
      %4576 = vmatpush1.msra.mxu0 %v4563
      %4577 = vmatprep.subr.mxu0 0.0
      %4578 = vmatpush1.msra.mxu0 %v4564
      %4579 = vmatprep.subr.mxu0 0.0
      %4580 = vmatpush1.msra.mxu0 0.0
      %4581 = vmatprep.subr.mxu0 0.0
      %4582 = vmatpush1.msra.mxu0 0.0
      %4583 = vmatprep.subr.mxu0 0.0
      %4584 = vmatpush1.msra.mxu0 0.0
      %4585 = vmatprep.subr.mxu0 0.0
      %4586 = vmatpush1.msra.mxu0 0.0
      %4587 = vmatprep.subr.mxu0 0.0
      %4588 = vmatpush1.msra.mxu0 0.0
      %4589 = vmatprep.subr.mxu0 0.0
      %4590 = vmatpush1.msra.mxu0 0.0
      %4591 = vmatprep.subr.mxu0 0.0
      %4592 = vmatpush1.msra.mxu0 0.0
      %4593 = vmatprep.subr.mxu0 0.0
      %4594 = vmatpush1.msra.mxu0 0.0
      %4595 = vmatprep.subr.mxu0 0.0
      %4596 = vmatpush1.msra.mxu0 0.0
      %4597 = vmatprep.subr.mxu0 0.0
      %4598 = vmatpush1.msra.mxu0 0.0
      %4599 = vmatprep.subr.mxu0 0.0
      %4600 = vmatpush1.msra.mxu0 0.0
      %4601 = vmatprep.subr.mxu0 0.0
      %4602 = vmatpush1.msra.mxu0 0.0
      %4603 = vmatprep.subr.mxu0 0.0
      %4604 = vmatpush1.msra.mxu0 0.0
      %4605 = vmatprep.subr.mxu0 0.0
      %4606 = vmatpush1.msra.mxu0 0.0
      %4607 = vmatprep.subr.mxu0 0.0
      %4608 = vmatpush1.msra.mxu0 0.0
      %4609 = vmatprep.subr.mxu0 0.0
      %4610 = vmatpush1.msra.mxu0 0.0
      %4611 = vmatprep.subr.mxu0 0.0
      %4612 = vmatpush1.msra.mxu0 0.0
      %4613 = vmatprep.subr.mxu0 0.0
      %4614 = vmatpush1.msra.mxu0 0.0
      %4615 = vmatprep.subr.mxu0 0.0
      %4616 = vmatpush1.msra.mxu0 0.0
      %4617 = vmatprep.subr.mxu0 0.0
      %4618 = vmatpush1.msra.mxu0 0.0
      %4619 = vmatprep.subr.mxu0 0.0
      %4620 = vmatpush1.msra.mxu0 0.0
      %4621 = vmatprep.subr.mxu0 0.0
      %4622 = vmatpush1.msra.mxu0 0.0
      %4623 = vmatprep.subr.mxu0 0.0
      %4624 = vmatpush1.msra.mxu0 0.0
      %4625 = vmatprep.subr.mxu0 0.0
      %4626 = vmatpush1.msra.mxu0 0.0
      %4627 = vmatprep.subr.mxu0 0.0
      %4628 = vmatpush1.msra.mxu0 0.0
      %4629 = vmatprep.subr.mxu0 0.0
      %4630 = vmatpush1.msra.mxu0 0.0
      %4631 = vmatprep.subr.mxu0 0.0
      %4632 = vmatpush1.msra.mxu0 0.0
      %4633 = vmatprep.subr.mxu0 0.0
      %4634 = vmatpush1.msra.mxu0 0.0
      %4635 = vmatprep.mubr.f32.mxu0 0.0
      %4636 = vmatmul.mubr.f32.gmra.mrb[0].mxu0 %v4566
      %v4637 = vpop.f32.mrb[0].mxu0
      %v4638 = vadd.f32 0.0, %v4637
      %v4639 = vpop.f32.mrb[0].mxu0
      %4640 = vmatprep.mubr.f32.mxu0 0.0
      %4641 = vmatmul.mubr.f32.gmra.mrb[0].mxu0 %v4569
      %v4642 = vpop.f32.mrb[0].mxu0
      %v4643 = vadd.f32 0.0, %v4642
      %v4644 = vpop.f32.mrb[0].mxu0
      %4645 = vdwg.mxu0
      %v4647 = vsel %vm809, %v4554, 0
      %v4650 = vsel %vm809, %v4555, 0
      %4652 = vmatprep.subr.mxu0 0.0
      %4653 = vmatpush1.msra.mxu0 %v4557
      %4654 = vmatprep.subr.mxu0 0.0
      %4655 = vmatpush1.msra.mxu0 %v4558
      %4656 = vmatprep.subr.mxu0 0.0
      %4657 = vmatpush1.msra.mxu0 %v4559
      %4658 = vmatprep.subr.mxu0 0.0
      %4659 = vmatpush1.msra.mxu0 %v4560
      %4660 = vmatprep.subr.mxu0 0.0
      %4661 = vmatpush1.msra.mxu0 0.0
      %4662 = vmatprep.subr.mxu0 0.0
      %4663 = vmatpush1.msra.mxu0 0.0
      %4664 = vmatprep.subr.mxu0 0.0
      %4665 = vmatpush1.msra.mxu0 0.0
      %4666 = vmatprep.subr.mxu0 0.0
      %4667 = vmatpush1.msra.mxu0 0.0
      %4668 = vmatprep.subr.mxu0 0.0
      %4669 = vmatpush1.msra.mxu0 0.0
      %4670 = vmatprep.subr.mxu0 0.0
      %4671 = vmatpush1.msra.mxu0 0.0
      %4672 = vmatprep.subr.mxu0 0.0
      %4673 = vmatpush1.msra.mxu0 0.0
      %4674 = vmatprep.subr.mxu0 0.0
      %4675 = vmatpush1.msra.mxu0 0.0
      %4676 = vmatprep.subr.mxu0 0.0
      %4677 = vmatpush1.msra.mxu0 0.0
      %4678 = vmatprep.subr.mxu0 0.0
      %4679 = vmatpush1.msra.mxu0 0.0
      %4680 = vmatprep.subr.mxu0 0.0
      %4681 = vmatpush1.msra.mxu0 0.0
      %4682 = vmatprep.subr.mxu0 0.0
      %4683 = vmatpush1.msra.mxu0 0.0
      %4684 = vmatprep.subr.mxu0 0.0
      %4685 = vmatpush1.msra.mxu0 0.0
      %4686 = vmatprep.subr.mxu0 0.0
      %4687 = vmatpush1.msra.mxu0 0.0
      %4688 = vmatprep.subr.mxu0 0.0
      %4689 = vmatpush1.msra.mxu0 0.0
      %4690 = vmatprep.subr.mxu0 0.0
      %4691 = vmatpush1.msra.mxu0 0.0
      %4692 = vmatprep.subr.mxu0 0.0
      %4693 = vmatpush1.msra.mxu0 0.0
      %4694 = vmatprep.subr.mxu0 0.0
      %4695 = vmatpush1.msra.mxu0 0.0
      %4696 = vmatprep.subr.mxu0 0.0
      %4697 = vmatpush1.msra.mxu0 0.0
      %4698 = vmatprep.subr.mxu0 0.0
      %4699 = vmatpush1.msra.mxu0 0.0
      %4700 = vmatprep.subr.mxu0 0.0
      %4701 = vmatpush1.msra.mxu0 0.0
      %4702 = vmatprep.subr.mxu0 0.0
      %4703 = vmatpush1.msra.mxu0 0.0
      %4704 = vmatprep.subr.mxu0 0.0
      %4705 = vmatpush1.msra.mxu0 0.0
      %4706 = vmatprep.subr.mxu0 0.0
      %4707 = vmatpush1.msra.mxu0 0.0
      %4708 = vmatprep.subr.mxu0 0.0
      %4709 = vmatpush1.msra.mxu0 0.0
      %4710 = vmatprep.subr.mxu0 0.0
      %4711 = vmatpush1.msra.mxu0 0.0
      %4712 = vmatprep.subr.mxu0 0.0
      %4713 = vmatpush1.msra.mxu0 0.0
      %4714 = vmatprep.subr.mxu0 0.0
      %4715 = vmatpush1.msra.mxu0 0.0
      %4716 = vmatprep.mubr.f32.mxu0 0.0
      %4717 = vmatmul.mubr.f32.gmra.mrb[0].mxu0 %v4647
      %v4718 = vpop.f32.mrb[0].mxu0
      %v4719 = vadd.f32 %v4638, %v4718
      %v4720 = vpop.f32.mrb[0].mxu0
      %4721 = vmatprep.mubr.f32.mxu0 0.0
      %4722 = vmatmul.mubr.f32.gmra.mrb[0].mxu0 %v4650
      %v4723 = vpop.f32.mrb[0].mxu0
      %v4724 = vadd.f32 %v4643, %v4723
      %v4725 = vpop.f32.mrb[0].mxu0
      %4726 = vdwg.mxu0
      %s4727 = scalar_lea.vmem %s17, 2
      %v4728 = vld [vmem:[%s4727] sm:$0x1]
      %v4730 = vlaneseq
      %v4731 = vshrl.u32 %v4730, 7
      %v4732 = vsub.s32 0, %v4731
      %v4733 = vrot.slane %v4728, %v4732
      %v4735 = vadd.f32 %v4719, %v4733
      %v4736 = vadd.f32 %v4724, %v4733
      %v4737 = vmax.f32 %v4735, 0.0
      %v4738 = vmax.f32 %v4736, 0.0
      %v4739 = vld [vmem:[%s18] sm:$0xff]
      %v4740 = vld [vmem:[%s18 + $0x8] sm:$0xff]
      %v4741 = vld [vmem:[%s18 + $0x10] sm:$0xff]
      %v4742 = vld [vmem:[%s18 + $0x18] sm:$0xff]
      %v4743 = vld [vmem:[%s19] sm:$0x1]
      %v4745 = vlaneseq
      %v4746 = vshrl.u32 %v4745, 7
      %v4747 = vsub.s32 0, %v4746
      %v4748 = vrot.slane %v4743, %v4747
      %v4751 = vsel %vm809, %v4737, 0
      %v4754 = vsel %vm809, %v4738, 0
      %4756 = vmatprep.subr.mxu0 0.0
      %4757 = vmatpush1.msra.mxu0 %v4739
      %4758 = vmatprep.subr.mxu0 0.0
      %4759 = vmatpush1.msra.mxu0 %v4740
      %4760 = vmatprep.subr.mxu0 0.0
      %4761 = vmatpush1.msra.mxu0 %v4741
      %4762 = vmatprep.subr.mxu0 0.0
      %4763 = vmatpush1.msra.mxu0 %v4742
      %4764 = vmatprep.subr.mxu0 0.0
      %4765 = vmatpush1.msra.mxu0 0.0
      %4766 = vmatprep.subr.mxu0 0.0
      %4767 = vmatpush1.msra.mxu0 0.0
      %4768 = vmatprep.subr.mxu0 0.0
      %4769 = vmatpush1.msra.mxu0 0.0
      %4770 = vmatprep.subr.mxu0 0.0
      %4771 = vmatpush1.msra.mxu0 0.0
      %4772 = vmatprep.subr.mxu0 0.0
      %4773 = vmatpush1.msra.mxu0 0.0
      %4774 = vmatprep.subr.mxu0 0.0
      %4775 = vmatpush1.msra.mxu0 0.0
      %4776 = vmatprep.subr.mxu0 0.0
      %4777 = vmatpush1.msra.mxu0 0.0
      %4778 = vmatprep.subr.mxu0 0.0
      %4779 = vmatpush1.msra.mxu0 0.0
      %4780 = vmatprep.subr.mxu0 0.0
      %4781 = vmatpush1.msra.mxu0 0.0
      %4782 = vmatprep.subr.mxu0 0.0
      %4783 = vmatpush1.msra.mxu0 0.0
      %4784 = vmatprep.subr.mxu0 0.0
      %4785 = vmatpush1.msra.mxu0 0.0
      %4786 = vmatprep.subr.mxu0 0.0
      %4787 = vmatpush1.msra.mxu0 0.0
      %4788 = vmatprep.subr.mxu0 0.0
      %4789 = vmatpush1.msra.mxu0 0.0
      %4790 = vmatprep.subr.mxu0 0.0
      %4791 = vmatpush1.msra.mxu0 0.0
      %4792 = vmatprep.subr.mxu0 0.0
      %4793 = vmatpush1.msra.mxu0 0.0
      %4794 = vmatprep.subr.mxu0 0.0
      %4795 = vmatpush1.msra.mxu0 0.0
      %4796 = vmatprep.subr.mxu0 0.0
      %4797 = vmatpush1.msra.mxu0 0.0
      %4798 = vmatprep.subr.mxu0 0.0
      %4799 = vmatpush1.msra.mxu0 0.0
      %4800 = vmatprep.subr.mxu0 0.0
      %4801 = vmatpush1.msra.mxu0 0.0
      %4802 = vmatprep.subr.mxu0 0.0
      %4803 = vmatpush1.msra.mxu0 0.0
      %4804 = vmatprep.subr.mxu0 0.0
      %4805 = vmatpush1.msra.mxu0 0.0
      %4806 = vmatprep.subr.mxu0 0.0
      %4807 = vmatpush1.msra.mxu0 0.0
      %4808 = vmatprep.subr.mxu0 0.0
      %4809 = vmatpush1.msra.mxu0 0.0
      %4810 = vmatprep.subr.mxu0 0.0
      %4811 = vmatpush1.msra.mxu0 0.0
      %4812 = vmatprep.subr.mxu0 0.0
      %4813 = vmatpush1.msra.mxu0 0.0
      %4814 = vmatprep.subr.mxu0 0.0
      %4815 = vmatpush1.msra.mxu0 0.0
      %4816 = vmatprep.subr.mxu0 0.0
      %4817 = vmatpush1.msra.mxu0 0.0
      %4818 = vmatprep.subr.mxu0 0.0
      %4819 = vmatpush1.msra.mxu0 0.0
      %4820 = vmatprep.mubr.f32.mxu0 0.0
      %4821 = vmatmul.mubr.f32.gmra.mrb[0].mxu0 %v4751
      %v4822 = vpop.f32.mrb[0].mxu0
      %v4823 = vadd.f32 %v4748, %v4822
      %v4824 = vpop.f32.mrb[0].mxu0
      %4825 = vmatprep.mubr.f32.mxu0 0.0
      %4826 = vmatmul.mubr.f32.gmra.mrb[0].mxu0 %v4754
      %v4827 = vpop.f32.mrb[0].mxu0
      %v4828 = vadd.f32 %v4748, %v4827
      %v4829 = vpop.f32.mrb[0].mxu0
      %4830 = vdwg.mxu0
      %v4831 = vmax.f32 %v4823, 0.0
      %v4832 = vmax.f32 %v4828, 0.0
      %v4833 = vld [vmem:[%s20] sm:$0xff]
      %v4834 = vld [vmem:[%s20 + $0x8] sm:$0xff]
      %v4835 = vld [vmem:[%s20 + $0x10] sm:$0xff]
      %v4836 = vld [vmem:[%s20 + $0x18] sm:$0xff]
      %v4837 = vld [vmem:[%s21] sm:$0x1]
      %v4839 = vlaneseq
      %v4840 = vshrl.u32 %v4839, 7
      %v4841 = vsub.s32 0, %v4840
      %v4842 = vrot.slane %v4837, %v4841
      %v4845 = vsel %vm809, %v4831, 0
      %v4848 = vsel %vm809, %v4832, 0
      %4850 = vmatprep.subr.mxu0 0.0
      %4851 = vmatpush1.msra.mxu0 %v4833
      %4852 = vmatprep.subr.mxu0 0.0
      %4853 = vmatpush1.msra.mxu0 %v4834
      %4854 = vmatprep.subr.mxu0 0.0
      %4855 = vmatpush1.msra.mxu0 %v4835
      %4856 = vmatprep.subr.mxu0 0.0
      %4857 = vmatpush1.msra.mxu0 %v4836
      %4858 = vmatprep.subr.mxu0 0.0
      %4859 = vmatpush1.msra.mxu0 0.0
      %4860 = vmatprep.subr.mxu0 0.0
      %4861 = vmatpush1.msra.mxu0 0.0
      %4862 = vmatprep.subr.mxu0 0.0
      %4863 = vmatpush1.msra.mxu0 0.0
      %4864 = vmatprep.subr.mxu0 0.0
      %4865 = vmatpush1.msra.mxu0 0.0
      %4866 = vmatprep.subr.mxu0 0.0
      %4867 = vmatpush1.msra.mxu0 0.0
      %4868 = vmatprep.subr.mxu0 0.0
      %4869 = vmatpush1.msra.mxu0 0.0
      %4870 = vmatprep.subr.mxu0 0.0
      %4871 = vmatpush1.msra.mxu0 0.0
      %4872 = vmatprep.subr.mxu0 0.0
      %4873 = vmatpush1.msra.mxu0 0.0
      %4874 = vmatprep.subr.mxu0 0.0
      %4875 = vmatpush1.msra.mxu0 0.0
      %4876 = vmatprep.subr.mxu0 0.0
      %4877 = vmatpush1.msra.mxu0 0.0
      %4878 = vmatprep.subr.mxu0 0.0
      %4879 = vmatpush1.msra.mxu0 0.0
      %4880 = vmatprep.subr.mxu0 0.0
      %4881 = vmatpush1.msra.mxu0 0.0
      %4882 = vmatprep.subr.mxu0 0.0
      %4883 = vmatpush1.msra.mxu0 0.0
      %4884 = vmatprep.subr.mxu0 0.0
      %4885 = vmatpush1.msra.mxu0 0.0
      %4886 = vmatprep.subr.mxu0 0.0
      %4887 = vmatpush1.msra.mxu0 0.0
      %4888 = vmatprep.subr.mxu0 0.0
      %4889 = vmatpush1.msra.mxu0 0.0
      %4890 = vmatprep.subr.mxu0 0.0
      %4891 = vmatpush1.msra.mxu0 0.0
      %4892 = vmatprep.subr.mxu0 0.0
      %4893 = vmatpush1.msra.mxu0 0.0
      %4894 = vmatprep.subr.mxu0 0.0
      %4895 = vmatpush1.msra.mxu0 0.0
      %4896 = vmatprep.subr.mxu0 0.0
      %4897 = vmatpush1.msra.mxu0 0.0
      %4898 = vmatprep.subr.mxu0 0.0
      %4899 = vmatpush1.msra.mxu0 0.0
      %4900 = vmatprep.subr.mxu0 0.0
      %4901 = vmatpush1.msra.mxu0 0.0
      %4902 = vmatprep.subr.mxu0 0.0
      %4903 = vmatpush1.msra.mxu0 0.0
      %4904 = vmatprep.subr.mxu0 0.0
      %4905 = vmatpush1.msra.mxu0 0.0
      %4906 = vmatprep.subr.mxu0 0.0
      %4907 = vmatpush1.msra.mxu0 0.0
      %4908 = vmatprep.subr.mxu0 0.0
      %4909 = vmatpush1.msra.mxu0 0.0
      %4910 = vmatprep.subr.mxu0 0.0
      %4911 = vmatpush1.msra.mxu0 0.0
      %4912 = vmatprep.subr.mxu0 0.0
      %4913 = vmatpush1.msra.mxu0 0.0
      %4914 = vmatprep.mubr.f32.mxu0 0.0
      %4915 = vmatmul.mubr.f32.gmra.mrb[0].mxu0 %v4845
      %v4916 = vpop.f32.mrb[0].mxu0
      %v4917 = vadd.f32 %v4842, %v4916
      %v4918 = vpop.f32.mrb[0].mxu0
      %4919 = vmatprep.mubr.f32.mxu0 0.0
      %4920 = vmatmul.mubr.f32.gmra.mrb[0].mxu0 %v4848
      %v4921 = vpop.f32.mrb[0].mxu0
      %v4922 = vadd.f32 %v4842, %v4921
      %v4923 = vpop.f32.mrb[0].mxu0
      %4924 = vdwg.mxu0
      %4925 = vst [vmem:[%s703] sm:$0xff] %v4917
      %4926 = vst [vmem:[%s703 + $0x8] sm:$0xff] %v4922
      %p4927 = scmp.lt.s32.totalorder %s33, 1
      %s4928 = scalar_select %p4927, %s33, 1
      %s4929 = smul.addr %s4928, 2
      %s4930 = smul.addr %s4929, 8
      %s4931 = scalar_lea.vmem %s22, %s4930
      // Predicated region
      $region109: #{mgdpr_forward.1} parent=107 // pred_check
        %p4932 = pneg %p523
      $region110: #{mgdpr_forward.1} parent=107 // pred_check_branch
        %4934 = sbr.rel (%p4932) target = $region112
      $region111: #{mgdpr_forward.1} parent=107 // pred_region
        _
      $region112: #{mgdpr_forward.1} parent=107 // pred_fallthru
        _
    $region108: #{mgdpr_forward.1} parent=5 // pred_fallthru
      _
    %p4935 = scmp.le.s32.totalorder 2, %s28
    // Predicated region
    $region113: #{mgdpr_forward.1} parent=5 // pred_check
      %p4936 = pneg %p4935
    $region114: #{mgdpr_forward.1} parent=5 // pred_check_branch
      %4938 = sbr.rel (%p4936) target = $region116
    $region115: #{mgdpr_forward.1} parent=5 // pred_region
      %s4939 = ssub.s32 %s28, 2
      // Predicated region
      $region117: #{mgdpr_forward.1} parent=115 // pred_check
        %p4940 = pneg %p529
      $region118: #{mgdpr_forward.1} parent=115 // pred_check_branch
        %4942 = sbr.rel (%p4940) target = $region120
      $region119: #{mgdpr_forward.1} parent=115 // pred_region
        %p4943 = scmp.lt.s32.totalorder %s34, 1
        %s4944 = scalar_select %p4943, %s34, 1
        %s4945 = smul.addr %s4944, 2
        %s4946 = smul.addr %s4945, 8
        %s4947 = scalar_lea.vmem %s22, %s4946
      $region120: #{mgdpr_forward.1} parent=115 // pred_fallthru
        _
    $region116: #{mgdpr_forward.1} parent=5 // pred_fallthru
      _
  $region6: #{mgdpr_forward.1} parent=0 // loop_footer
    %s32 = sadd.s32 1, %s28
  $region7: #{mgdpr_forward.1} parent=0 // loop_footer_branch
    %27 = sbr.rel target = $region3
  $region8: #{mgdpr_forward.1} parent=0 // loop_exit
    _

</llo_original>
